<compile_context>
chip_gen: v6e
topology: v6e:2x2x1
jax: 0.10.0
libtpu: 0.0.40
codegen_flags: <defaults>
</compile_context>

<pallas_src>
import functools

import jax
import jax.numpy as jnp
from jax.experimental import pallas as pl
from jax.experimental.pallas import tpu as pltpu

# ----------------------------- configuration --------------------------------
IMG_SIZE = 32          # input spatial size (H = W)
C_IN = 3               # RGB
C_FEAT = 32            # backbone channel count (real model: 256)
STRIDE = 2             # backbone stride (single FPN level stand-in)
NUM_ANCHORS = 3        # anchors per location
K_PROPOSALS = 8        # proposals kept per image (real: 100)
POOL = 7               # RoI pool output resolution
REP_DIM = 64           # box-head feature size (real: 2048)
K_BB_PAD = 32          # backbone im2col K padded 27 -> 32
RPN_HEAD_N = 128       # lane-dense width for concatenated RPN cls+reg output

IMAGENET_MEAN = jnp.array([0.485, 0.456, 0.406], dtype=jnp.float32)
IMAGENET_STD = jnp.array([0.229, 0.224, 0.225], dtype=jnp.float32)


def _tile_m(m):
    for t in (256, 128, 64, 32, 16, 8):
        if m % t == 0:
            return t
    return m


# ----------------------------- Pallas kernels --------------------------------
def _conv_mm_kernel(x_ref, w_ref, b_ref, o_ref):
    # bf16 MXU matmul, f32 accumulation + bias + ReLU.
    acc = jnp.dot(x_ref[...], w_ref[...], preferred_element_type=jnp.float32)
    o_ref[...] = jnp.maximum(acc + b_ref[...], 0.0).astype(o_ref.dtype)


def conv_matmul(x, w, b, out_dtype=jnp.bfloat16):
    """Backbone conv-as-matmul (normalization 1/std already folded into w)."""
    m, k = x.shape
    n = w.shape[1]
    tm = _tile_m(m)
    return pl.pallas_call(
        _conv_mm_kernel,
        grid=(m // tm,),
        in_specs=[
            pl.BlockSpec((tm, k), lambda i: (i, 0)),
            pl.BlockSpec((k, n), lambda i: (0, 0)),
            pl.BlockSpec((1, n), lambda i: (0, 0)),
        ],
        out_specs=pl.BlockSpec((tm, n), lambda i: (i, 0)),
        out_shape=jax.ShapeDtypeStruct((m, n), out_dtype),
        compiler_params=pltpu.CompilerParams(dimension_semantics=("parallel",)),
    )(x, w, b.reshape(1, n))


def _rpn_head_kernel(x_ref, wc_ref, bc_ref, wh_ref, bh_ref, o_ref):
    # 3x3 conv (as matmul) + ReLU stays in VMEM/registers, then the fused
    # (cls|reg, zero-padded to 128 lanes) 1x1 heads -> one lane-dense store.
    h = jnp.dot(x_ref[...], wc_ref[...], preferred_element_type=jnp.float32)
    h = jnp.maximum(h + bc_ref[...], 0.0)
    o = jnp.dot(h.astype(wh_ref.dtype), wh_ref[...],
                preferred_element_type=jnp.float32)
    o_ref[...] = (o + bh_ref[...]).astype(o_ref.dtype)


def rpn_head(rcols, conv_w, conv_b, head_w, head_b):
    m, k = rcols.shape
    c = conv_w.shape[1]
    n = head_w.shape[1]
    tm = _tile_m(m)
    return pl.pallas_call(
        _rpn_head_kernel,
        grid=(m // tm,),
        in_specs=[
            pl.BlockSpec((tm, k), lambda i: (i, 0)),
            pl.BlockSpec((k, c), lambda i: (0, 0)),
            pl.BlockSpec((1, c), lambda i: (0, 0)),
            pl.BlockSpec((c, n), lambda i: (0, 0)),
            pl.BlockSpec((1, n), lambda i: (0, 0)),
        ],
        out_specs=pl.BlockSpec((tm, n), lambda i: (i, 0)),
        out_shape=jax.ShapeDtypeStruct((m, n), jnp.float32),
        compiler_params=pltpu.CompilerParams(dimension_semantics=("parallel",)),
    )(rcols, conv_w, conv_b.reshape(1, c), head_w, head_b.reshape(1, n))


def _roi_box_head_kernel(idx_ref, feat_ref, w6_ref, b6_ref, w7_ref, b7_ref,
                         o_ref, flat_ref, *, hw, k, nbins, c_feat):
    # One grid step = one image: gather all K*49 ROI-pool samples with a single
    # one-hot matmul, flatten to (K, 49*C) in (bin, channel) order, then fc6+fc7.
    nb = k * nbins
    idx = idx_ref[0]                                            # (nb, 1), bin-major rows
    pos = jax.lax.broadcasted_iota(jnp.int32, (nb, hw), 1)
    onehot = (pos == idx).astype(feat_ref.dtype)                # (nb, HW)
    pooled = jnp.dot(onehot, feat_ref[0],
                     preferred_element_type=jnp.float32)        # (nbins*K, C)
    # Row order is bin-major (row = bin*K + roi), so each bin's (K, C) slab is a
    # contiguous, sublane-aligned slice; place it at columns [bin*C, (bin+1)*C).
    # This avoids an in-kernel tiled reshape and any XLA transpose of pooled.
    for bn in range(nbins):
        flat_ref[:, bn * c_feat:(bn + 1) * c_feat] = pooled[bn * k:(bn + 1) * k, :]
    flat = flat_ref[...].astype(w6_ref.dtype)                   # (K, 49*C) bf16
    h6 = jnp.dot(flat, w6_ref[...], preferred_element_type=jnp.float32)
    h6 = jnp.maximum(h6 + b6_ref[...], 0.0)
    h7 = jnp.dot(h6.astype(w7_ref.dtype), w7_ref[...],
                 preferred_element_type=jnp.float32)
    o_ref[0] = jnp.maximum(h7 + b7_ref[...], 0.0).astype(o_ref.dtype)


def roi_box_head(feat_3d, idx_bk, w6, b6, w7, b7):
    """Fused box_roi_pool (nearest-sample) + TwoMLPHead (fc6+fc7), grid over B."""
    bsz, hw, c = feat_3d.shape
    _, nb, _ = idx_bk.shape
    nbins = POOL * POOL
    k = nb // nbins
    rep = w6.shape[1]
    kernel = functools.partial(_roi_box_head_kernel,
                               hw=hw, k=k, nbins=nbins, c_feat=c)
    return pl.pallas_call(
        kernel,
        grid=(bsz,),
        in_specs=[
            pl.BlockSpec((1, nb, 1), lambda b: (b, 0, 0)),
            pl.BlockSpec((1, hw, c), lambda b: (b, 0, 0)),
            pl.BlockSpec((nbins * c, rep), lambda b: (0, 0)),
            pl.BlockSpec((1, rep), lambda b: (0, 0)),
            pl.BlockSpec((rep, rep), lambda b: (0, 0)),
            pl.BlockSpec((1, rep), lambda b: (0, 0)),
        ],
        out_specs=pl.BlockSpec((1, k, rep), lambda b: (b, 0, 0)),
        out_shape=jax.ShapeDtypeStruct((bsz, k, rep), jnp.float32),
        scratch_shapes=[pltpu.VMEM((k, nbins * c), jnp.float32)],
        compiler_params=pltpu.CompilerParams(dimension_semantics=("parallel",)),
    )(idx_bk, feat_3d, w6, b6.reshape(1, rep), w7, b7.reshape(1, rep))


# ----------------------------- JAX glue --------------------------------------
def im2col(x_nhwc, ksize, stride, padding):
    """Extract ksize x ksize patches -> (B*Ho*Wo, k*k*C)."""
    B, H, W, C = x_nhwc.shape
    xp = jnp.pad(x_nhwc, ((0, 0), (padding, padding), (padding, padding), (0, 0)))
    Ho = (H + 2 * padding - ksize) // stride + 1
    Wo = (W + 2 * padding - ksize) // stride + 1
    cols = []
    for dy in range(ksize):
        for dx in range(ksize):
            cols.append(xp[:, dy:dy + stride * Ho:stride,
                           dx:dx + stride * Wo:stride, :])
    cols = jnp.concatenate(cols, axis=-1)                 # (B, Ho, Wo, k*k*C)
    return cols.reshape(B * Ho * Wo, ksize * ksize * C), Ho, Wo


def generate_proposals(objectness, deltas, B, Hf, Wf, num_anchors, stride,
                       img_size, k_per_img):
    """RPN proposal selection.

    TODO(synk): NMS has no clean Pallas/TPU equivalent; proposals are the
    top-k anchors by objectness, decoded with the predicted deltas.
    """
    L = Hf * Wf * num_anchors
    obj = objectness.reshape(B, L)
    dlt = deltas.reshape(B, L, 4)
    _, top_idx = jax.lax.top_k(obj, k_per_img)                        # (B, K)
    a = top_idx % num_anchors
    loc = top_idx // num_anchors
    yc = (loc // Wf).astype(jnp.float32)
    xc = (loc % Wf).astype(jnp.float32)
    sizes = jnp.array([4.0, 8.0, 16.0], dtype=jnp.float32)
    aw = sizes[a]
    ah = sizes[a]
    cx = (xc + 0.5) * stride
    cy = (yc + 0.5) * stride
    d = jnp.take_along_axis(dlt, top_idx[:, :, None], axis=1)         # (B, K, 4)
    dx, dy, dw, dh = d[..., 0], d[..., 1], d[..., 2], d[..., 3]
    dw = jnp.clip(dw, -4.0, 4.0)
    dh = jnp.clip(dh, -4.0, 4.0)
    pcx = cx + dx * aw
    pcy = cy + dy * ah
    pw = aw * jnp.exp(dw)
    ph = ah * jnp.exp(dh)
    x1 = jnp.clip(pcx - 0.5 * pw, 0.0, img_size)
    y1 = jnp.clip(pcy - 0.5 * ph, 0.0, img_size)
    x2 = jnp.clip(pcx + 0.5 * pw, 0.0, img_size)
    y2 = jnp.clip(pcy + 0.5 * ph, 0.0, img_size)
    return jnp.stack([x1, y1, x2, y2], axis=-1)                       # (B, K, 4)


def roi_sample_indices(boxes, B, K, stride, Hf, Wf, pool):
    """Map each proposal box to pool*pool nearest feature-map sample indices.

    TODO(synk): torchvision/maskrcnn-benchmark use bilinear multi-scale RoIAlign;
    here each bin takes the nearest sample on a single feature level.
    """
    R = B * K
    bx = boxes.reshape(R, 4)
    fx1, fy1 = bx[:, 0] / stride, bx[:, 1] / stride
    fx2, fy2 = bx[:, 2] / stride, bx[:, 3] / stride
    fw = jnp.maximum(fx2 - fx1, 1.0)
    fh = jnp.maximum(fy2 - fy1, 1.0)
    frac = (jnp.arange(pool, dtype=jnp.float32) + 0.5) / pool
    cxs = fx1[:, None] + frac[None, :] * fw[:, None]                  # (R, pool)
    cys = fy1[:, None] + frac[None, :] * fh[:, None]
    xi = jnp.clip(jnp.floor(cxs).astype(jnp.int32), 0, Wf - 1)
    yi = jnp.clip(jnp.floor(cys).astype(jnp.int32), 0, Hf - 1)
    idx = yi[:, :, None] * Wf + xi[:, None, :]                        # (R, pool, pool)
    return idx.reshape(R, pool * pool).astype(jnp.int32)


# ----------------------------- parameters ------------------------------------
def init_params(key):
    ks = jax.random.split(key, 6)

    def w(k, shape, scale=0.1):
        return scale * jax.random.normal(k, shape, dtype=jnp.float32)

    return {
        # backbone stand-in conv: 3x3 stride 2, 3 -> C_FEAT
        # TODO(synk): full ResNet-50 + FPN backbone replaced by one conv stem.
        "bb_w": w(ks[0], (3 * 3 * C_IN, C_FEAT)),
        "bb_b": jnp.zeros((C_FEAT,), jnp.float32),
        # RPN head: 3x3 conv + 1x1 cls + 1x1 reg
        "rpn_conv_w": w(ks[1], (3 * 3 * C_FEAT, C_FEAT)),
        "rpn_conv_b": jnp.zeros((C_FEAT,), jnp.float32),
        "rpn_cls_w": w(ks[2], (C_FEAT, NUM_ANCHORS)),
        "rpn_cls_b": jnp.zeros((NUM_ANCHORS,), jnp.float32),
        "rpn_reg_w": w(ks[3], (C_FEAT, 4 * NUM_ANCHORS)),
        "rpn_reg_b": jnp.zeros((4 * NUM_ANCHORS,), jnp.float32),
        # box_head (TwoMLPHead): fc6 / fc7.  fc6 rows are in (bin, channel)
        # order to match the fused ROI kernel's flatten; a real checkpoint's
        # (channel, bin) rows would be permuted here at load time.
        "fc6_w": w(ks[4], (POOL * POOL * C_FEAT, REP_DIM), scale=0.02),
        "fc6_b": jnp.zeros((REP_DIM,), jnp.float32),
        "fc7_w": w(ks[5], (REP_DIM, REP_DIM)),
        "fc7_b": jnp.zeros((REP_DIM,), jnp.float32),
    }


def prepare_inference_params(raw):
    """Fold / pad / cast weights once for inference.

    * the transform's per-channel 1/std is folded into the backbone conv rows
      (the mean-subtract stays a fused XLA op on the centered, zero-padded
      input, so the fold is exact at image borders too);
    * backbone im2col K is padded 27 -> 32;
    * RPN cls+reg heads are concatenated and zero-padded to 128 lanes so the
      fused RPN kernel's output store is lane-dense;
    * matmul operands are cast to bf16 (biases stay f32, accumulation is f32).
    """
    inv_std_rows = jnp.tile(1.0 / IMAGENET_STD, 3 * 3)[:, None]       # (27, 1)
    bb_w = raw["bb_w"] * inv_std_rows
    bb_w = jnp.pad(bb_w, ((0, K_BB_PAD - bb_w.shape[0]), (0, 0)))

    head_w = jnp.concatenate([raw["rpn_cls_w"], raw["rpn_reg_w"]], axis=1)
    head_b = jnp.concatenate([raw["rpn_cls_b"], raw["rpn_reg_b"]], axis=0)
    head_w = jnp.pad(head_w, ((0, 0), (0, RPN_HEAD_N - head_w.shape[1])))
    head_b = jnp.pad(head_b, ((0, RPN_HEAD_N - head_b.shape[0]),))

    bf = jnp.bfloat16
    return {
        "bb_w": bb_w.astype(bf), "bb_b": raw["bb_b"],
        "rpn_conv_w": raw["rpn_conv_w"].astype(bf), "rpn_conv_b": raw["rpn_conv_b"],
        "rpn_head_w": head_w.astype(bf), "rpn_head_b": head_b,
        "fc6_w": raw["fc6_w"].astype(bf), "fc6_b": raw["fc6_b"],
        "fc7_w": raw["fc7_w"].astype(bf), "fc7_b": raw["fc7_b"],
    }


# ----------------------------- forward ---------------------------------------
def maskrcnn_benchmark_forward(images, p):
    B, _, H, W = images.shape

    # --- transform: (x - mean) / std.  The 1/std is folded into the backbone
    #     weights; the mean-subtract fuses into the im2col pad/slice XLA ops.
    #     TODO(synk): the transform's resize step is omitted.
    x_cent = images - IMAGENET_MEAN.reshape(1, C_IN, 1, 1)
    x_nhwc = jnp.transpose(x_cent, (0, 2, 3, 1)).astype(jnp.bfloat16)

    # --- backbone (stand-in conv stem, 3x3 stride 2) ---
    # TODO(synk): at real scale this should be an in-kernel halo conv (9 shifted
    # dots) instead of im2col, to avoid the 9x HBM blowup of the feature map.
    cols, Hf, Wf = im2col(x_nhwc, ksize=3, stride=STRIDE, padding=1)
    cols = jnp.pad(cols, ((0, 0), (0, K_BB_PAD - cols.shape[1])))
    feat = conv_matmul(cols, p["bb_w"], p["bb_b"])           # (B*Hf*Wf, C_FEAT) bf16

    feat_nhwc = feat.reshape(B, Hf, Wf, C_FEAT)

    # --- RPN head: 3x3 conv + fused (cls|reg) 1x1 heads in one Pallas call ---
    rcols, _, _ = im2col(feat_nhwc, ksize=3, stride=1, padding=1)
    rpn_out = rpn_head(rcols, p["rpn_conv_w"], p["rpn_conv_b"],
                       p["rpn_head_w"], p["rpn_head_b"])     # (B*Hf*Wf, 128) f32
    obj = rpn_out[:, :NUM_ANCHORS]
    reg = rpn_out[:, NUM_ANCHORS:5 * NUM_ANCHORS]

    # --- proposals (top-k decode; no NMS) ---
    boxes = generate_proposals(obj, reg, B, Hf, Wf, NUM_ANCHORS, STRIDE,
                               float(H), K_PROPOSALS)                 # (B, K, 4)
    sample_idx = roi_sample_indices(boxes, B, K_PROPOSALS, STRIDE, Hf, Wf, POOL)
    # bin-major row order (row = bin*K + roi) for the fused ROI kernel.
    idx_bk = jnp.transpose(sample_idx.reshape(B, K_PROPOSALS, POOL * POOL),
                           (0, 2, 1)).reshape(B, POOL * POOL * K_PROPOSALS, 1)

    # --- fused box_roi_pool + box_head (fc6+fc7), one Pallas call over batch ---
    feat_3d = feat.reshape(B, Hf * Wf, C_FEAT)
    box_features = roi_box_head(feat_3d, idx_bk,
                                p["fc6_w"], p["fc6_b"],
                                p["fc7_w"], p["fc7_b"])      # (B, K, REP_DIM) f32

    # --- avgpool(1) + view(-1, num_boxes, feat_dim): box features are already
    #     per-ROI vectors, so the pool is a no-op and the final view is the
    #     (B, K_PROPOSALS, REP_DIM) shape returned here.
    return box_features


# ----------------------------- main -------------------------------------------
if __name__ == "__main__":
    key = jax.random.PRNGKey(0)
    k_img, k_par = jax.random.split(key)

    B = 2
    images = jax.random.uniform(k_img, (B, C_IN, IMG_SIZE, IMG_SIZE),
                                dtype=jnp.float32)                    # NCHW in [0, 1)
    params = prepare_inference_params(init_params(k_par))

    forward = jax.jit(maskrcnn_benchmark_forward)
    features = jax.block_until_ready(forward(images, params))

    assert features.shape == (B, K_PROPOSALS, REP_DIM)
    assert features.dtype == jnp.float32
    print("KERNEL_OK")
</pallas_src>

<mosaic_0001>
module attributes {stable_mosaic.version = 11 : i64} {
  func.func @_conv_mm_kernel(%arg0: i32, %arg1: memref<256x32xbf16, #tpu.memory_space<vmem>>, %arg2: memref<32x32xbf16, #tpu.memory_space<vmem>>, %arg3: memref<1x32xf32, #tpu.memory_space<vmem>>, %arg4: memref<256x32xbf16, #tpu.memory_space<vmem>>) attributes {dimension_semantics = [#tpu.dimension_semantics<parallel>], iteration_bounds = array<i64: 2>, scalar_prefetch = 0 : i64, scratch_operands = 0 : i64, tpu.core_type = #tpu.core_type<tc>, window_params = [{transform_indices = @transform_0, window_bounds = array<i64: 256, 32>}, {pipeline_mode = #tpu.pipeline_mode<synchronous>, transform_indices = @transform_1, window_bounds = array<i64: 32, 32>}, {pipeline_mode = #tpu.pipeline_mode<synchronous>, transform_indices = @transform_2, window_bounds = array<i64: 1, 32>}, {transform_indices = @transform_3, window_bounds = array<i64: 256, 32>}]} {
    %c0 = arith.constant 0 : index
    %c0_0 = arith.constant 0 : index
    %0 = vector.load %arg1[%c0, %c0_0] : memref<256x32xbf16, #tpu.memory_space<vmem>>, vector<256x32xbf16>
    %c0_1 = arith.constant 0 : index
    %c0_2 = arith.constant 0 : index
    %1 = vector.load %arg2[%c0_1, %c0_2] : memref<32x32xbf16, #tpu.memory_space<vmem>>, vector<32x32xbf16>
    %cst = arith.constant dense<0.000000e+00> : vector<256x32xf32>
    %2 = tpu.matmul %0, %1, %cst {dimension_numbers = #tpu.dot_dimension_numbers<[1], [0], [0], [1], [0, 0, 1, 1], [], []>} : vector<256x32xbf16>, vector<32x32xbf16>, vector<256x32xf32> -> vector<256x32xf32>
    %c0_3 = arith.constant 0 : index
    %c0_4 = arith.constant 0 : index
    %3 = vector.load %arg3[%c0_3, %c0_4] : memref<1x32xf32, #tpu.memory_space<vmem>>, vector<1x32xf32>
    %4 = vector.broadcast %3 : vector<1x32xf32> to vector<256x32xf32>
    %5 = arith.addf %2, %4 : vector<256x32xf32>
    %cst_5 = arith.constant 0.000000e+00 : f32
    %6 = vector.broadcast %cst_5 : f32 to vector<256x32xf32>
    %7 = arith.maximumf %5, %6 : vector<256x32xf32>
    %8 = arith.truncf %7 : vector<256x32xf32> to vector<256x32xbf16>
    %c0_6 = arith.constant 0 : index
    %c0_7 = arith.constant 0 : index
    %9 = vector.load %arg4[%c0_6, %c0_7] : memref<256x32xbf16, #tpu.memory_space<vmem>>, vector<256x32xbf16>
    tpu.vector_store %arg4[%c0_6, %c0_7], %8 {strides = array<i32>} : memref<256x32xbf16, #tpu.memory_space<vmem>>, vector<256x32xbf16>,
    return
  }
  func.func @transform_0(%arg0: i32) -> (i32, i32) {
    %c0_i32 = arith.constant 0 : i32
    %c0_i32_0 = arith.constant 0 : i32
    return %arg0, %c0_i32 : i32, i32
  }
  func.func @transform_1(%arg0: i32) -> (i32, i32) {
    %c0_i32 = arith.constant 0 : i32
    %c0_i32_0 = arith.constant 0 : i32
    %c0_i32_1 = arith.constant 0 : i32
    return %c0_i32, %c0_i32_0 : i32, i32
  }
  func.func @transform_2(%arg0: i32) -> (i32, i32) {
    %c0_i32 = arith.constant 0 : i32
    %c0_i32_0 = arith.constant 0 : i32
    %c0_i32_1 = arith.constant 0 : i32
    return %c0_i32, %c0_i32_0 : i32, i32
  }
  func.func @transform_3(%arg0: i32) -> (i32, i32) {
    %c0_i32 = arith.constant 0 : i32
    %c0_i32_0 = arith.constant 0 : i32
    return %arg0, %c0_i32 : i32, i32
  }
}

module attributes {stable_mosaic.version = 11 : i64} {
  func.func @_rpn_head_kernel(%arg0: i32, %arg1: memref<256x288xbf16, #tpu.memory_space<vmem>>, %arg2: memref<288x32xbf16, #tpu.memory_space<vmem>>, %arg3: memref<1x32xf32, #tpu.memory_space<vmem>>, %arg4: memref<32x128xbf16, #tpu.memory_space<vmem>>, %arg5: memref<1x128xf32, #tpu.memory_space<vmem>>, %arg6: memref<256x128xf32, #tpu.memory_space<vmem>>) attributes {dimension_semantics = [#tpu.dimension_semantics<parallel>], iteration_bounds = array<i64: 2>, scalar_prefetch = 0 : i64, scratch_operands = 0 : i64, tpu.core_type = #tpu.core_type<tc>, window_params = [{transform_indices = @transform_0, window_bounds = array<i64: 256, 288>}, {pipeline_mode = #tpu.pipeline_mode<synchronous>, transform_indices = @transform_1, window_bounds = array<i64: 288, 32>}, {pipeline_mode = #tpu.pipeline_mode<synchronous>, transform_indices = @transform_2, window_bounds = array<i64: 1, 32>}, {pipeline_mode = #tpu.pipeline_mode<synchronous>, transform_indices = @transform_3, window_bounds = array<i64: 32, 128>}, {pipeline_mode = #tpu.pipeline_mode<synchronous>, transform_indices = @transform_4, window_bounds = array<i64: 1, 128>}, {transform_indices = @transform_5, window_bounds = array<i64: 256, 128>}]} {
    %c0 = arith.constant 0 : index
    %c0_0 = arith.constant 0 : index
    %0 = vector.load %arg1[%c0, %c0_0] : memref<256x288xbf16, #tpu.memory_space<vmem>>, vector<256x288xbf16>
    %c0_1 = arith.constant 0 : index
    %c0_2 = arith.constant 0 : index
    %1 = vector.load %arg2[%c0_1, %c0_2] : memref<288x32xbf16, #tpu.memory_space<vmem>>, vector<288x32xbf16>
    %cst = arith.constant dense<0.000000e+00> : vector<256x32xf32>
    %2 = tpu.matmul %0, %1, %cst {dimension_numbers = #tpu.dot_dimension_numbers<[1], [0], [0], [1], [0, 0, 1, 1], [], []>} : vector<256x288xbf16>, vector<288x32xbf16>, vector<256x32xf32> -> vector<256x32xf32>
    %c0_3 = arith.constant 0 : index
    %c0_4 = arith.constant 0 : index
    %3 = vector.load %arg3[%c0_3, %c0_4] : memref<1x32xf32, #tpu.memory_space<vmem>>, vector<1x32xf32>
    %4 = vector.broadcast %3 : vector<1x32xf32> to vector<256x32xf32>
    %5 = arith.addf %2, %4 : vector<256x32xf32>
    %cst_5 = arith.constant 0.000000e+00 : f32
    %6 = vector.broadcast %cst_5 : f32 to vector<256x32xf32>
    %7 = arith.maximumf %5, %6 : vector<256x32xf32>
    %8 = arith.truncf %7 : vector<256x32xf32> to vector<256x32xbf16>
    %c0_6 = arith.constant 0 : index
    %c0_7 = arith.constant 0 : index
    %9 = vector.load %arg4[%c0_6, %c0_7] : memref<32x128xbf16, #tpu.memory_space<vmem>>, vector<32x128xbf16>
    %cst_8 = arith.constant dense<0.000000e+00> : vector<256x128xf32>
    %10 = tpu.matmul %8, %9, %cst_8 {dimension_numbers = #tpu.dot_dimension_numbers<[1], [0], [0], [1], [0, 0, 1, 1], [], []>} : vector<256x32xbf16>, vector<32x128xbf16>, vector<256x128xf32> -> vector<256x128xf32>
    %c0_9 = arith.constant 0 : index
    %c0_10 = arith.constant 0 : index
    %11 = vector.load %arg5[%c0_9, %c0_10] : memref<1x128xf32, #tpu.memory_space<vmem>>, vector<1x128xf32>
    %12 = vector.broadcast %11 : vector<1x128xf32> to vector<256x128xf32>
    %13 = arith.addf %10, %12 : vector<256x128xf32>
    %c0_11 = arith.constant 0 : index
    %c0_12 = arith.constant 0 : index
    %14 = vector.load %arg6[%c0_11, %c0_12] : memref<256x128xf32, #tpu.memory_space<vmem>>, vector<256x128xf32>
    tpu.vector_store %arg6[%c0_11, %c0_12], %13 {strides = array<i32>} : memref<256x128xf32, #tpu.memory_space<vmem>>, vector<256x128xf32>,
    return
  }
  func.func @transform_0(%arg0: i32) -> (i32, i32) {
    %c0_i32 = arith.constant 0 : i32
    %c0_i32_0 = arith.constant 0 : i32
    return %arg0, %c0_i32 : i32, i32
  }
  func.func @transform_1(%arg0: i32) -> (i32, i32) {
    %c0_i32 = arith.constant 0 : i32
    %c0_i32_0 = arith.constant 0 : i32
    %c0_i32_1 = arith.constant 0 : i32
    return %c0_i32, %c0_i32_0 : i32, i32
  }
  func.func @transform_2(%arg0: i32) -> (i32, i32) {
    %c0_i32 = arith.constant 0 : i32
    %c0_i32_0 = arith.constant 0 : i32
    %c0_i32_1 = arith.constant 0 : i32
    return %c0_i32, %c0_i32_0 : i32, i32
  }
  func.func @transform_3(%arg0: i32) -> (i32, i32) {
    %c0_i32 = arith.constant 0 : i32
    %c0_i32_0 = arith.constant 0 : i32
    %c0_i32_1 = arith.constant 0 : i32
    return %c0_i32, %c0_i32_0 : i32, i32
  }
  func.func @transform_4(%arg0: i32) -> (i32, i32) {
    %c0_i32 = arith.constant 0 : i32
    %c0_i32_0 = arith.constant 0 : i32
    %c0_i32_1 = arith.constant 0 : i32
    return %c0_i32, %c0_i32_0 : i32, i32
  }
  func.func @transform_5(%arg0: i32) -> (i32, i32) {
    %c0_i32 = arith.constant 0 : i32
    %c0_i32_0 = arith.constant 0 : i32
    return %arg0, %c0_i32 : i32, i32
  }
}

module attributes {stable_mosaic.version = 11 : i64} {
  func.func @_roi_box_head_kernel(%arg0: i32, %arg1: memref<1x392x1xi32, #tpu.memory_space<vmem>>, %arg2: memref<1x256x32xbf16, #tpu.memory_space<vmem>>, %arg3: memref<1568x64xbf16, #tpu.memory_space<vmem>>, %arg4: memref<1x64xf32, #tpu.memory_space<vmem>>, %arg5: memref<64x64xbf16, #tpu.memory_space<vmem>>, %arg6: memref<1x64xf32, #tpu.memory_space<vmem>>, %arg7: memref<1x8x64xf32, #tpu.memory_space<vmem>>, %arg8: memref<8x1568xf32, #tpu.memory_space<vmem>>) attributes {dimension_semantics = [#tpu.dimension_semantics<parallel>], iteration_bounds = array<i64: 2>, scalar_prefetch = 0 : i64, scratch_operands = 1 : i64, tpu.core_type = #tpu.core_type<tc>, window_params = [{transform_indices = @transform_0, window_bounds = array<i64: 1, 392, 1>}, {transform_indices = @transform_1, window_bounds = array<i64: 1, 256, 32>}, {pipeline_mode = #tpu.pipeline_mode<synchronous>, transform_indices = @transform_2, window_bounds = array<i64: 1568, 64>}, {pipeline_mode = #tpu.pipeline_mode<synchronous>, transform_indices = @transform_3, window_bounds = array<i64: 1, 64>}, {pipeline_mode = #tpu.pipeline_mode<synchronous>, transform_indices = @transform_4, window_bounds = array<i64: 64, 64>}, {pipeline_mode = #tpu.pipeline_mode<synchronous>, transform_indices = @transform_5, window_bounds = array<i64: 1, 64>}, {transform_indices = @transform_6, window_bounds = array<i64: 1, 8, 64>}]} {
    %c0 = arith.constant 0 : index
    %c0_0 = arith.constant 0 : index
    %c0_1 = arith.constant 0 : index
    %0 = vector.load %arg1[%c0, %c0_0, %c0_1] : memref<1x392x1xi32, #tpu.memory_space<vmem>>, vector<1x392x1xi32>
    %1 = vector.shape_cast %0 : vector<1x392x1xi32> to vector<392x1xi32>
    %2 = tpu.iota {dimensions = array<i32: 1>} : vector<392x256xi32>
    %3 = vector.broadcast %1 : vector<392x1xi32> to vector<392x256xi32>
    %4 = arith.cmpi eq, %2, %3 : vector<392x256xi32>
    %5 = arith.extui %4 : vector<392x256xi1> to vector<392x256xi32>
    %6 = arith.sitofp %5 : vector<392x256xi32> to vector<392x256xf32>
    %7 = arith.truncf %6 : vector<392x256xf32> to vector<392x256xbf16>
    %c0_2 = arith.constant 0 : index
    %c0_3 = arith.constant 0 : index
    %c0_4 = arith.constant 0 : index
    %8 = vector.load %arg2[%c0_2, %c0_3, %c0_4] : memref<1x256x32xbf16, #tpu.memory_space<vmem>>, vector<1x256x32xbf16>
    %9 = vector.shape_cast %8 : vector<1x256x32xbf16> to vector<256x32xbf16>
    %cst = arith.constant dense<0.000000e+00> : vector<392x32xf32>
    %10 = tpu.matmul %7, %9, %cst {dimension_numbers = #tpu.dot_dimension_numbers<[1], [0], [0], [1], [0, 0, 1, 1], [], []>} : vector<392x256xbf16>, vector<256x32xbf16>, vector<392x32xf32> -> vector<392x32xf32>
    %11 = vector.extract_strided_slice %10 {offsets = [0, 0], sizes = [8, 32], strides = [1, 1]} : vector<392x32xf32> to vector<8x32xf32>
    %c0_5 = arith.constant 0 : index
    %c0_6 = arith.constant 0 : index
    %12 = vector.load %arg8[%c0_5, %c0_6] : memref<8x1568xf32, #tpu.memory_space<vmem>>, vector<8x32xf32>
    tpu.vector_store %arg8[%c0_5, %c0_6], %11 {strides = array<i32>} : memref<8x1568xf32, #tpu.memory_space<vmem>>, vector<8x32xf32>,
    %13 = vector.extract_strided_slice %10 {offsets = [8, 0], sizes = [8, 32], strides = [1, 1]} : vector<392x32xf32> to vector<8x32xf32>
    %c0_7 = arith.constant 0 : index
    %c32 = arith.constant 32 : index
    %14 = vector.load %arg8[%c0_7, %c32] : memref<8x1568xf32, #tpu.memory_space<vmem>>, vector<8x32xf32>
    tpu.vector_store %arg8[%c0_7, %c32], %13 {strides = array<i32>} : memref<8x1568xf32, #tpu.memory_space<vmem>>, vector<8x32xf32>,
    %15 = vector.extract_strided_slice %10 {offsets = [16, 0], sizes = [8, 32], strides = [1, 1]} : vector<392x32xf32> to vector<8x32xf32>
    %c0_8 = arith.constant 0 : index
    %c64 = arith.constant 64 : index
    %16 = vector.load %arg8[%c0_8, %c64] : memref<8x1568xf32, #tpu.memory_space<vmem>>, vector<8x32xf32>
    tpu.vector_store %arg8[%c0_8, %c64], %15 {strides = array<i32>} : memref<8x1568xf32, #tpu.memory_space<vmem>>, vector<8x32xf32>,
    %17 = vector.extract_strided_slice %10 {offsets = [24, 0], sizes = [8, 32], strides = [1, 1]} : vector<392x32xf32> to vector<8x32xf32>
    %c0_9 = arith.constant 0 : index
    %c96 = arith.constant 96 : index
    %18 = vector.load %arg8[%c0_9, %c96] : memref<8x1568xf32, #tpu.memory_space<vmem>>, vector<8x32xf32>
    tpu.vector_store %arg8[%c0_9, %c96], %17 {strides = array<i32>} : memref<8x1568xf32, #tpu.memory_space<vmem>>, vector<8x32xf32>,
    %19 = vector.extract_strided_slice %10 {offsets = [32, 0], sizes = [8, 32], strides = [1, 1]} : vector<392x32xf32> to vector<8x32xf32>
    %c0_10 = arith.constant 0 : index
    %c128 = arith.constant 128 : index
    %20 = vector.load %arg8[%c0_10, %c128] : memref<8x1568xf32, #tpu.memory_space<vmem>>, vector<8x32xf32>
    tpu.vector_store %arg8[%c0_10, %c128], %19 {strides = array<i32>} : memref<8x1568xf32, #tpu.memory_space<vmem>>, vector<8x32xf32>,
    %21 = vector.extract_strided_slice %10 {offsets = [40, 0], sizes = [8, 32], strides = [1, 1]} : vector<392x32xf32> to vector<8x32xf32>
    %c0_11 = arith.constant 0 : index
    %c160 = arith.constant 160 : index
    %22 = vector.load %arg8[%c0_11, %c160] : memref<8x1568xf32, #tpu.memory_space<vmem>>, vector<8x32xf32>
    tpu.vector_store %arg8[%c0_11, %c160], %21 {strides = array<i32>} : memref<8x1568xf32, #tpu.memory_space<vmem>>, vector<8x32xf32>,
    %23 = vector.extract_strided_slice %10 {offsets = [48, 0], sizes = [8, 32], strides = [1, 1]} : vector<392x32xf32> to vector<8x32xf32>
    %c0_12 = arith.constant 0 : index
    %c192 = arith.constant 192 : index
    %24 = vector.load %arg8[%c0_12, %c192] : memref<8x1568xf32, #tpu.memory_space<vmem>>, vector<8x32xf32>
    tpu.vector_store %arg8[%c0_12, %c192], %23 {strides = array<i32>} : memref<8x1568xf32, #tpu.memory_space<vmem>>, vector<8x32xf32>,
    %25 = vector.extract_strided_slice %10 {offsets = [56, 0], sizes = [8, 32], strides = [1, 1]} : vector<392x32xf32> to vector<8x32xf32>
    %c0_13 = arith.constant 0 : index
    %c224 = arith.constant 224 : index
    %26 = vector.load %arg8[%c0_13, %c224] : memref<8x1568xf32, #tpu.memory_space<vmem>>, vector<8x32xf32>
    tpu.vector_store %arg8[%c0_13, %c224], %25 {strides = array<i32>} : memref<8x1568xf32, #tpu.memory_space<vmem>>, vector<8x32xf32>,
    %27 = vector.extract_strided_slice %10 {offsets = [64, 0], sizes = [8, 32], strides = [1, 1]} : vector<392x32xf32> to vector<8x32xf32>
    %c0_14 = arith.constant 0 : index
    %c256 = arith.constant 256 : index
    %28 = vector.load %arg8[%c0_14, %c256] : memref<8x1568xf32, #tpu.memory_space<vmem>>, vector<8x32xf32>
    tpu.vector_store %arg8[%c0_14, %c256], %27 {strides = array<i32>} : memref<8x1568xf32, #tpu.memory_space<vmem>>, vector<8x32xf32>,
    %29 = vector.extract_strided_slice %10 {offsets = [72, 0], sizes = [8, 32], strides = [1, 1]} : vector<392x32xf32> to vector<8x32xf32>
    %c0_15 = arith.constant 0 : index
    %c288 = arith.constant 288 : index
    %30 = vector.load %arg8[%c0_15, %c288] : memref<8x1568xf32, #tpu.memory_space<vmem>>, vector<8x32xf32>
    tpu.vector_store %arg8[%c0_15, %c288], %29 {strides = array<i32>} : memref<8x1568xf32, #tpu.memory_space<vmem>>, vector<8x32xf32>,
    %31 = vector.extract_strided_slice %10 {offsets = [80, 0], sizes = [8, 32], strides = [1, 1]} : vector<392x32xf32> to vector<8x32xf32>
    %c0_16 = arith.constant 0 : index
    %c320 = arith.constant 320 : index
    %32 = vector.load %arg8[%c0_16, %c320] : memref<8x1568xf32, #tpu.memory_space<vmem>>, vector<8x32xf32>
    tpu.vector_store %arg8[%c0_16, %c320], %31 {strides = array<i32>} : memref<8x1568xf32, #tpu.memory_space<vmem>>, vector<8x32xf32>,
    %33 = vector.extract_strided_slice %10 {offsets = [88, 0], sizes = [8, 32], strides = [1, 1]} : vector<392x32xf32> to vector<8x32xf32>
    %c0_17 = arith.constant 0 : index
    %c352 = arith.constant 352 : index
    %34 = vector.load %arg8[%c0_17, %c352] : memref<8x1568xf32, #tpu.memory_space<vmem>>, vector<8x32xf32>
    tpu.vector_store %arg8[%c0_17, %c352], %33 {strides = array<i32>} : memref<8x1568xf32, #tpu.memory_space<vmem>>, vector<8x32xf32>,
    %35 = vector.extract_strided_slice %10 {offsets = [96, 0], sizes = [8, 32], strides = [1, 1]} : vector<392x32xf32> to vector<8x32xf32>
    %c0_18 = arith.constant 0 : index
    %c384 = arith.constant 384 : index
    %36 = vector.load %arg8[%c0_18, %c384] : memref<8x1568xf32, #tpu.memory_space<vmem>>, vector<8x32xf32>
    tpu.vector_store %arg8[%c0_18, %c384], %35 {strides = array<i32>} : memref<8x1568xf32, #tpu.memory_space<vmem>>, vector<8x32xf32>,
    %37 = vector.extract_strided_slice %10 {offsets = [104, 0], sizes = [8, 32], strides = [1, 1]} : vector<392x32xf32> to vector<8x32xf32>
    %c0_19 = arith.constant 0 : index
    %c416 = arith.constant 416 : index
    %38 = vector.load %arg8[%c0_19, %c416] : memref<8x1568xf32, #tpu.memory_space<vmem>>, vector<8x32xf32>
    tpu.vector_store %arg8[%c0_19, %c416], %37 {strides = array<i32>} : memref<8x1568xf32, #tpu.memory_space<vmem>>, vector<8x32xf32>,
    %39 = vector.extract_strided_slice %10 {offsets = [112, 0], sizes = [8, 32], strides = [1, 1]} : vector<392x32xf32> to vector<8x32xf32>
    %c0_20 = arith.constant 0 : index
    %c448 = arith.constant 448 : index
    %40 = vector.load %arg8[%c0_20, %c448] : memref<8x1568xf32, #tpu.memory_space<vmem>>, vector<8x32xf32>
    tpu.vector_store %arg8[%c0_20, %c448], %39 {strides = array<i32>} : memref<8x1568xf32, #tpu.memory_space<vmem>>, vector<8x32xf32>,
    %41 = vector.extract_strided_slice %10 {offsets = [120, 0], sizes = [8, 32], strides = [1, 1]} : vector<392x32xf32> to vector<8x32xf32>
    %c0_21 = arith.constant 0 : index
    %c480 = arith.constant 480 : index
    %42 = vector.load %arg8[%c0_21, %c480] : memref<8x1568xf32, #tpu.memory_space<vmem>>, vector<8x32xf32>
    tpu.vector_store %arg8[%c0_21, %c480], %41 {strides = array<i32>} : memref<8x1568xf32, #tpu.memory_space<vmem>>, vector<8x32xf32>,
    %43 = vector.extract_strided_slice %10 {offsets = [128, 0], sizes = [8, 32], strides = [1, 1]} : vector<392x32xf32> to vector<8x32xf32>
    %c0_22 = arith.constant 0 : index
    %c512 = arith.constant 512 : index
    %44 = vector.load %arg8[%c0_22, %c512] : memref<8x1568xf32, #tpu.memory_space<vmem>>, vector<8x32xf32>
    tpu.vector_store %arg8[%c0_22, %c512], %43 {strides = array<i32>} : memref<8x1568xf32, #tpu.memory_space<vmem>>, vector<8x32xf32>,
    %45 = vector.extract_strided_slice %10 {offsets = [136, 0], sizes = [8, 32], strides = [1, 1]} : vector<392x32xf32> to vector<8x32xf32>
    %c0_23 = arith.constant 0 : index
    %c544 = arith.constant 544 : index
    %46 = vector.load %arg8[%c0_23, %c544] : memref<8x1568xf32, #tpu.memory_space<vmem>>, vector<8x32xf32>
    tpu.vector_store %arg8[%c0_23, %c544], %45 {strides = array<i32>} : memref<8x1568xf32, #tpu.memory_space<vmem>>, vector<8x32xf32>,
    %47 = vector.extract_strided_slice %10 {offsets = [144, 0], sizes = [8, 32], strides = [1, 1]} : vector<392x32xf32> to vector<8x32xf32>
    %c0_24 = arith.constant 0 : index
    %c576 = arith.constant 576 : index
    %48 = vector.load %arg8[%c0_24, %c576] : memref<8x1568xf32, #tpu.memory_space<vmem>>, vector<8x32xf32>
    tpu.vector_store %arg8[%c0_24, %c576], %47 {strides = array<i32>} : memref<8x1568xf32, #tpu.memory_space<vmem>>, vector<8x32xf32>,
    %49 = vector.extract_strided_slice %10 {offsets = [152, 0], sizes = [8, 32], strides = [1, 1]} : vector<392x32xf32> to vector<8x32xf32>
    %c0_25 = arith.constant 0 : index
    %c608 = arith.constant 608 : index
    %50 = vector.load %arg8[%c0_25, %c608] : memref<8x1568xf32, #tpu.memory_space<vmem>>, vector<8x32xf32>
    tpu.vector_store %arg8[%c0_25, %c608], %49 {strides = array<i32>} : memref<8x1568xf32, #tpu.memory_space<vmem>>, vector<8x32xf32>,
    %51 = vector.extract_strided_slice %10 {offsets = [160, 0], sizes = [8, 32], strides = [1, 1]} : vector<392x32xf32> to vector<8x32xf32>
    %c0_26 = arith.constant 0 : index
    %c640 = arith.constant 640 : index
    %52 = vector.load %arg8[%c0_26, %c640] : memref<8x1568xf32, #tpu.memory_space<vmem>>, vector<8x32xf32>
    tpu.vector_store %arg8[%c0_26, %c640], %51 {strides = array<i32>} : memref<8x1568xf32, #tpu.memory_space<vmem>>, vector<8x32xf32>,
    %53 = vector.extract_strided_slice %10 {offsets = [168, 0], sizes = [8, 32], strides = [1, 1]} : vector<392x32xf32> to vector<8x32xf32>
    %c0_27 = arith.constant 0 : index
    %c672 = arith.constant 672 : index
    %54 = vector.load %arg8[%c0_27, %c672] : memref<8x1568xf32, #tpu.memory_space<vmem>>, vector<8x32xf32>
    tpu.vector_store %arg8[%c0_27, %c672], %53 {strides = array<i32>} : memref<8x1568xf32, #tpu.memory_space<vmem>>, vector<8x32xf32>,
    %55 = vector.extract_strided_slice %10 {offsets = [176, 0], sizes = [8, 32], strides = [1, 1]} : vector<392x32xf32> to vector<8x32xf32>
    %c0_28 = arith.constant 0 : index
    %c704 = arith.constant 704 : index
    %56 = vector.load %arg8[%c0_28, %c704] : memref<8x1568xf32, #tpu.memory_space<vmem>>, vector<8x32xf32>
    tpu.vector_store %arg8[%c0_28, %c704], %55 {strides = array<i32>} : memref<8x1568xf32, #tpu.memory_space<vmem>>, vector<8x32xf32>,
    %57 = vector.extract_strided_slice %10 {offsets = [184, 0], sizes = [8, 32], strides = [1, 1]} : vector<392x32xf32> to vector<8x32xf32>
    %c0_29 = arith.constant 0 : index
    %c736 = arith.constant 736 : index
    %58 = vector.load %arg8[%c0_29, %c736] : memref<8x1568xf32, #tpu.memory_space<vmem>>, vector<8x32xf32>
    tpu.vector_store %arg8[%c0_29, %c736], %57 {strides = array<i32>} : memref<8x1568xf32, #tpu.memory_space<vmem>>, vector<8x32xf32>,
    %59 = vector.extract_strided_slice %10 {offsets = [192, 0], sizes = [8, 32], strides = [1, 1]} : vector<392x32xf32> to vector<8x32xf32>
    %c0_30 = arith.constant 0 : index
    %c768 = arith.constant 768 : index
    %60 = vector.load %arg8[%c0_30, %c768] : memref<8x1568xf32, #tpu.memory_space<vmem>>, vector<8x32xf32>
    tpu.vector_store %arg8[%c0_30, %c768], %59 {strides = array<i32>} : memref<8x1568xf32, #tpu.memory_space<vmem>>, vector<8x32xf32>,
    %61 = vector.extract_strided_slice %10 {offsets = [200, 0], sizes = [8, 32], strides = [1, 1]} : vector<392x32xf32> to vector<8x32xf32>
    %c0_31 = arith.constant 0 : index
    %c800 = arith.constant 800 : index
    %62 = vector.load %arg8[%c0_31, %c800] : memref<8x1568xf32, #tpu.memory_space<vmem>>, vector<8x32xf32>
    tpu.vector_store %arg8[%c0_31, %c800], %61 {strides = array<i32>} : memref<8x1568xf32, #tpu.memory_space<vmem>>, vector<8x32xf32>,
    %63 = vector.extract_strided_slice %10 {offsets = [208, 0], sizes = [8, 32], strides = [1, 1]} : vector<392x32xf32> to vector<8x32xf32>
    %c0_32 = arith.constant 0 : index
    %c832 = arith.constant 832 : index
    %64 = vector.load %arg8[%c0_32, %c832] : memref<8x1568xf32, #tpu.memory_space<vmem>>, vector<8x32xf32>
    tpu.vector_store %arg8[%c0_32, %c832], %63 {strides = array<i32>} : memref<8x1568xf32, #tpu.memory_space<vmem>>, vector<8x32xf32>,
    %65 = vector.extract_strided_slice %10 {offsets = [216, 0], sizes = [8, 32], strides = [1, 1]} : vector<392x32xf32> to vector<8x32xf32>
    %c0_33 = arith.constant 0 : index
    %c864 = arith.constant 864 : index
    %66 = vector.load %arg8[%c0_33, %c864] : memref<8x1568xf32, #tpu.memory_space<vmem>>, vector<8x32xf32>
    tpu.vector_store %arg8[%c0_33, %c864], %65 {strides = array<i32>} : memref<8x1568xf32, #tpu.memory_space<vmem>>, vector<8x32xf32>,
    %67 = vector.extract_strided_slice %10 {offsets = [224, 0], sizes = [8, 32], strides = [1, 1]} : vector<392x32xf32> to vector<8x32xf32>
    %c0_34 = arith.constant 0 : index
    %c896 = arith.constant 896 : index
    %68 = vector.load %arg8[%c0_34, %c896] : memref<8x1568xf32, #tpu.memory_space<vmem>>, vector<8x32xf32>
    tpu.vector_store %arg8[%c0_34, %c896], %67 {strides = array<i32>} : memref<8x1568xf32, #tpu.memory_space<vmem>>, vector<8x32xf32>,
    %69 = vector.extract_strided_slice %10 {offsets = [232, 0], sizes = [8, 32], strides = [1, 1]} : vector<392x32xf32> to vector<8x32xf32>
    %c0_35 = arith.constant 0 : index
    %c928 = arith.constant 928 : index
    %70 = vector.load %arg8[%c0_35, %c928] : memref<8x1568xf32, #tpu.memory_space<vmem>>, vector<8x32xf32>
    tpu.vector_store %arg8[%c0_35, %c928], %69 {strides = array<i32>} : memref<8x1568xf32, #tpu.memory_space<vmem>>, vector<8x32xf32>,
    %71 = vector.extract_strided_slice %10 {offsets = [240, 0], sizes = [8, 32], strides = [1, 1]} : vector<392x32xf32> to vector<8x32xf32>
    %c0_36 = arith.constant 0 : index
    %c960 = arith.constant 960 : index
    %72 = vector.load %arg8[%c0_36, %c960] : memref<8x1568xf32, #tpu.memory_space<vmem>>, vector<8x32xf32>
    tpu.vector_store %arg8[%c0_36, %c960], %71 {strides = array<i32>} : memref<8x1568xf32, #tpu.memory_space<vmem>>, vector<8x32xf32>,
    %73 = vector.extract_strided_slice %10 {offsets = [248, 0], sizes = [8, 32], strides = [1, 1]} : vector<392x32xf32> to vector<8x32xf32>
    %c0_37 = arith.constant 0 : index
    %c992 = arith.constant 992 : index
    %74 = vector.load %arg8[%c0_37, %c992] : memref<8x1568xf32, #tpu.memory_space<vmem>>, vector<8x32xf32>
    tpu.vector_store %arg8[%c0_37, %c992], %73 {strides = array<i32>} : memref<8x1568xf32, #tpu.memory_space<vmem>>, vector<8x32xf32>,
    %75 = vector.extract_strided_slice %10 {offsets = [256, 0], sizes = [8, 32], strides = [1, 1]} : vector<392x32xf32> to vector<8x32xf32>
    %c0_38 = arith.constant 0 : index
    %c1024 = arith.constant 1024 : index
    %76 = vector.load %arg8[%c0_38, %c1024] : memref<8x1568xf32, #tpu.memory_space<vmem>>, vector<8x32xf32>
    tpu.vector_store %arg8[%c0_38, %c1024], %75 {strides = array<i32>} : memref<8x1568xf32, #tpu.memory_space<vmem>>, vector<8x32xf32>,
    %77 = vector.extract_strided_slice %10 {offsets = [264, 0], sizes = [8, 32], strides = [1, 1]} : vector<392x32xf32> to vector<8x32xf32>
    %c0_39 = arith.constant 0 : index
    %c1056 = arith.constant 1056 : index
    %78 = vector.load %arg8[%c0_39, %c1056] : memref<8x1568xf32, #tpu.memory_space<vmem>>, vector<8x32xf32>
    tpu.vector_store %arg8[%c0_39, %c1056], %77 {strides = array<i32>} : memref<8x1568xf32, #tpu.memory_space<vmem>>, vector<8x32xf32>,
    %79 = vector.extract_strided_slice %10 {offsets = [272, 0], sizes = [8, 32], strides = [1, 1]} : vector<392x32xf32> to vector<8x32xf32>
    %c0_40 = arith.constant 0 : index
    %c1088 = arith.constant 1088 : index
    %80 = vector.load %arg8[%c0_40, %c1088] : memref<8x1568xf32, #tpu.memory_space<vmem>>, vector<8x32xf32>
    tpu.vector_store %arg8[%c0_40, %c1088], %79 {strides = array<i32>} : memref<8x1568xf32, #tpu.memory_space<vmem>>, vector<8x32xf32>,
    %81 = vector.extract_strided_slice %10 {offsets = [280, 0], sizes = [8, 32], strides = [1, 1]} : vector<392x32xf32> to vector<8x32xf32>
    %c0_41 = arith.constant 0 : index
    %c1120 = arith.constant 1120 : index
    %82 = vector.load %arg8[%c0_41, %c1120] : memref<8x1568xf32, #tpu.memory_space<vmem>>, vector<8x32xf32>
    tpu.vector_store %arg8[%c0_41, %c1120], %81 {strides = array<i32>} : memref<8x1568xf32, #tpu.memory_space<vmem>>, vector<8x32xf32>,
    %83 = vector.extract_strided_slice %10 {offsets = [288, 0], sizes = [8, 32], strides = [1, 1]} : vector<392x32xf32> to vector<8x32xf32>
    %c0_42 = arith.constant 0 : index
    %c1152 = arith.constant 1152 : index
    %84 = vector.load %arg8[%c0_42, %c1152] : memref<8x1568xf32, #tpu.memory_space<vmem>>, vector<8x32xf32>
    tpu.vector_store %arg8[%c0_42, %c1152], %83 {strides = array<i32>} : memref<8x1568xf32, #tpu.memory_space<vmem>>, vector<8x32xf32>,
    %85 = vector.extract_strided_slice %10 {offsets = [296, 0], sizes = [8, 32], strides = [1, 1]} : vector<392x32xf32> to vector<8x32xf32>
    %c0_43 = arith.constant 0 : index
    %c1184 = arith.constant 1184 : index
    %86 = vector.load %arg8[%c0_43, %c1184] : memref<8x1568xf32, #tpu.memory_space<vmem>>, vector<8x32xf32>
    tpu.vector_store %arg8[%c0_43, %c1184], %85 {strides = array<i32>} : memref<8x1568xf32, #tpu.memory_space<vmem>>, vector<8x32xf32>,
    %87 = vector.extract_strided_slice %10 {offsets = [304, 0], sizes = [8, 32], strides = [1, 1]} : vector<392x32xf32> to vector<8x32xf32>
    %c0_44 = arith.constant 0 : index
    %c1216 = arith.constant 1216 : index
    %88 = vector.load %arg8[%c0_44, %c1216] : memref<8x1568xf32, #tpu.memory_space<vmem>>, vector<8x32xf32>
    tpu.vector_store %arg8[%c0_44, %c1216], %87 {strides = array<i32>} : memref<8x1568xf32, #tpu.memory_space<vmem>>, vector<8x32xf32>,
    %89 = vector.extract_strided_slice %10 {offsets = [312, 0], sizes = [8, 32], strides = [1, 1]} : vector<392x32xf32> to vector<8x32xf32>
    %c0_45 = arith.constant 0 : index
    %c1248 = arith.constant 1248 : index
    %90 = vector.load %arg8[%c0_45, %c1248] : memref<8x1568xf32, #tpu.memory_space<vmem>>, vector<8x32xf32>
    tpu.vector_store %arg8[%c0_45, %c1248], %89 {strides = array<i32>} : memref<8x1568xf32, #tpu.memory_space<vmem>>, vector<8x32xf32>,
    %91 = vector.extract_strided_slice %10 {offsets = [320, 0], sizes = [8, 32], strides = [1, 1]} : vector<392x32xf32> to vector<8x32xf32>
    %c0_46 = arith.constant 0 : index
    %c1280 = arith.constant 1280 : index
    %92 = vector.load %arg8[%c0_46, %c1280] : memref<8x1568xf32, #tpu.memory_space<vmem>>, vector<8x32xf32>
    tpu.vector_store %arg8[%c0_46, %c1280], %91 {strides = array<i32>} : memref<8x1568xf32, #tpu.memory_space<vmem>>, vector<8x32xf32>,
    %93 = vector.extract_strided_slice %10 {offsets = [328, 0], sizes = [8, 32], strides = [1, 1]} : vector<392x32xf32> to vector<8x32xf32>
    %c0_47 = arith.constant 0 : index
    %c1312 = arith.constant 1312 : index
    %94 = vector.load %arg8[%c0_47, %c1312] : memref<8x1568xf32, #tpu.memory_space<vmem>>, vector<8x32xf32>
    tpu.vector_store %arg8[%c0_47, %c1312], %93 {strides = array<i32>} : memref<8x1568xf32, #tpu.memory_space<vmem>>, vector<8x32xf32>,
    %95 = vector.extract_strided_slice %10 {offsets = [336, 0], sizes = [8, 32], strides = [1, 1]} : vector<392x32xf32> to vector<8x32xf32>
    %c0_48 = arith.constant 0 : index
    %c1344 = arith.constant 1344 : index
    %96 = vector.load %arg8[%c0_48, %c1344] : memref<8x1568xf32, #tpu.memory_space<vmem>>, vector<8x32xf32>
    tpu.vector_store %arg8[%c0_48, %c1344], %95 {strides = array<i32>} : memref<8x1568xf32, #tpu.memory_space<vmem>>, vector<8x32xf32>,
    %97 = vector.extract_strided_slice %10 {offsets = [344, 0], sizes = [8, 32], strides = [1, 1]} : vector<392x32xf32> to vector<8x32xf32>
    %c0_49 = arith.constant 0 : index
    %c1376 = arith.constant 1376 : index
    %98 = vector.load %arg8[%c0_49, %c1376] : memref<8x1568xf32, #tpu.memory_space<vmem>>, vector<8x32xf32>
    tpu.vector_store %arg8[%c0_49, %c1376], %97 {strides = array<i32>} : memref<8x1568xf32, #tpu.memory_space<vmem>>, vector<8x32xf32>,
    %99 = vector.extract_strided_slice %10 {offsets = [352, 0], sizes = [8, 32], strides = [1, 1]} : vector<392x32xf32> to vector<8x32xf32>
    %c0_50 = arith.constant 0 : index
    %c1408 = arith.constant 1408 : index
    %100 = vector.load %arg8[%c0_50, %c1408] : memref<8x1568xf32, #tpu.memory_space<vmem>>, vector<8x32xf32>
    tpu.vector_store %arg8[%c0_50, %c1408], %99 {strides = array<i32>} : memref<8x1568xf32, #tpu.memory_space<vmem>>, vector<8x32xf32>,
    %101 = vector.extract_strided_slice %10 {offsets = [360, 0], sizes = [8, 32], strides = [1, 1]} : vector<392x32xf32> to vector<8x32xf32>
    %c0_51 = arith.constant 0 : index
    %c1440 = arith.constant 1440 : index
    %102 = vector.load %arg8[%c0_51, %c1440] : memref<8x1568xf32, #tpu.memory_space<vmem>>, vector<8x32xf32>
    tpu.vector_store %arg8[%c0_51, %c1440], %101 {strides = array<i32>} : memref<8x1568xf32, #tpu.memory_space<vmem>>, vector<8x32xf32>,
    %103 = vector.extract_strided_slice %10 {offsets = [368, 0], sizes = [8, 32], strides = [1, 1]} : vector<392x32xf32> to vector<8x32xf32>
    %c0_52 = arith.constant 0 : index
    %c1472 = arith.constant 1472 : index
    %104 = vector.load %arg8[%c0_52, %c1472] : memref<8x1568xf32, #tpu.memory_space<vmem>>, vector<8x32xf32>
    tpu.vector_store %arg8[%c0_52, %c1472], %103 {strides = array<i32>} : memref<8x1568xf32, #tpu.memory_space<vmem>>, vector<8x32xf32>,
    %105 = vector.extract_strided_slice %10 {offsets = [376, 0], sizes = [8, 32], strides = [1, 1]} : vector<392x32xf32> to vector<8x32xf32>
    %c0_53 = arith.constant 0 : index
    %c1504 = arith.constant 1504 : index
    %106 = vector.load %arg8[%c0_53, %c1504] : memref<8x1568xf32, #tpu.memory_space<vmem>>, vector<8x32xf32>
    tpu.vector_store %arg8[%c0_53, %c1504], %105 {strides = array<i32>} : memref<8x1568xf32, #tpu.memory_space<vmem>>, vector<8x32xf32>,
    %107 = vector.extract_strided_slice %10 {offsets = [384, 0], sizes = [8, 32], strides = [1, 1]} : vector<392x32xf32> to vector<8x32xf32>
    %c0_54 = arith.constant 0 : index
    %c1536 = arith.constant 1536 : index
    %108 = vector.load %arg8[%c0_54, %c1536] : memref<8x1568xf32, #tpu.memory_space<vmem>>, vector<8x32xf32>
    tpu.vector_store %arg8[%c0_54, %c1536], %107 {strides = array<i32>} : memref<8x1568xf32, #tpu.memory_space<vmem>>, vector<8x32xf32>,
    %c0_55 = arith.constant 0 : index
    %c0_56 = arith.constant 0 : index
    %109 = vector.load %arg8[%c0_55, %c0_56] : memref<8x1568xf32, #tpu.memory_space<vmem>>, vector<8x1568xf32>
    %110 = arith.truncf %109 : vector<8x1568xf32> to vector<8x1568xbf16>
    %c0_57 = arith.constant 0 : index
    %c0_58 = arith.constant 0 : index
    %111 = vector.load %arg3[%c0_57, %c0_58] : memref<1568x64xbf16, #tpu.memory_space<vmem>>, vector<1568x64xbf16>
    %cst_59 = arith.constant dense<0.000000e+00> : vector<8x64xf32>
    %112 = tpu.matmul %110, %111, %cst_59 {dimension_numbers = #tpu.dot_dimension_numbers<[1], [0], [0], [1], [0, 0, 1, 1], [], []>} : vector<8x1568xbf16>, vector<1568x64xbf16>, vector<8x64xf32> -> vector<8x64xf32>
    %c0_60 = arith.constant 0 : index
    %c0_61 = arith.constant 0 : index
    %113 = vector.load %arg4[%c0_60, %c0_61] : memref<1x64xf32, #tpu.memory_space<vmem>>, vector<1x64xf32>
    %114 = vector.broadcast %113 : vector<1x64xf32> to vector<8x64xf32>
    %115 = arith.addf %112, %114 : vector<8x64xf32>
    %cst_62 = arith.constant 0.000000e+00 : f32
    %116 = vector.broadcast %cst_62 : f32 to vector<8x64xf32>
    %117 = arith.maximumf %115, %116 : vector<8x64xf32>
    %118 = arith.truncf %117 : vector<8x64xf32> to vector<8x64xbf16>
    %c0_63 = arith.constant 0 : index
    %c0_64 = arith.constant 0 : index
    %119 = vector.load %arg5[%c0_63, %c0_64] : memref<64x64xbf16, #tpu.memory_space<vmem>>, vector<64x64xbf16>
    %cst_65 = arith.constant dense<0.000000e+00> : vector<8x64xf32>
    %120 = tpu.matmul %118, %119, %cst_65 {dimension_numbers = #tpu.dot_dimension_numbers<[1], [0], [0], [1], [0, 0, 1, 1], [], []>} : vector<8x64xbf16>, vector<64x64xbf16>, vector<8x64xf32> -> vector<8x64xf32>
    %c0_66 = arith.constant 0 : index
    %c0_67 = arith.constant 0 : index
    %121 = vector.load %arg6[%c0_66, %c0_67] : memref<1x64xf32, #tpu.memory_space<vmem>>, vector<1x64xf32>
    %122 = vector.broadcast %121 : vector<1x64xf32> to vector<8x64xf32>
    %123 = arith.addf %120, %122 : vector<8x64xf32>
    %cst_68 = arith.constant 0.000000e+00 : f32
    %124 = vector.broadcast %cst_68 : f32 to vector<8x64xf32>
    %125 = arith.maximumf %123, %124 : vector<8x64xf32>
    %c0_69 = arith.constant 0 : index
    %c0_70 = arith.constant 0 : index
    %c0_71 = arith.constant 0 : index
    %126 = vector.load %arg7[%c0_69, %c0_70, %c0_71] : memref<1x8x64xf32, #tpu.memory_space<vmem>>, vector<1x8x64xf32>
    %127 = vector.shape_cast %126 : vector<1x8x64xf32> to vector<8x64xf32>
    %128 = vector.shape_cast %125 : vector<8x64xf32> to vector<1x8x64xf32>
    tpu.vector_store %arg7[%c0_69, %c0_70, %c0_71], %128 {strides = array<i32>} : memref<1x8x64xf32, #tpu.memory_space<vmem>>, vector<1x8x64xf32>,
    return
  }
  func.func @transform_0(%arg0: i32) -> (i32, i32, i32) {
    %c0_i32 = arith.constant 0 : i32
    %c0_i32_0 = arith.constant 0 : i32
    %c0_i32_1 = arith.constant 0 : i32
    return %arg0, %c0_i32, %c0_i32_0 : i32, i32, i32
  }
  func.func @transform_1(%arg0: i32) -> (i32, i32, i32) {
    %c0_i32 = arith.constant 0 : i32
    %c0_i32_0 = arith.constant 0 : i32
    %c0_i32_1 = arith.constant 0 : i32
    return %arg0, %c0_i32, %c0_i32_0 : i32, i32, i32
  }
  func.func @transform_2(%arg0: i32) -> (i32, i32) {
    %c0_i32 = arith.constant 0 : i32
    %c0_i32_0 = arith.constant 0 : i32
    %c0_i32_1 = arith.constant 0 : i32
    return %c0_i32, %c0_i32_0 : i32, i32
  }
  func.func @transform_3(%arg0: i32) -> (i32, i32) {
    %c0_i32 = arith.constant 0 : i32
    %c0_i32_0 = arith.constant 0 : i32
    %c0_i32_1 = arith.constant 0 : i32
    return %c0_i32, %c0_i32_0 : i32, i32
  }
  func.func @transform_4(%arg0: i32) -> (i32, i32) {
    %c0_i32 = arith.constant 0 : i32
    %c0_i32_0 = arith.constant 0 : i32
    %c0_i32_1 = arith.constant 0 : i32
    return %c0_i32, %c0_i32_0 : i32, i32
  }
  func.func @transform_5(%arg0: i32) -> (i32, i32) {
    %c0_i32 = arith.constant 0 : i32
    %c0_i32_0 = arith.constant 0 : i32
    %c0_i32_1 = arith.constant 0 : i32
    return %c0_i32, %c0_i32_0 : i32, i32
  }
  func.func @transform_6(%arg0: i32) -> (i32, i32, i32) {
    %c0_i32 = arith.constant 0 : i32
    %c0_i32_0 = arith.constant 0 : i32
    %c0_i32_1 = arith.constant 0 : i32
    return %arg0, %c0_i32, %c0_i32_0 : i32, i32, i32
  }
}

</mosaic_0001>

<llo_original>
// kernel: maskrcnn_benchmark_forward.3
$region0: #{maskrcnn_benchmark_forward.3}
  #allocation0 [shape = 'u32[]', space=smem, size = 0x4, offset = 0x4, fixed_abs, tag = 'smem constant byte address 0x4 - core index']
  #allocation1 [shape = 'u32[144,128]{1,0:T(1,128)}', space=vmem, size = 0x12000, scoped, tag = 'internal scratch']
  %s0 = inlined_call_operand.vmem [shape: bf16[512,32], index: 0, kind: input, shape index: {}]
  %s1 = inlined_call_operand.vmem [shape: bf16[32,32], index: 1, kind: input, shape index: {}]
  %s2 = inlined_call_operand.vmem [shape: f32[1,32], index: 2, kind: input, shape index: {}]
  %s3 = inlined_call_operand.vmem [shape: bf16[512,32], index: 3, kind: output, shape index: {}]
  %s4 = sld [smem:[#allocation0]]
  $region45: #{maskrcnn_benchmark_forward.3} parent=0
    _
  %s6 = ssub.s32 1, %s4
  %s7 = scalar_select 0, %s6, %s4
  loop: start=0, step=1, limit=4
  $region2: #{maskrcnn_benchmark_forward.3} parent=0 // loop_pre_header
    _
  $region3: #{maskrcnn_benchmark_forward.3} parent=0 // loop_header
    %s9 = sphi 0, %s13
    %p10 = scmp.ge.s32.totalorder %s9, 4
    %s19 = sphi 0, %s21
    %s22 = sphi 0, %s19
    %s23 = sphi 0, %s22
    %s39 = sphi 0, %s23
    %s43 = sphi 0, %s43
    %s45 = sphi 0, %s43
    %s46 = sphi 0, %s45
    %s60 = sphi 0, %s46
    %s64 = sphi 0, %s64
    %s66 = sphi 0, %s64
    %s67 = sphi 0, %s66
    %s81 = sphi 0, %s67
    %s87 = sphi 0, %s89
    %s90 = sphi 0, %s87
    %s91 = sphi 0, %s90
    %s107 = sphi 0, %s91
  $region4: #{maskrcnn_benchmark_forward.3} parent=0 // loop_header_branch
    %12 = sbr.rel (%p10) target = $region8
  $region5: #{maskrcnn_benchmark_forward.3} parent=0 // loop_body
    %s14 = ssub.s32 %s9, 1
    %s15 = ssub.s32 %s9, 2
    %s16 = sadd.s32 %s9, 1
    %s17 = ssub.s32 %s9, %s16
    %p18 = scmp.eq.s32.totalorder %s17, 0
    %s20 = sadd.s32 %s19, 1
    %s21 = scalar_select %p18, %s19, %s20
    %p24 = pneg %p18
    %p25 = scmp.eq.s32.totalorder %s9, 1
    %p26 = por %p24, %p25
    %p27 = scmp.ne.s32.totalorder %s19, %s22
    %p28 = scmp.eq.s32.totalorder %s9, 0
    %p29 = por %p27, %p28
    %p30 = scmp.ne.s32.totalorder %s19, %s22
    %p31 = scmp.eq.s32.totalorder %s14, 1
    %p32 = por %p30, %p31
    %p33 = scmp.ne.s32.totalorder %s22, %s23
    %p34 = scmp.eq.s32.totalorder %s14, 0
    %p35 = por %p33, %p34
    %p36 = scmp.ne.s32.totalorder %s22, %s23
    %p37 = scmp.eq.s32.totalorder %s15, 1
    %p38 = por %p36, %p37
    %p40 = scmp.ne.s32.totalorder %s23, %s39
    %p41 = scmp.eq.s32.totalorder %s15, 0
    %p42 = por %p40, %p41
    %s44 = sadd.s32 %s43, 1
    %p47 = scmp.eq.s32.totalorder %s9, 1
    %p48 = scmp.ne.s32.totalorder %s43, %s45
    %p49 = scmp.eq.s32.totalorder %s9, 0
    %p50 = por %p48, %p49
    %p51 = scmp.ne.s32.totalorder %s43, %s45
    %p52 = scmp.eq.s32.totalorder %s14, 1
    %p53 = por %p51, %p52
    %p54 = scmp.ne.s32.totalorder %s45, %s46
    %p55 = scmp.eq.s32.totalorder %s14, 0
    %p56 = por %p54, %p55
    %p57 = scmp.ne.s32.totalorder %s45, %s46
    %p58 = scmp.eq.s32.totalorder %s15, 1
    %p59 = por %p57, %p58
    %p61 = scmp.ne.s32.totalorder %s46, %s60
    %p62 = scmp.eq.s32.totalorder %s15, 0
    %p63 = por %p61, %p62
    %s65 = sadd.s32 %s64, 1
    %p68 = scmp.eq.s32.totalorder %s9, 1
    %p69 = scmp.ne.s32.totalorder %s64, %s66
    %p70 = scmp.eq.s32.totalorder %s9, 0
    %p71 = por %p69, %p70
    %p72 = scmp.ne.s32.totalorder %s64, %s66
    %p73 = scmp.eq.s32.totalorder %s14, 1
    %p74 = por %p72, %p73
    %p75 = scmp.ne.s32.totalorder %s66, %s67
    %p76 = scmp.eq.s32.totalorder %s14, 0
    %p77 = por %p75, %p76
    %p78 = scmp.ne.s32.totalorder %s66, %s67
    %p79 = scmp.eq.s32.totalorder %s15, 1
    %p80 = por %p78, %p79
    %p82 = scmp.ne.s32.totalorder %s67, %s81
    %p83 = scmp.eq.s32.totalorder %s15, 0
    %p84 = por %p82, %p83
    %s85 = ssub.s32 %s9, %s16
    %p86 = scmp.eq.s32.totalorder %s85, 0
    %s88 = sadd.s32 %s87, 1
    %s89 = scalar_select %p86, %s87, %s88
    %p92 = pneg %p86
    %p93 = scmp.eq.s32.totalorder %s9, 1
    %p94 = por %p92, %p93
    %p95 = scmp.ne.s32.totalorder %s87, %s90
    %p96 = scmp.eq.s32.totalorder %s9, 0
    %p97 = por %p95, %p96
    %p98 = scmp.ne.s32.totalorder %s87, %s90
    %p99 = scmp.eq.s32.totalorder %s14, 1
    %p100 = por %p98, %p99
    %p101 = scmp.ne.s32.totalorder %s90, %s91
    %p102 = scmp.eq.s32.totalorder %s14, 0
    %p103 = por %p101, %p102
    %p104 = scmp.ne.s32.totalorder %s90, %s91
    %p105 = scmp.eq.s32.totalorder %s15, 1
    %p106 = por %p104, %p105
    %p108 = scmp.ne.s32.totalorder %s91, %s107
    %p109 = scmp.eq.s32.totalorder %s15, 0
    %p110 = por %p108, %p109
    %p111 = scmp.le.s32.totalorder 1, %s9
    %p112 = scmp.lt.s32.totalorder %s9, 3
    %p113 = pnand %p111, %p112
    %p114 = pneg %p113
    // Predicated region
    $region9: #{maskrcnn_benchmark_forward.3} parent=5 // pred_check
      _
    $region10: #{maskrcnn_benchmark_forward.3} parent=5 // pred_check_branch
      %116 = sbr.rel (%p113) target = $region12
    $region11: #{maskrcnn_benchmark_forward.3} parent=5 // pred_region
      %s117 = ssub.s32 %s9, 1
      // Predicated region
      $region13: #{maskrcnn_benchmark_forward.3} parent=11 // pred_check
        %p118 = pneg %p56
      $region14: #{maskrcnn_benchmark_forward.3} parent=11 // pred_check_branch
        %120 = sbr.rel (%p118) target = $region16
      $region15: #{maskrcnn_benchmark_forward.3} parent=11 // pred_region
        _
      $region16: #{maskrcnn_benchmark_forward.3} parent=11 // pred_fallthru
        _
      // Predicated region
      $region17: #{maskrcnn_benchmark_forward.3} parent=11 // pred_check
        %p121 = pneg %p77
      $region18: #{maskrcnn_benchmark_forward.3} parent=11 // pred_check_branch
        %123 = sbr.rel (%p121) target = $region20
      $region19: #{maskrcnn_benchmark_forward.3} parent=11 // pred_region
        _
      $region20: #{maskrcnn_benchmark_forward.3} parent=11 // pred_fallthru
        _
    $region12: #{maskrcnn_benchmark_forward.3} parent=5 // pred_fallthru
      _
    %p124 = scmp.lt.s32.totalorder %s9, 2
    // Predicated region
    $region21: #{maskrcnn_benchmark_forward.3} parent=5 // pred_check
      %p125 = pneg %p124
    $region22: #{maskrcnn_benchmark_forward.3} parent=5 // pred_check_branch
      %127 = sbr.rel (%p125) target = $region24
    $region23: #{maskrcnn_benchmark_forward.3} parent=5 // pred_region
      // Predicated region
      $region25: #{maskrcnn_benchmark_forward.3} parent=23 // pred_check
        %p128 = pneg %p29
      $region26: #{maskrcnn_benchmark_forward.3} parent=23 // pred_check_branch
        %130 = sbr.rel (%p128) target = $region28
      $region27: #{maskrcnn_benchmark_forward.3} parent=23 // pred_region
        %s131 = smul.u32 32, %s9
        %p132 = scmp.lt.s32.totalorder %s131, 63
        %s133 = scalar_select %p132, %s131, 63
        %s134 = smul.addr %s133, 4
        %s135 = scalar_lea.vmem %s0, %s134
        %s136 = smul.u32 32, %s9
      $region28: #{maskrcnn_benchmark_forward.3} parent=23 // pred_fallthru
        _
    $region24: #{maskrcnn_benchmark_forward.3} parent=5 // pred_fallthru
      _
    %p137 = scmp.le.s32.totalorder 1, %s9
    %p138 = scmp.lt.s32.totalorder %s9, 3
    %p139 = pnand %p137, %p138
    %p140 = pneg %p139
    // Predicated region
    $region29: #{maskrcnn_benchmark_forward.3} parent=5 // pred_check
      _
    $region30: #{maskrcnn_benchmark_forward.3} parent=5 // pred_check_branch
      %142 = sbr.rel (%p139) target = $region32
    $region31: #{maskrcnn_benchmark_forward.3} parent=5 // pred_region
      %s143 = ssub.s32 %s9, 1
      %s144 = smul.u32 32, %s14
      %p145 = scmp.lt.s32.totalorder %s144, 63
      %s146 = scalar_select %p145, %s144, 63
      %s147 = smul.addr %s146, 4
      %s148 = scalar_lea.vmem %s0, %s147
      %p149 = pneg %p35
      %p150 = pneg %p32
      %p151 = pneg %p56
      %p152 = pneg %p53
      %p153 = pneg %p77
      %p154 = pneg %p74
      %p155 = pneg %p103
      %p156 = pneg %p100
      %s157 = smul.u32 32, %s14
      %p158 = scmp.lt.s32.totalorder %s157, 63
      %s159 = scalar_select %p158, %s157, 63
      %s160 = smul.addr %s159, 4
      %s161 = scalar_lea.vmem %s3, %s160
      %s162 = smul.u32 32, %s14
      %p163 = scmp.lt.s32.totalorder %s162, 63
      %s164 = scalar_select %p163, %s162, 63
      %s165 = smul.addr %s164, 4
      %s166 = scalar_lea.vmem %s0, %s165
      %s167 = smul.u32 32, %s14
      %s168 = smul.u32 32, %s14
      %p169 = scmp.lt.s32.totalorder %s168, 63
      %s170 = scalar_select %p169, %s168, 63
      %s171 = smul.addr %s170, 4
      %s172 = scalar_lea.vmem %s3, %s171
      %s173 = smul.u32 32, %s14
      %v175 = vld [vmem:[%s166] sm:$0xf]
      %v176 = vld [vmem:[%s166 + $0x4] sm:$0xf]
      %v177 = vld [vmem:[%s166 + $0x8] sm:$0xf]
      %v178 = vld [vmem:[%s166 + $0xc] sm:$0xf]
      %v179 = vld [vmem:[%s166 + $0x10] sm:$0xf]
      %v180 = vld [vmem:[%s166 + $0x14] sm:$0xf]
      %v181 = vld [vmem:[%s166 + $0x18] sm:$0xf]
      %v182 = vld [vmem:[%s166 + $0x1c] sm:$0xf]
      %v183 = vld [vmem:[%s166 + $0x20] sm:$0xf]
      %v184 = vld [vmem:[%s166 + $0x24] sm:$0xf]
      %v185 = vld [vmem:[%s166 + $0x28] sm:$0xf]
      %v186 = vld [vmem:[%s166 + $0x2c] sm:$0xf]
      %v187 = vld [vmem:[%s166 + $0x30] sm:$0xf]
      %v188 = vld [vmem:[%s166 + $0x34] sm:$0xf]
      %v189 = vld [vmem:[%s166 + $0x38] sm:$0xf]
      %v190 = vld [vmem:[%s166 + $0x3c] sm:$0xf]
      %v191 = vld [vmem:[%s166 + $0x40] sm:$0xf]
      %v192 = vld [vmem:[%s166 + $0x44] sm:$0xf]
      %v193 = vld [vmem:[%s166 + $0x48] sm:$0xf]
      %v194 = vld [vmem:[%s166 + $0x4c] sm:$0xf]
      %v195 = vld [vmem:[%s166 + $0x50] sm:$0xf]
      %v196 = vld [vmem:[%s166 + $0x54] sm:$0xf]
      %v197 = vld [vmem:[%s166 + $0x58] sm:$0xf]
      %v198 = vld [vmem:[%s166 + $0x5c] sm:$0xf]
      %v199 = vld [vmem:[%s166 + $0x60] sm:$0xf]
      %v200 = vld [vmem:[%s166 + $0x64] sm:$0xf]
      %v201 = vld [vmem:[%s166 + $0x68] sm:$0xf]
      %v202 = vld [vmem:[%s166 + $0x6c] sm:$0xf]
      %v203 = vld [vmem:[%s166 + $0x70] sm:$0xf]
      %v204 = vld [vmem:[%s166 + $0x74] sm:$0xf]
      %v205 = vld [vmem:[%s166 + $0x78] sm:$0xf]
      %v206 = vld [vmem:[%s166 + $0x7c] sm:$0xf]
      %v207 = vld [vmem:[%s1] sm:$0xf]
      %v208 = vld [vmem:[%s1 + $0x4] sm:$0xf]
      %v209 = vld [vmem:[%s1 + $0x8] sm:$0xf]
      %v210 = vld [vmem:[%s1 + $0xc] sm:$0xf]
      %v211 = vld [vmem:[%s2] sm:$0x1]
      %v213 = vlaneseq
      %v214 = vshrl.u32 %v213, 7
      %v215 = vsub.s32 0, %v214
      %v216 = vrot.slane %v211, %v215
      %v250 = vunpack.c.l.b16 %v175
      %v251 = vunpack.c.l.b16 %v176
      %v252 = vunpack.c.l.b16 %v177
      %v253 = vunpack.c.l.b16 %v178
      %v254 = vunpack.c.l.b16 %v179
      %v255 = vunpack.c.l.b16 %v180
      %v256 = vunpack.c.l.b16 %v181
      %v257 = vunpack.c.l.b16 %v182
      %v258 = vunpack.c.l.b16 %v183
      %v259 = vunpack.c.l.b16 %v184
      %v260 = vunpack.c.l.b16 %v185
      %v261 = vunpack.c.l.b16 %v186
      %v262 = vunpack.c.l.b16 %v187
      %v263 = vunpack.c.l.b16 %v188
      %v264 = vunpack.c.l.b16 %v189
      %v265 = vunpack.c.l.b16 %v190
      %v266 = vunpack.c.l.b16 %v191
      %v267 = vunpack.c.l.b16 %v192
      %v268 = vunpack.c.l.b16 %v193
      %v269 = vunpack.c.l.b16 %v194
      %v270 = vunpack.c.l.b16 %v195
      %v271 = vunpack.c.l.b16 %v196
      %v272 = vunpack.c.l.b16 %v197
      %v273 = vunpack.c.l.b16 %v198
      %v274 = vunpack.c.l.b16 %v199
      %v275 = vunpack.c.l.b16 %v200
      %v276 = vunpack.c.l.b16 %v201
      %v277 = vunpack.c.l.b16 %v202
      %v278 = vunpack.c.l.b16 %v203
      %v279 = vunpack.c.l.b16 %v204
      %v280 = vunpack.c.l.b16 %v205
      %v281 = vunpack.c.l.b16 %v206
      %v282 = vpack.c.b16 %v251, %v250
      %v283 = vpack.c.b16 %v253, %v252
      %v284 = vpack.c.b16 %v255, %v254
      %v285 = vpack.c.b16 %v257, %v256
      %v286 = vpack.c.b16 %v259, %v258
      %v287 = vpack.c.b16 %v261, %v260
      %v288 = vpack.c.b16 %v263, %v262
      %v289 = vpack.c.b16 %v265, %v264
      %v290 = vpack.c.b16 %v267, %v266
      %v291 = vpack.c.b16 %v269, %v268
      %v292 = vpack.c.b16 %v271, %v270
      %v293 = vpack.c.b16 %v273, %v272
      %v294 = vpack.c.b16 %v275, %v274
      %v295 = vpack.c.b16 %v277, %v276
      %v296 = vpack.c.b16 %v279, %v278
      %v297 = vpack.c.b16 %v281, %v280
      %v302 = vunpack.c.l.b16 %v207
      %v303 = vunpack.c.l.b16 %v208
      %v304 = vunpack.c.l.b16 %v209
      %v305 = vunpack.c.l.b16 %v210
      %v306 = vpack.c.b16 %v303, %v302
      %v307 = vpack.c.b16 %v305, %v304
      %vm310 = vcmask 261120
      %v312 = vsel %vm310, %v282, 0
      %v315 = vsel %vm310, %v283, 0
      %v318 = vsel %vm310, %v284, 0
      %v321 = vsel %vm310, %v285, 0
      %v324 = vsel %vm310, %v286, 0
      %v327 = vsel %vm310, %v287, 0
      %v330 = vsel %vm310, %v288, 0
      %v333 = vsel %vm310, %v289, 0
      %v336 = vsel %vm310, %v290, 0
      %v339 = vsel %vm310, %v291, 0
      %v342 = vsel %vm310, %v292, 0
      %v345 = vsel %vm310, %v293, 0
      %v348 = vsel %vm310, %v294, 0
      %v351 = vsel %vm310, %v295, 0
      %v354 = vsel %vm310, %v296, 0
      %v357 = vsel %vm310, %v297, 0
      %359 = vmatprep.subr.bf16.mxu0 0
      %360 = vmatpush1.bf16.msra.mxu0 0
      %361 = vmatprep.subr.bf16.mxu0 0
      %362 = vmatpush1.bf16.msra.mxu0 0
      %363 = vmatprep.subr.bf16.mxu0 0
      %364 = vmatpush1.bf16.msra.mxu0 0
      %365 = vmatprep.subr.bf16.mxu0 0
      %366 = vmatpush1.bf16.msra.mxu0 0
      %367 = vmatprep.subr.bf16.mxu0 0
      %368 = vmatpush1.bf16.msra.mxu0 0
      %369 = vmatprep.subr.bf16.mxu0 0
      %370 = vmatpush1.bf16.msra.mxu0 0
      %371 = vmatprep.subr.bf16.mxu0 0
      %372 = vmatpush1.bf16.msra.mxu0 %v307
      %373 = vmatprep.subr.bf16.mxu0 0
      %374 = vmatpush1.bf16.msra.mxu0 %v306
      %375 = vmatprep.subr.bf16.mxu0 0
      %376 = vmatpush2.bf16.msra.mxu0 0
      %377 = vmatprep.subr.bf16.mxu0 0
      %378 = vmatpush2.bf16.msra.mxu0 0
      %379 = vmatprep.subr.bf16.mxu0 0
      %380 = vmatpush2.bf16.msra.mxu0 0
      %381 = vmatprep.subr.bf16.mxu0 0
      %382 = vmatpush2.bf16.msra.mxu0 0
      %383 = vmatprep.subr.bf16.mxu0 0
      %384 = vmatpush2.bf16.msra.mxu0 0
      %385 = vmatprep.subr.bf16.mxu0 0
      %386 = vmatpush2.bf16.msra.mxu0 0
      %387 = vmatprep.subr.bf16.mxu0 0
      %388 = vmatpush2.bf16.msra.mxu0 0
      %389 = vmatprep.subr.bf16.mxu0 0
      %390 = vmatpush2.bf16.msra.mxu0 0
      %391 = vmatprep.mubr.bf16.mxu0 0
      %392 = vmatmul.mubr.bf16.gmra.mxu0 %v312
      %v393 = vpop.f32.mrf.mxu0
      %v394 = vadd.f32 %v216, %v393
      %v395 = vpop.f32.mrf.mxu0
      %v396 = vpop.f32.mrf.mxu0
      %v397 = vadd.f32 %v216, %v396
      %v398 = vpop.f32.mrf.mxu0
      %399 = vmatprep.mubr.bf16.mxu0 0
      %400 = vmatmul.mubr.bf16.gmra.mxu0 %v315
      %v401 = vpop.f32.mrf.mxu0
      %v402 = vadd.f32 %v216, %v401
      %v403 = vpop.f32.mrf.mxu0
      %v404 = vpop.f32.mrf.mxu0
      %v405 = vadd.f32 %v216, %v404
      %v406 = vpop.f32.mrf.mxu0
      %407 = vmatprep.mubr.bf16.mxu0 0
      %408 = vmatmul.mubr.bf16.gmra.mxu0 %v318
      %v409 = vpop.f32.mrf.mxu0
      %v410 = vadd.f32 %v216, %v409
      %v411 = vpop.f32.mrf.mxu0
      %v412 = vpop.f32.mrf.mxu0
      %v413 = vadd.f32 %v216, %v412
      %v414 = vpop.f32.mrf.mxu0
      %415 = vmatprep.mubr.bf16.mxu0 0
      %416 = vmatmul.mubr.bf16.gmra.mxu0 %v321
      %v417 = vpop.f32.mrf.mxu0
      %v418 = vadd.f32 %v216, %v417
      %v419 = vpop.f32.mrf.mxu0
      %v420 = vpop.f32.mrf.mxu0
      %v421 = vadd.f32 %v216, %v420
      %v422 = vpop.f32.mrf.mxu0
      %423 = vmatprep.mubr.bf16.mxu0 0
      %424 = vmatmul.mubr.bf16.gmra.mxu0 %v324
      %v425 = vpop.f32.mrf.mxu0
      %v426 = vadd.f32 %v216, %v425
      %v427 = vpop.f32.mrf.mxu0
      %v428 = vpop.f32.mrf.mxu0
      %v429 = vadd.f32 %v216, %v428
      %v430 = vpop.f32.mrf.mxu0
      %431 = vmatprep.mubr.bf16.mxu0 0
      %432 = vmatmul.mubr.bf16.gmra.mxu0 %v327
      %v433 = vpop.f32.mrf.mxu0
      %v434 = vadd.f32 %v216, %v433
      %v435 = vpop.f32.mrf.mxu0
      %v436 = vpop.f32.mrf.mxu0
      %v437 = vadd.f32 %v216, %v436
      %v438 = vpop.f32.mrf.mxu0
      %439 = vmatprep.mubr.bf16.mxu0 0
      %440 = vmatmul.mubr.bf16.gmra.mxu0 %v330
      %v441 = vpop.f32.mrf.mxu0
      %v442 = vadd.f32 %v216, %v441
      %v443 = vpop.f32.mrf.mxu0
      %v444 = vpop.f32.mrf.mxu0
      %v445 = vadd.f32 %v216, %v444
      %v446 = vpop.f32.mrf.mxu0
      %447 = vmatprep.mubr.bf16.mxu0 0
      %448 = vmatmul.mubr.bf16.gmra.mxu0 %v333
      %v449 = vpop.f32.mrf.mxu0
      %v450 = vadd.f32 %v216, %v449
      %v451 = vpop.f32.mrf.mxu0
      %v452 = vpop.f32.mrf.mxu0
      %v453 = vadd.f32 %v216, %v452
      %v454 = vpop.f32.mrf.mxu0
      %455 = vmatprep.mubr.bf16.mxu0 0
      %456 = vmatmul.mubr.bf16.gmra.mxu0 %v336
      %v457 = vpop.f32.mrf.mxu0
      %v458 = vadd.f32 %v216, %v457
      %v459 = vpop.f32.mrf.mxu0
      %v460 = vpop.f32.mrf.mxu0
      %v461 = vadd.f32 %v216, %v460
      %v462 = vpop.f32.mrf.mxu0
      %463 = vmatprep.mubr.bf16.mxu0 0
      %464 = vmatmul.mubr.bf16.gmra.mxu0 %v339
      %v465 = vpop.f32.mrf.mxu0
      %v466 = vadd.f32 %v216, %v465
      %v467 = vpop.f32.mrf.mxu0
      %v468 = vpop.f32.mrf.mxu0
      %v469 = vadd.f32 %v216, %v468
      %v470 = vpop.f32.mrf.mxu0
      %471 = vmatprep.mubr.bf16.mxu0 0
      %472 = vmatmul.mubr.bf16.gmra.mxu0 %v342
      %v473 = vpop.f32.mrf.mxu0
      %v474 = vadd.f32 %v216, %v473
      %v475 = vpop.f32.mrf.mxu0
      %v476 = vpop.f32.mrf.mxu0
      %v477 = vadd.f32 %v216, %v476
      %v478 = vpop.f32.mrf.mxu0
      %479 = vmatprep.mubr.bf16.mxu0 0
      %480 = vmatmul.mubr.bf16.gmra.mxu0 %v345
      %v481 = vpop.f32.mrf.mxu0
      %v482 = vadd.f32 %v216, %v481
      %v483 = vpop.f32.mrf.mxu0
      %v484 = vpop.f32.mrf.mxu0
      %v485 = vadd.f32 %v216, %v484
      %v486 = vpop.f32.mrf.mxu0
      %487 = vmatprep.mubr.bf16.mxu0 0
      %488 = vmatmul.mubr.bf16.gmra.mxu0 %v348
      %v489 = vpop.f32.mrf.mxu0
      %v490 = vadd.f32 %v216, %v489
      %v491 = vpop.f32.mrf.mxu0
      %v492 = vpop.f32.mrf.mxu0
      %v493 = vadd.f32 %v216, %v492
      %v494 = vpop.f32.mrf.mxu0
      %495 = vmatprep.mubr.bf16.mxu0 0
      %496 = vmatmul.mubr.bf16.gmra.mxu0 %v351
      %v497 = vpop.f32.mrf.mxu0
      %v498 = vadd.f32 %v216, %v497
      %v499 = vpop.f32.mrf.mxu0
      %v500 = vpop.f32.mrf.mxu0
      %v501 = vadd.f32 %v216, %v500
      %v502 = vpop.f32.mrf.mxu0
      %503 = vmatprep.mubr.bf16.mxu0 0
      %504 = vmatmul.mubr.bf16.gmra.mxu0 %v354
      %v505 = vpop.f32.mrf.mxu0
      %v506 = vadd.f32 %v216, %v505
      %v507 = vpop.f32.mrf.mxu0
      %v508 = vpop.f32.mrf.mxu0
      %v509 = vadd.f32 %v216, %v508
      %v510 = vpop.f32.mrf.mxu0
      %511 = vmatprep.mubr.bf16.mxu0 0
      %512 = vmatmul.mubr.bf16.gmra.mxu0 %v357
      %v513 = vpop.f32.mrf.mxu0
      %v514 = vadd.f32 %v216, %v513
      %v515 = vpop.f32.mrf.mxu0
      %v516 = vpop.f32.mrf.mxu0
      %v517 = vadd.f32 %v216, %v516
      %v518 = vpop.f32.mrf.mxu0
      %519 = vdwg.mxu0
      %v520 = vmax.f32 %v394, 0.0
      %v521 = vmax.f32 %v397, 0.0
      %v522 = vmax.f32 %v402, 0.0
      %v523 = vmax.f32 %v405, 0.0
      %v524 = vmax.f32 %v410, 0.0
      %v525 = vmax.f32 %v413, 0.0
      %v526 = vmax.f32 %v418, 0.0
      %v527 = vmax.f32 %v421, 0.0
      %v528 = vmax.f32 %v426, 0.0
      %v529 = vmax.f32 %v429, 0.0
      %v530 = vmax.f32 %v434, 0.0
      %v531 = vmax.f32 %v437, 0.0
      %v532 = vmax.f32 %v442, 0.0
      %v533 = vmax.f32 %v445, 0.0
      %v534 = vmax.f32 %v450, 0.0
      %v535 = vmax.f32 %v453, 0.0
      %v536 = vmax.f32 %v458, 0.0
      %v537 = vmax.f32 %v461, 0.0
      %v538 = vmax.f32 %v466, 0.0
      %v539 = vmax.f32 %v469, 0.0
      %v540 = vmax.f32 %v474, 0.0
      %v541 = vmax.f32 %v477, 0.0
      %v542 = vmax.f32 %v482, 0.0
      %v543 = vmax.f32 %v485, 0.0
      %v544 = vmax.f32 %v490, 0.0
      %v545 = vmax.f32 %v493, 0.0
      %v546 = vmax.f32 %v498, 0.0
      %v547 = vmax.f32 %v501, 0.0
      %v548 = vmax.f32 %v506, 0.0
      %v549 = vmax.f32 %v509, 0.0
      %v550 = vmax.f32 %v514, 0.0
      %v551 = vmax.f32 %v517, 0.0
      %v552 = vpack.c.bf16 %v521, %v520
      %v553 = vpack.c.bf16 %v523, %v522
      %v554 = vpack.c.bf16 %v525, %v524
      %v555 = vpack.c.bf16 %v527, %v526
      %v556 = vpack.c.bf16 %v529, %v528
      %v557 = vpack.c.bf16 %v531, %v530
      %v558 = vpack.c.bf16 %v533, %v532
      %v559 = vpack.c.bf16 %v535, %v534
      %v560 = vpack.c.bf16 %v537, %v536
      %v561 = vpack.c.bf16 %v539, %v538
      %v562 = vpack.c.bf16 %v541, %v540
      %v563 = vpack.c.bf16 %v543, %v542
      %v564 = vpack.c.bf16 %v545, %v544
      %v565 = vpack.c.bf16 %v547, %v546
      %v566 = vpack.c.bf16 %v549, %v548
      %v567 = vpack.c.bf16 %v551, %v550
      %v584 = vunpack.c.l.b16 %v552
      %v585 = vunpack.c.h.b16 %v552
      %v586 = vunpack.c.l.b16 %v553
      %v587 = vunpack.c.h.b16 %v553
      %v588 = vunpack.c.l.b16 %v554
      %v589 = vunpack.c.h.b16 %v554
      %v590 = vunpack.c.l.b16 %v555
      %v591 = vunpack.c.h.b16 %v555
      %v592 = vunpack.c.l.b16 %v556
      %v593 = vunpack.c.h.b16 %v556
      %v594 = vunpack.c.l.b16 %v557
      %v595 = vunpack.c.h.b16 %v557
      %v596 = vunpack.c.l.b16 %v558
      %v597 = vunpack.c.h.b16 %v558
      %v598 = vunpack.c.l.b16 %v559
      %v599 = vunpack.c.h.b16 %v559
      %v600 = vunpack.c.l.b16 %v560
      %v601 = vunpack.c.h.b16 %v560
      %v602 = vunpack.c.l.b16 %v561
      %v603 = vunpack.c.h.b16 %v561
      %v604 = vunpack.c.l.b16 %v562
      %v605 = vunpack.c.h.b16 %v562
      %v606 = vunpack.c.l.b16 %v563
      %v607 = vunpack.c.h.b16 %v563
      %v608 = vunpack.c.l.b16 %v564
      %v609 = vunpack.c.h.b16 %v564
      %v610 = vunpack.c.l.b16 %v565
      %v611 = vunpack.c.h.b16 %v565
      %v612 = vunpack.c.l.b16 %v566
      %v613 = vunpack.c.h.b16 %v566
      %v614 = vunpack.c.l.b16 %v567
      %v615 = vunpack.c.h.b16 %v567
      %v616 = vpack.c.b16 %v584, %v584
      %v617 = vpack.c.b16 %v585, %v585
      %v618 = vpack.c.b16 %v586, %v586
      %v619 = vpack.c.b16 %v587, %v587
      %v620 = vpack.c.b16 %v588, %v588
      %v621 = vpack.c.b16 %v589, %v589
      %v622 = vpack.c.b16 %v590, %v590
      %v623 = vpack.c.b16 %v591, %v591
      %v624 = vpack.c.b16 %v592, %v592
      %v625 = vpack.c.b16 %v593, %v593
      %v626 = vpack.c.b16 %v594, %v594
      %v627 = vpack.c.b16 %v595, %v595
      %v628 = vpack.c.b16 %v596, %v596
      %v629 = vpack.c.b16 %v597, %v597
      %v630 = vpack.c.b16 %v598, %v598
      %v631 = vpack.c.b16 %v599, %v599
      %v632 = vpack.c.b16 %v600, %v600
      %v633 = vpack.c.b16 %v601, %v601
      %v634 = vpack.c.b16 %v602, %v602
      %v635 = vpack.c.b16 %v603, %v603
      %v636 = vpack.c.b16 %v604, %v604
      %v637 = vpack.c.b16 %v605, %v605
      %v638 = vpack.c.b16 %v606, %v606
      %v639 = vpack.c.b16 %v607, %v607
      %v640 = vpack.c.b16 %v608, %v608
      %v641 = vpack.c.b16 %v609, %v609
      %v642 = vpack.c.b16 %v610, %v610
      %v643 = vpack.c.b16 %v611, %v611
      %v644 = vpack.c.b16 %v612, %v612
      %v645 = vpack.c.b16 %v613, %v613
      %v646 = vpack.c.b16 %v614, %v614
      %v647 = vpack.c.b16 %v615, %v615
      %vm680 = vcmask 257024
      %681 = vst.msk [vmem:[%s172] sm:$0xf] %vm680, %v616
      %682 = vst.msk [vmem:[%s172 + $0x4] sm:$0xf] %vm680, %v617
      %683 = vst.msk [vmem:[%s172 + $0x8] sm:$0xf] %vm680, %v618
      %684 = vst.msk [vmem:[%s172 + $0xc] sm:$0xf] %vm680, %v619
      %685 = vst.msk [vmem:[%s172 + $0x10] sm:$0xf] %vm680, %v620
      %686 = vst.msk [vmem:[%s172 + $0x14] sm:$0xf] %vm680, %v621
      %687 = vst.msk [vmem:[%s172 + $0x18] sm:$0xf] %vm680, %v622
      %688 = vst.msk [vmem:[%s172 + $0x1c] sm:$0xf] %vm680, %v623
      %689 = vst.msk [vmem:[%s172 + $0x20] sm:$0xf] %vm680, %v624
      %690 = vst.msk [vmem:[%s172 + $0x24] sm:$0xf] %vm680, %v625
      %691 = vst.msk [vmem:[%s172 + $0x28] sm:$0xf] %vm680, %v626
      %692 = vst.msk [vmem:[%s172 + $0x2c] sm:$0xf] %vm680, %v627
      %693 = vst.msk [vmem:[%s172 + $0x30] sm:$0xf] %vm680, %v628
      %694 = vst.msk [vmem:[%s172 + $0x34] sm:$0xf] %vm680, %v629
      %695 = vst.msk [vmem:[%s172 + $0x38] sm:$0xf] %vm680, %v630
      %696 = vst.msk [vmem:[%s172 + $0x3c] sm:$0xf] %vm680, %v631
      %697 = vst.msk [vmem:[%s172 + $0x40] sm:$0xf] %vm680, %v632
      %698 = vst.msk [vmem:[%s172 + $0x44] sm:$0xf] %vm680, %v633
      %699 = vst.msk [vmem:[%s172 + $0x48] sm:$0xf] %vm680, %v634
      %700 = vst.msk [vmem:[%s172 + $0x4c] sm:$0xf] %vm680, %v635
      %701 = vst.msk [vmem:[%s172 + $0x50] sm:$0xf] %vm680, %v636
      %702 = vst.msk [vmem:[%s172 + $0x54] sm:$0xf] %vm680, %v637
      %703 = vst.msk [vmem:[%s172 + $0x58] sm:$0xf] %vm680, %v638
      %704 = vst.msk [vmem:[%s172 + $0x5c] sm:$0xf] %vm680, %v639
      %705 = vst.msk [vmem:[%s172 + $0x60] sm:$0xf] %vm680, %v640
      %706 = vst.msk [vmem:[%s172 + $0x64] sm:$0xf] %vm680, %v641
      %707 = vst.msk [vmem:[%s172 + $0x68] sm:$0xf] %vm680, %v642
      %708 = vst.msk [vmem:[%s172 + $0x6c] sm:$0xf] %vm680, %v643
      %709 = vst.msk [vmem:[%s172 + $0x70] sm:$0xf] %vm680, %v644
      %710 = vst.msk [vmem:[%s172 + $0x74] sm:$0xf] %vm680, %v645
      %711 = vst.msk [vmem:[%s172 + $0x78] sm:$0xf] %vm680, %v646
      %712 = vst.msk [vmem:[%s172 + $0x7c] sm:$0xf] %vm680, %v647
      %s713 = smul.u32 32, %s14
      %p714 = scmp.lt.s32.totalorder %s713, 63
      %s715 = scalar_select %p714, %s713, 63
      %s716 = smul.addr %s715, 4
      %s717 = scalar_lea.vmem %s3, %s716
      // Predicated region
      $region33: #{maskrcnn_benchmark_forward.3} parent=31 // pred_check
        %p718 = pneg %p100
      $region34: #{maskrcnn_benchmark_forward.3} parent=31 // pred_check_branch
        %720 = sbr.rel (%p718) target = $region36
      $region35: #{maskrcnn_benchmark_forward.3} parent=31 // pred_region
        %s721 = smul.u32 32, %s14
      $region36: #{maskrcnn_benchmark_forward.3} parent=31 // pred_fallthru
        _
    $region32: #{maskrcnn_benchmark_forward.3} parent=5 // pred_fallthru
      _
    %p722 = scmp.le.s32.totalorder 2, %s9
    // Predicated region
    $region37: #{maskrcnn_benchmark_forward.3} parent=5 // pred_check
      %p723 = pneg %p722
    $region38: #{maskrcnn_benchmark_forward.3} parent=5 // pred_check_branch
      %725 = sbr.rel (%p723) target = $region40
    $region39: #{maskrcnn_benchmark_forward.3} parent=5 // pred_region
      %s726 = ssub.s32 %s9, 2
      // Predicated region
      $region41: #{maskrcnn_benchmark_forward.3} parent=39 // pred_check
        %p727 = pneg %p106
      $region42: #{maskrcnn_benchmark_forward.3} parent=39 // pred_check_branch
        %729 = sbr.rel (%p727) target = $region44
      $region43: #{maskrcnn_benchmark_forward.3} parent=39 // pred_region
        %s730 = smul.u32 32, %s15
        %p731 = scmp.lt.s32.totalorder %s730, 63
        %s732 = scalar_select %p731, %s730, 63
        %s733 = smul.addr %s732, 4
        %s734 = scalar_lea.vmem %s3, %s733
      $region44: #{maskrcnn_benchmark_forward.3} parent=39 // pred_fallthru
        _
    $region40: #{maskrcnn_benchmark_forward.3} parent=5 // pred_fallthru
      _
  $region6: #{maskrcnn_benchmark_forward.3} parent=0 // loop_footer
    %s13 = sadd.s32 1, %s9
  $region7: #{maskrcnn_benchmark_forward.3} parent=0 // loop_footer_branch
    %8 = sbr.rel target = $region3
  $region8: #{maskrcnn_benchmark_forward.3} parent=0 // loop_exit
    _

// kernel: maskrcnn_benchmark_forward.4
$region0: #{maskrcnn_benchmark_forward.4}
  #allocation0 [shape = 'u32[]', space=smem, size = 0x4, offset = 0x4, fixed_abs, tag = 'smem constant byte address 0x4 - core index']
  #allocation1 [shape = 'u32[144,128]{1,0:T(1,128)}', space=vmem, size = 0x12000, scoped, tag = 'internal scratch']
  %s0 = inlined_call_operand.vmem [shape: bf16[512,288], index: 0, kind: input, shape index: {}]
  %s1 = inlined_call_operand.vmem [shape: bf16[288,32], index: 1, kind: input, shape index: {}]
  %s2 = inlined_call_operand.vmem [shape: f32[1,32], index: 2, kind: input, shape index: {}]
  %s3 = inlined_call_operand.vmem [shape: bf16[32,128], index: 3, kind: input, shape index: {}]
  %s4 = inlined_call_operand.vmem [shape: f32[1,128], index: 4, kind: input, shape index: {}]
  %s5 = inlined_call_operand.vmem [shape: f32[512,128], index: 5, kind: output, shape index: {}]
  %s6 = sld [smem:[#allocation0]]
  $region53: #{maskrcnn_benchmark_forward.4} parent=0
    _
  %s8 = ssub.s32 1, %s6
  %s9 = scalar_select 0, %s8, %s6
  loop: start=0, step=1, limit=4
  $region2: #{maskrcnn_benchmark_forward.4} parent=0 // loop_pre_header
    _
  $region3: #{maskrcnn_benchmark_forward.4} parent=0 // loop_header
    %s11 = sphi 0, %s15
    %p12 = scmp.ge.s32.totalorder %s11, 4
    %s21 = sphi 0, %s23
    %s24 = sphi 0, %s21
    %s25 = sphi 0, %s24
    %s41 = sphi 0, %s25
    %s45 = sphi 0, %s45
    %s47 = sphi 0, %s45
    %s48 = sphi 0, %s47
    %s62 = sphi 0, %s48
    %s66 = sphi 0, %s66
    %s68 = sphi 0, %s66
    %s69 = sphi 0, %s68
    %s83 = sphi 0, %s69
    %s87 = sphi 0, %s87
    %s89 = sphi 0, %s87
    %s90 = sphi 0, %s89
    %s104 = sphi 0, %s90
    %s108 = sphi 0, %s108
    %s110 = sphi 0, %s108
    %s111 = sphi 0, %s110
    %s125 = sphi 0, %s111
    %s131 = sphi 0, %s133
    %s134 = sphi 0, %s131
    %s135 = sphi 0, %s134
    %s151 = sphi 0, %s135
  $region4: #{maskrcnn_benchmark_forward.4} parent=0 // loop_header_branch
    %14 = sbr.rel (%p12) target = $region8
  $region5: #{maskrcnn_benchmark_forward.4} parent=0 // loop_body
    %s16 = ssub.s32 %s11, 1
    %s17 = ssub.s32 %s11, 2
    %s18 = sadd.s32 %s11, 1
    %s19 = ssub.s32 %s11, %s18
    %p20 = scmp.eq.s32.totalorder %s19, 0
    %s22 = sadd.s32 %s21, 1
    %s23 = scalar_select %p20, %s21, %s22
    %p26 = pneg %p20
    %p27 = scmp.eq.s32.totalorder %s11, 1
    %p28 = por %p26, %p27
    %p29 = scmp.ne.s32.totalorder %s21, %s24
    %p30 = scmp.eq.s32.totalorder %s11, 0
    %p31 = por %p29, %p30
    %p32 = scmp.ne.s32.totalorder %s21, %s24
    %p33 = scmp.eq.s32.totalorder %s16, 1
    %p34 = por %p32, %p33
    %p35 = scmp.ne.s32.totalorder %s24, %s25
    %p36 = scmp.eq.s32.totalorder %s16, 0
    %p37 = por %p35, %p36
    %p38 = scmp.ne.s32.totalorder %s24, %s25
    %p39 = scmp.eq.s32.totalorder %s17, 1
    %p40 = por %p38, %p39
    %p42 = scmp.ne.s32.totalorder %s25, %s41
    %p43 = scmp.eq.s32.totalorder %s17, 0
    %p44 = por %p42, %p43
    %s46 = sadd.s32 %s45, 1
    %p49 = scmp.eq.s32.totalorder %s11, 1
    %p50 = scmp.ne.s32.totalorder %s45, %s47
    %p51 = scmp.eq.s32.totalorder %s11, 0
    %p52 = por %p50, %p51
    %p53 = scmp.ne.s32.totalorder %s45, %s47
    %p54 = scmp.eq.s32.totalorder %s16, 1
    %p55 = por %p53, %p54
    %p56 = scmp.ne.s32.totalorder %s47, %s48
    %p57 = scmp.eq.s32.totalorder %s16, 0
    %p58 = por %p56, %p57
    %p59 = scmp.ne.s32.totalorder %s47, %s48
    %p60 = scmp.eq.s32.totalorder %s17, 1
    %p61 = por %p59, %p60
    %p63 = scmp.ne.s32.totalorder %s48, %s62
    %p64 = scmp.eq.s32.totalorder %s17, 0
    %p65 = por %p63, %p64
    %s67 = sadd.s32 %s66, 1
    %p70 = scmp.eq.s32.totalorder %s11, 1
    %p71 = scmp.ne.s32.totalorder %s66, %s68
    %p72 = scmp.eq.s32.totalorder %s11, 0
    %p73 = por %p71, %p72
    %p74 = scmp.ne.s32.totalorder %s66, %s68
    %p75 = scmp.eq.s32.totalorder %s16, 1
    %p76 = por %p74, %p75
    %p77 = scmp.ne.s32.totalorder %s68, %s69
    %p78 = scmp.eq.s32.totalorder %s16, 0
    %p79 = por %p77, %p78
    %p80 = scmp.ne.s32.totalorder %s68, %s69
    %p81 = scmp.eq.s32.totalorder %s17, 1
    %p82 = por %p80, %p81
    %p84 = scmp.ne.s32.totalorder %s69, %s83
    %p85 = scmp.eq.s32.totalorder %s17, 0
    %p86 = por %p84, %p85
    %s88 = sadd.s32 %s87, 1
    %p91 = scmp.eq.s32.totalorder %s11, 1
    %p92 = scmp.ne.s32.totalorder %s87, %s89
    %p93 = scmp.eq.s32.totalorder %s11, 0
    %p94 = por %p92, %p93
    %p95 = scmp.ne.s32.totalorder %s87, %s89
    %p96 = scmp.eq.s32.totalorder %s16, 1
    %p97 = por %p95, %p96
    %p98 = scmp.ne.s32.totalorder %s89, %s90
    %p99 = scmp.eq.s32.totalorder %s16, 0
    %p100 = por %p98, %p99
    %p101 = scmp.ne.s32.totalorder %s89, %s90
    %p102 = scmp.eq.s32.totalorder %s17, 1
    %p103 = por %p101, %p102
    %p105 = scmp.ne.s32.totalorder %s90, %s104
    %p106 = scmp.eq.s32.totalorder %s17, 0
    %p107 = por %p105, %p106
    %s109 = sadd.s32 %s108, 1
    %p112 = scmp.eq.s32.totalorder %s11, 1
    %p113 = scmp.ne.s32.totalorder %s108, %s110
    %p114 = scmp.eq.s32.totalorder %s11, 0
    %p115 = por %p113, %p114
    %p116 = scmp.ne.s32.totalorder %s108, %s110
    %p117 = scmp.eq.s32.totalorder %s16, 1
    %p118 = por %p116, %p117
    %p119 = scmp.ne.s32.totalorder %s110, %s111
    %p120 = scmp.eq.s32.totalorder %s16, 0
    %p121 = por %p119, %p120
    %p122 = scmp.ne.s32.totalorder %s110, %s111
    %p123 = scmp.eq.s32.totalorder %s17, 1
    %p124 = por %p122, %p123
    %p126 = scmp.ne.s32.totalorder %s111, %s125
    %p127 = scmp.eq.s32.totalorder %s17, 0
    %p128 = por %p126, %p127
    %s129 = ssub.s32 %s11, %s18
    %p130 = scmp.eq.s32.totalorder %s129, 0
    %s132 = sadd.s32 %s131, 1
    %s133 = scalar_select %p130, %s131, %s132
    %p136 = pneg %p130
    %p137 = scmp.eq.s32.totalorder %s11, 1
    %p138 = por %p136, %p137
    %p139 = scmp.ne.s32.totalorder %s131, %s134
    %p140 = scmp.eq.s32.totalorder %s11, 0
    %p141 = por %p139, %p140
    %p142 = scmp.ne.s32.totalorder %s131, %s134
    %p143 = scmp.eq.s32.totalorder %s16, 1
    %p144 = por %p142, %p143
    %p145 = scmp.ne.s32.totalorder %s134, %s135
    %p146 = scmp.eq.s32.totalorder %s16, 0
    %p147 = por %p145, %p146
    %p148 = scmp.ne.s32.totalorder %s134, %s135
    %p149 = scmp.eq.s32.totalorder %s17, 1
    %p150 = por %p148, %p149
    %p152 = scmp.ne.s32.totalorder %s135, %s151
    %p153 = scmp.eq.s32.totalorder %s17, 0
    %p154 = por %p152, %p153
    %p155 = scmp.le.s32.totalorder 1, %s11
    %p156 = scmp.lt.s32.totalorder %s11, 3
    %p157 = pnand %p155, %p156
    %p158 = pneg %p157
    // Predicated region
    $region9: #{maskrcnn_benchmark_forward.4} parent=5 // pred_check
      _
    $region10: #{maskrcnn_benchmark_forward.4} parent=5 // pred_check_branch
      %160 = sbr.rel (%p157) target = $region12
    $region11: #{maskrcnn_benchmark_forward.4} parent=5 // pred_region
      %s161 = ssub.s32 %s11, 1
      // Predicated region
      $region13: #{maskrcnn_benchmark_forward.4} parent=11 // pred_check
        %p162 = pneg %p58
      $region14: #{maskrcnn_benchmark_forward.4} parent=11 // pred_check_branch
        %164 = sbr.rel (%p162) target = $region16
      $region15: #{maskrcnn_benchmark_forward.4} parent=11 // pred_region
        _
      $region16: #{maskrcnn_benchmark_forward.4} parent=11 // pred_fallthru
        _
      // Predicated region
      $region17: #{maskrcnn_benchmark_forward.4} parent=11 // pred_check
        %p165 = pneg %p79
      $region18: #{maskrcnn_benchmark_forward.4} parent=11 // pred_check_branch
        %167 = sbr.rel (%p165) target = $region20
      $region19: #{maskrcnn_benchmark_forward.4} parent=11 // pred_region
        _
      $region20: #{maskrcnn_benchmark_forward.4} parent=11 // pred_fallthru
        _
      // Predicated region
      $region21: #{maskrcnn_benchmark_forward.4} parent=11 // pred_check
        %p168 = pneg %p100
      $region22: #{maskrcnn_benchmark_forward.4} parent=11 // pred_check_branch
        %170 = sbr.rel (%p168) target = $region24
      $region23: #{maskrcnn_benchmark_forward.4} parent=11 // pred_region
        _
      $region24: #{maskrcnn_benchmark_forward.4} parent=11 // pred_fallthru
        _
      // Predicated region
      $region25: #{maskrcnn_benchmark_forward.4} parent=11 // pred_check
        %p171 = pneg %p121
      $region26: #{maskrcnn_benchmark_forward.4} parent=11 // pred_check_branch
        %173 = sbr.rel (%p171) target = $region28
      $region27: #{maskrcnn_benchmark_forward.4} parent=11 // pred_region
        _
      $region28: #{maskrcnn_benchmark_forward.4} parent=11 // pred_fallthru
        _
    $region12: #{maskrcnn_benchmark_forward.4} parent=5 // pred_fallthru
      _
    %p174 = scmp.lt.s32.totalorder %s11, 2
    // Predicated region
    $region29: #{maskrcnn_benchmark_forward.4} parent=5 // pred_check
      %p175 = pneg %p174
    $region30: #{maskrcnn_benchmark_forward.4} parent=5 // pred_check_branch
      %177 = sbr.rel (%p175) target = $region32
    $region31: #{maskrcnn_benchmark_forward.4} parent=5 // pred_region
      // Predicated region
      $region33: #{maskrcnn_benchmark_forward.4} parent=31 // pred_check
        %p178 = pneg %p31
      $region34: #{maskrcnn_benchmark_forward.4} parent=31 // pred_check_branch
        %180 = sbr.rel (%p178) target = $region36
      $region35: #{maskrcnn_benchmark_forward.4} parent=31 // pred_region
        %s181 = smul.u32 32, %s11
        %p182 = scmp.lt.s32.totalorder %s181, 63
        %s183 = scalar_select %p182, %s181, 63
        %s184 = smul.addr %s183, 3
        %s185 = smul.addr %s184, 4
        %s186 = scalar_lea.vmem %s0, %s185
        %s187 = smul.u32 32, %s11
      $region36: #{maskrcnn_benchmark_forward.4} parent=31 // pred_fallthru
        _
    $region32: #{maskrcnn_benchmark_forward.4} parent=5 // pred_fallthru
      _
    %p188 = scmp.le.s32.totalorder 1, %s11
    %p189 = scmp.lt.s32.totalorder %s11, 3
    %p190 = pnand %p188, %p189
    %p191 = pneg %p190
    // Predicated region
    $region37: #{maskrcnn_benchmark_forward.4} parent=5 // pred_check
      _
    $region38: #{maskrcnn_benchmark_forward.4} parent=5 // pred_check_branch
      %193 = sbr.rel (%p190) target = $region40
    $region39: #{maskrcnn_benchmark_forward.4} parent=5 // pred_region
      %s194 = ssub.s32 %s11, 1
      %s195 = smul.u32 32, %s16
      %p196 = scmp.lt.s32.totalorder %s195, 63
      %s197 = scalar_select %p196, %s195, 63
      %s198 = smul.addr %s197, 3
      %s199 = smul.addr %s198, 4
      %s200 = scalar_lea.vmem %s0, %s199
      %p201 = pneg %p37
      %p202 = pneg %p34
      %p203 = pneg %p58
      %p204 = pneg %p55
      %p205 = pneg %p79
      %p206 = pneg %p76
      %p207 = pneg %p100
      %p208 = pneg %p97
      %p209 = pneg %p121
      %p210 = pneg %p118
      %p211 = pneg %p147
      %p212 = pneg %p144
      %s213 = smul.u32 32, %s16
      %p214 = scmp.lt.s32.totalorder %s213, 63
      %s215 = scalar_select %p214, %s213, 63
      %s216 = smul.addr %s215, 8
      %s217 = scalar_lea.vmem %s5, %s216
      %s218 = smul.u32 32, %s16
      %p219 = scmp.lt.s32.totalorder %s218, 63
      %s220 = scalar_select %p219, %s218, 63
      %s221 = smul.addr %s220, 3
      %s222 = smul.addr %s221, 4
      %s223 = scalar_lea.vmem %s0, %s222
      %s224 = smul.u32 32, %s16
      %s225 = smul.u32 32, %s16
      %p226 = scmp.lt.s32.totalorder %s225, 63
      %s227 = scalar_select %p226, %s225, 63
      %s228 = smul.addr %s227, 8
      %s229 = scalar_lea.vmem %s5, %s228
      %s230 = smul.u32 32, %s16
      %v232 = vld [vmem:[%s223] sm:$0xff]
      %v233 = vld [vmem:[%s223 + $0x8] sm:$0xf]
      %v234 = vld [vmem:[%s223 + $0xc] sm:$0xff]
      %v235 = vld [vmem:[%s223 + $0x14] sm:$0xf]
      %v236 = vld [vmem:[%s223 + $0x18] sm:$0xff]
      %v237 = vld [vmem:[%s223 + $0x20] sm:$0xf]
      %v238 = vld [vmem:[%s223 + $0x24] sm:$0xff]
      %v239 = vld [vmem:[%s223 + $0x2c] sm:$0xf]
      %v240 = vld [vmem:[%s223 + $0x30] sm:$0xff]
      %v241 = vld [vmem:[%s223 + $0x38] sm:$0xf]
      %v242 = vld [vmem:[%s223 + $0x3c] sm:$0xff]
      %v243 = vld [vmem:[%s223 + $0x44] sm:$0xf]
      %v244 = vld [vmem:[%s223 + $0x48] sm:$0xff]
      %v245 = vld [vmem:[%s223 + $0x50] sm:$0xf]
      %v246 = vld [vmem:[%s223 + $0x54] sm:$0xff]
      %v247 = vld [vmem:[%s223 + $0x5c] sm:$0xf]
      %v248 = vld [vmem:[%s223 + $0x60] sm:$0xff]
      %v249 = vld [vmem:[%s223 + $0x68] sm:$0xf]
      %v250 = vld [vmem:[%s223 + $0x6c] sm:$0xff]
      %v251 = vld [vmem:[%s223 + $0x74] sm:$0xf]
      %v252 = vld [vmem:[%s223 + $0x78] sm:$0xff]
      %v253 = vld [vmem:[%s223 + $0x80] sm:$0xf]
      %v254 = vld [vmem:[%s223 + $0x84] sm:$0xff]
      %v255 = vld [vmem:[%s223 + $0x8c] sm:$0xf]
      %v256 = vld [vmem:[%s223 + $0x90] sm:$0xff]
      %v257 = vld [vmem:[%s223 + $0x98] sm:$0xf]
      %v258 = vld [vmem:[%s223 + $0x9c] sm:$0xff]
      %v259 = vld [vmem:[%s223 + $0xa4] sm:$0xf]
      %v260 = vld [vmem:[%s223 + $0xa8] sm:$0xff]
      %v261 = vld [vmem:[%s223 + $0xb0] sm:$0xf]
      %v262 = vld [vmem:[%s223 + $0xb4] sm:$0xff]
      %v263 = vld [vmem:[%s223 + $0xbc] sm:$0xf]
      %v264 = vld [vmem:[%s223 + $0xc0] sm:$0xff]
      %v265 = vld [vmem:[%s223 + $0xc8] sm:$0xf]
      %v266 = vld [vmem:[%s223 + $0xcc] sm:$0xff]
      %v267 = vld [vmem:[%s223 + $0xd4] sm:$0xf]
      %v268 = vld [vmem:[%s223 + $0xd8] sm:$0xff]
      %v269 = vld [vmem:[%s223 + $0xe0] sm:$0xf]
      %v270 = vld [vmem:[%s223 + $0xe4] sm:$0xff]
      %v271 = vld [vmem:[%s223 + $0xec] sm:$0xf]
      %v272 = vld [vmem:[%s223 + $0xf0] sm:$0xff]
      %v273 = vld [vmem:[%s223 + $0xf8] sm:$0xf]
      %v274 = vld [vmem:[%s223 + $0xfc] sm:$0xff]
      %v275 = vld [vmem:[%s223 + $0x104] sm:$0xf]
      %v276 = vld [vmem:[%s223 + $0x108] sm:$0xff]
      %v277 = vld [vmem:[%s223 + $0x110] sm:$0xf]
      %v278 = vld [vmem:[%s223 + $0x114] sm:$0xff]
      %v279 = vld [vmem:[%s223 + $0x11c] sm:$0xf]
      %v280 = vld [vmem:[%s223 + $0x120] sm:$0xff]
      %v281 = vld [vmem:[%s223 + $0x128] sm:$0xf]
      %v282 = vld [vmem:[%s223 + $0x12c] sm:$0xff]
      %v283 = vld [vmem:[%s223 + $0x134] sm:$0xf]
      %v284 = vld [vmem:[%s223 + $0x138] sm:$0xff]
      %v285 = vld [vmem:[%s223 + $0x140] sm:$0xf]
      %v286 = vld [vmem:[%s223 + $0x144] sm:$0xff]
      %v287 = vld [vmem:[%s223 + $0x14c] sm:$0xf]
      %v288 = vld [vmem:[%s223 + $0x150] sm:$0xff]
      %v289 = vld [vmem:[%s223 + $0x158] sm:$0xf]
      %v290 = vld [vmem:[%s223 + $0x15c] sm:$0xff]
      %v291 = vld [vmem:[%s223 + $0x164] sm:$0xf]
      %v292 = vld [vmem:[%s223 + $0x168] sm:$0xff]
      %v293 = vld [vmem:[%s223 + $0x170] sm:$0xf]
      %v294 = vld [vmem:[%s223 + $0x174] sm:$0xff]
      %v295 = vld [vmem:[%s223 + $0x17c] sm:$0xf]
      %v296 = vld [vmem:[%s1] sm:$0xf]
      %v297 = vld [vmem:[%s1 + $0x4] sm:$0xf]
      %v298 = vld [vmem:[%s1 + $0x8] sm:$0xf]
      %v299 = vld [vmem:[%s1 + $0xc] sm:$0xf]
      %v300 = vld [vmem:[%s1 + $0x10] sm:$0xf]
      %v301 = vld [vmem:[%s1 + $0x14] sm:$0xf]
      %v302 = vld [vmem:[%s1 + $0x18] sm:$0xf]
      %v303 = vld [vmem:[%s1 + $0x1c] sm:$0xf]
      %v304 = vld [vmem:[%s1 + $0x20] sm:$0xf]
      %v305 = vld [vmem:[%s1 + $0x24] sm:$0xf]
      %v306 = vld [vmem:[%s1 + $0x28] sm:$0xf]
      %v307 = vld [vmem:[%s1 + $0x2c] sm:$0xf]
      %v308 = vld [vmem:[%s1 + $0x30] sm:$0xf]
      %v309 = vld [vmem:[%s1 + $0x34] sm:$0xf]
      %v310 = vld [vmem:[%s1 + $0x38] sm:$0xf]
      %v311 = vld [vmem:[%s1 + $0x3c] sm:$0xf]
      %v312 = vld [vmem:[%s1 + $0x40] sm:$0xf]
      %v313 = vld [vmem:[%s1 + $0x44] sm:$0xf]
      %v314 = vld [vmem:[%s1 + $0x48] sm:$0xf]
      %v315 = vld [vmem:[%s1 + $0x4c] sm:$0xf]
      %v316 = vld [vmem:[%s1 + $0x50] sm:$0xf]
      %v317 = vld [vmem:[%s1 + $0x54] sm:$0xf]
      %v318 = vld [vmem:[%s1 + $0x58] sm:$0xf]
      %v319 = vld [vmem:[%s1 + $0x5c] sm:$0xf]
      %v320 = vld [vmem:[%s1 + $0x60] sm:$0xf]
      %v321 = vld [vmem:[%s1 + $0x64] sm:$0xf]
      %v322 = vld [vmem:[%s1 + $0x68] sm:$0xf]
      %v323 = vld [vmem:[%s1 + $0x6c] sm:$0xf]
      %v324 = vld [vmem:[%s1 + $0x70] sm:$0xf]
      %v325 = vld [vmem:[%s1 + $0x74] sm:$0xf]
      %v326 = vld [vmem:[%s1 + $0x78] sm:$0xf]
      %v327 = vld [vmem:[%s1 + $0x7c] sm:$0xf]
      %v328 = vld [vmem:[%s1 + $0x80] sm:$0xf]
      %v329 = vld [vmem:[%s1 + $0x84] sm:$0xf]
      %v330 = vld [vmem:[%s1 + $0x88] sm:$0xf]
      %v331 = vld [vmem:[%s1 + $0x8c] sm:$0xf]
      %v332 = vld [vmem:[%s2] sm:$0x1]
      %v334 = vlaneseq
      %v335 = vshrl.u32 %v334, 7
      %v336 = vsub.s32 0, %v335
      %v337 = vrot.slane %v332, %v336
      %v403 = vunpack.c.l.b16 %v232
      %v404 = vunpack.c.h.b16 %v232
      %v405 = vunpack.c.l.b16 %v233
      %v406 = vunpack.c.l.b16 %v234
      %v407 = vunpack.c.h.b16 %v234
      %v408 = vunpack.c.l.b16 %v235
      %v409 = vunpack.c.l.b16 %v236
      %v410 = vunpack.c.h.b16 %v236
      %v411 = vunpack.c.l.b16 %v237
      %v412 = vunpack.c.l.b16 %v238
      %v413 = vunpack.c.h.b16 %v238
      %v414 = vunpack.c.l.b16 %v239
      %v415 = vunpack.c.l.b16 %v240
      %v416 = vunpack.c.h.b16 %v240
      %v417 = vunpack.c.l.b16 %v241
      %v418 = vunpack.c.l.b16 %v242
      %v419 = vunpack.c.h.b16 %v242
      %v420 = vunpack.c.l.b16 %v243
      %v421 = vunpack.c.l.b16 %v244
      %v422 = vunpack.c.h.b16 %v244
      %v423 = vunpack.c.l.b16 %v245
      %v424 = vunpack.c.l.b16 %v246
      %v425 = vunpack.c.h.b16 %v246
      %v426 = vunpack.c.l.b16 %v247
      %v427 = vunpack.c.l.b16 %v248
      %v428 = vunpack.c.h.b16 %v248
      %v429 = vunpack.c.l.b16 %v249
      %v430 = vunpack.c.l.b16 %v250
      %v431 = vunpack.c.h.b16 %v250
      %v432 = vunpack.c.l.b16 %v251
      %v433 = vunpack.c.l.b16 %v252
      %v434 = vunpack.c.h.b16 %v252
      %v435 = vunpack.c.l.b16 %v253
      %v436 = vunpack.c.l.b16 %v254
      %v437 = vunpack.c.h.b16 %v254
      %v438 = vunpack.c.l.b16 %v255
      %v439 = vunpack.c.l.b16 %v256
      %v440 = vunpack.c.h.b16 %v256
      %v441 = vunpack.c.l.b16 %v257
      %v442 = vunpack.c.l.b16 %v258
      %v443 = vunpack.c.h.b16 %v258
      %v444 = vunpack.c.l.b16 %v259
      %v445 = vunpack.c.l.b16 %v260
      %v446 = vunpack.c.h.b16 %v260
      %v447 = vunpack.c.l.b16 %v261
      %v448 = vunpack.c.l.b16 %v262
      %v449 = vunpack.c.h.b16 %v262
      %v450 = vunpack.c.l.b16 %v263
      %v451 = vunpack.c.l.b16 %v264
      %v452 = vunpack.c.h.b16 %v264
      %v453 = vunpack.c.l.b16 %v265
      %v454 = vunpack.c.l.b16 %v266
      %v455 = vunpack.c.h.b16 %v266
      %v456 = vunpack.c.l.b16 %v267
      %v457 = vunpack.c.l.b16 %v268
      %v458 = vunpack.c.h.b16 %v268
      %v459 = vunpack.c.l.b16 %v269
      %v460 = vunpack.c.l.b16 %v270
      %v461 = vunpack.c.h.b16 %v270
      %v462 = vunpack.c.l.b16 %v271
      %v463 = vunpack.c.l.b16 %v272
      %v464 = vunpack.c.h.b16 %v272
      %v465 = vunpack.c.l.b16 %v273
      %v466 = vunpack.c.l.b16 %v274
      %v467 = vunpack.c.h.b16 %v274
      %v468 = vunpack.c.l.b16 %v275
      %v469 = vunpack.c.l.b16 %v276
      %v470 = vunpack.c.h.b16 %v276
      %v471 = vunpack.c.l.b16 %v277
      %v472 = vunpack.c.l.b16 %v278
      %v473 = vunpack.c.h.b16 %v278
      %v474 = vunpack.c.l.b16 %v279
      %v475 = vunpack.c.l.b16 %v280
      %v476 = vunpack.c.h.b16 %v280
      %v477 = vunpack.c.l.b16 %v281
      %v478 = vunpack.c.l.b16 %v282
      %v479 = vunpack.c.h.b16 %v282
      %v480 = vunpack.c.l.b16 %v283
      %v481 = vunpack.c.l.b16 %v284
      %v482 = vunpack.c.h.b16 %v284
      %v483 = vunpack.c.l.b16 %v285
      %v484 = vunpack.c.l.b16 %v286
      %v485 = vunpack.c.h.b16 %v286
      %v486 = vunpack.c.l.b16 %v287
      %v487 = vunpack.c.l.b16 %v288
      %v488 = vunpack.c.h.b16 %v288
      %v489 = vunpack.c.l.b16 %v289
      %v490 = vunpack.c.l.b16 %v290
      %v491 = vunpack.c.h.b16 %v290
      %v492 = vunpack.c.l.b16 %v291
      %v493 = vunpack.c.l.b16 %v292
      %v494 = vunpack.c.h.b16 %v292
      %v495 = vunpack.c.l.b16 %v293
      %v496 = vunpack.c.l.b16 %v294
      %v497 = vunpack.c.h.b16 %v294
      %v498 = vunpack.c.l.b16 %v295
      %v499 = vpack.c.b16 %v406, %v403
      %v500 = vpack.c.b16 %v407, %v404
      %v501 = vpack.c.b16 %v408, %v405
      %v502 = vpack.c.b16 %v412, %v409
      %v503 = vpack.c.b16 %v413, %v410
      %v504 = vpack.c.b16 %v414, %v411
      %v505 = vpack.c.b16 %v418, %v415
      %v506 = vpack.c.b16 %v419, %v416
      %v507 = vpack.c.b16 %v420, %v417
      %v508 = vpack.c.b16 %v424, %v421
      %v509 = vpack.c.b16 %v425, %v422
      %v510 = vpack.c.b16 %v426, %v423
      %v511 = vpack.c.b16 %v430, %v427
      %v512 = vpack.c.b16 %v431, %v428
      %v513 = vpack.c.b16 %v432, %v429
      %v514 = vpack.c.b16 %v436, %v433
      %v515 = vpack.c.b16 %v437, %v434
      %v516 = vpack.c.b16 %v438, %v435
      %v517 = vpack.c.b16 %v442, %v439
      %v518 = vpack.c.b16 %v443, %v440
      %v519 = vpack.c.b16 %v444, %v441
      %v520 = vpack.c.b16 %v448, %v445
      %v521 = vpack.c.b16 %v449, %v446
      %v522 = vpack.c.b16 %v450, %v447
      %v523 = vpack.c.b16 %v454, %v451
      %v524 = vpack.c.b16 %v455, %v452
      %v525 = vpack.c.b16 %v456, %v453
      %v526 = vpack.c.b16 %v460, %v457
      %v527 = vpack.c.b16 %v461, %v458
      %v528 = vpack.c.b16 %v462, %v459
      %v529 = vpack.c.b16 %v466, %v463
      %v530 = vpack.c.b16 %v467, %v464
      %v531 = vpack.c.b16 %v468, %v465
      %v532 = vpack.c.b16 %v472, %v469
      %v533 = vpack.c.b16 %v473, %v470
      %v534 = vpack.c.b16 %v474, %v471
      %v535 = vpack.c.b16 %v478, %v475
      %v536 = vpack.c.b16 %v479, %v476
      %v537 = vpack.c.b16 %v480, %v477
      %v538 = vpack.c.b16 %v484, %v481
      %v539 = vpack.c.b16 %v485, %v482
      %v540 = vpack.c.b16 %v486, %v483
      %v541 = vpack.c.b16 %v490, %v487
      %v542 = vpack.c.b16 %v491, %v488
      %v543 = vpack.c.b16 %v492, %v489
      %v544 = vpack.c.b16 %v496, %v493
      %v545 = vpack.c.b16 %v497, %v494
      %v546 = vpack.c.b16 %v498, %v495
      %v615 = vunpack.c.l.b16 %v296
      %v616 = vunpack.c.l.b16 %v297
      %v617 = vunpack.c.l.b16 %v298
      %v618 = vunpack.c.l.b16 %v299
      %v619 = vunpack.c.l.b16 %v300
      %v620 = vunpack.c.l.b16 %v301
      %v621 = vunpack.c.l.b16 %v302
      %v622 = vunpack.c.l.b16 %v303
      %v623 = vunpack.c.l.b16 %v304
      %v624 = vunpack.c.l.b16 %v305
      %v625 = vunpack.c.l.b16 %v306
      %v626 = vunpack.c.l.b16 %v307
      %v627 = vunpack.c.l.b16 %v308
      %v628 = vunpack.c.l.b16 %v309
      %v629 = vunpack.c.l.b16 %v310
      %v630 = vunpack.c.l.b16 %v311
      %v631 = vunpack.c.l.b16 %v312
      %v632 = vunpack.c.l.b16 %v313
      %v633 = vunpack.c.l.b16 %v314
      %v634 = vunpack.c.l.b16 %v315
      %v635 = vunpack.c.l.b16 %v316
      %v636 = vunpack.c.l.b16 %v317
      %v637 = vunpack.c.l.b16 %v318
      %v638 = vunpack.c.l.b16 %v319
      %v639 = vunpack.c.l.b16 %v320
      %v640 = vunpack.c.l.b16 %v321
      %v641 = vunpack.c.l.b16 %v322
      %v642 = vunpack.c.l.b16 %v323
      %v643 = vunpack.c.l.b16 %v324
      %v644 = vunpack.c.l.b16 %v325
      %v645 = vunpack.c.l.b16 %v326
      %v646 = vunpack.c.l.b16 %v327
      %v647 = vunpack.c.l.b16 %v328
      %v648 = vunpack.c.l.b16 %v329
      %v649 = vunpack.c.l.b16 %v330
      %v650 = vunpack.c.l.b16 %v331
      %v651 = vpack.c.b16 %v616, %v615
      %v652 = vpack.c.b16 %v618, %v617
      %v653 = vpack.c.b16 %v620, %v619
      %v654 = vpack.c.b16 %v622, %v621
      %v655 = vpack.c.b16 %v624, %v623
      %v656 = vpack.c.b16 %v626, %v625
      %v657 = vpack.c.b16 %v628, %v627
      %v658 = vpack.c.b16 %v630, %v629
      %v659 = vpack.c.b16 %v632, %v631
      %v660 = vpack.c.b16 %v634, %v633
      %v661 = vpack.c.b16 %v636, %v635
      %v662 = vpack.c.b16 %v638, %v637
      %v663 = vpack.c.b16 %v640, %v639
      %v664 = vpack.c.b16 %v642, %v641
      %v665 = vpack.c.b16 %v644, %v643
      %v666 = vpack.c.b16 %v646, %v645
      %v667 = vpack.c.b16 %v648, %v647
      %v668 = vpack.c.b16 %v650, %v649
      %vm687 = vcmask 261120
      %v689 = vsel %vm687, %v501, 0
      %v692 = vsel %vm687, %v504, 0
      %v695 = vsel %vm687, %v507, 0
      %v698 = vsel %vm687, %v510, 0
      %v701 = vsel %vm687, %v513, 0
      %v704 = vsel %vm687, %v516, 0
      %v707 = vsel %vm687, %v519, 0
      %v710 = vsel %vm687, %v522, 0
      %v713 = vsel %vm687, %v525, 0
      %v716 = vsel %vm687, %v528, 0
      %v719 = vsel %vm687, %v531, 0
      %v722 = vsel %vm687, %v534, 0
      %v725 = vsel %vm687, %v537, 0
      %v728 = vsel %vm687, %v540, 0
      %v731 = vsel %vm687, %v543, 0
      %v734 = vsel %vm687, %v546, 0
      %736 = vmatprep.subr.bf16.mxu0 0
      %737 = vmatpush1.bf16.msra.mxu0 %v658
      %738 = vmatprep.subr.bf16.mxu0 0
      %739 = vmatpush1.bf16.msra.mxu0 %v657
      %740 = vmatprep.subr.bf16.mxu0 0
      %741 = vmatpush1.bf16.msra.mxu0 %v656
      %742 = vmatprep.subr.bf16.mxu0 0
      %743 = vmatpush1.bf16.msra.mxu0 %v655
      %744 = vmatprep.subr.bf16.mxu0 0
      %745 = vmatpush1.bf16.msra.mxu0 %v654
      %746 = vmatprep.subr.bf16.mxu0 0
      %747 = vmatpush1.bf16.msra.mxu0 %v653
      %748 = vmatprep.subr.bf16.mxu0 0
      %749 = vmatpush1.bf16.msra.mxu0 %v652
      %750 = vmatprep.subr.bf16.mxu0 0
      %751 = vmatpush1.bf16.msra.mxu0 %v651
      %752 = vmatprep.subr.bf16.mxu0 0
      %753 = vmatpush2.bf16.msra.mxu0 %v666
      %754 = vmatprep.subr.bf16.mxu0 0
      %755 = vmatpush2.bf16.msra.mxu0 %v665
      %756 = vmatprep.subr.bf16.mxu0 0
      %757 = vmatpush2.bf16.msra.mxu0 %v664
      %758 = vmatprep.subr.bf16.mxu0 0
      %759 = vmatpush2.bf16.msra.mxu0 %v663
      %760 = vmatprep.subr.bf16.mxu0 0
      %761 = vmatpush2.bf16.msra.mxu0 %v662
      %762 = vmatprep.subr.bf16.mxu0 0
      %763 = vmatpush2.bf16.msra.mxu0 %v661
      %764 = vmatprep.subr.bf16.mxu0 0
      %765 = vmatpush2.bf16.msra.mxu0 %v660
      %766 = vmatprep.subr.bf16.mxu0 0
      %767 = vmatpush2.bf16.msra.mxu0 %v659
      %768 = vmatprep.mubr.bf16.mxu0 %v500
      %769 = vmatmul.mubr.bf16.gmra.mxu0 %v499
      %v770 = vpop.f32.mrf.mxu0
      %v771 = vadd.f32 %v337, %v770
      %v772 = vpop.f32.mrf.mxu0
      %v773 = vpop.f32.mrf.mxu0
      %v774 = vadd.f32 %v337, %v773
      %v775 = vpop.f32.mrf.mxu0
      %776 = vmatprep.mubr.bf16.mxu0 %v503
      %777 = vmatmul.mubr.bf16.gmra.mxu0 %v502
      %v778 = vpop.f32.mrf.mxu0
      %v779 = vadd.f32 %v337, %v778
      %v780 = vpop.f32.mrf.mxu0
      %v781 = vpop.f32.mrf.mxu0
      %v782 = vadd.f32 %v337, %v781
      %v783 = vpop.f32.mrf.mxu0
      %784 = vmatprep.mubr.bf16.mxu0 %v506
      %785 = vmatmul.mubr.bf16.gmra.mxu0 %v505
      %v786 = vpop.f32.mrf.mxu0
      %v787 = vadd.f32 %v337, %v786
      %v788 = vpop.f32.mrf.mxu0
      %v789 = vpop.f32.mrf.mxu0
      %v790 = vadd.f32 %v337, %v789
      %v791 = vpop.f32.mrf.mxu0
      %792 = vmatprep.mubr.bf16.mxu0 %v509
      %793 = vmatmul.mubr.bf16.gmra.mxu0 %v508
      %v794 = vpop.f32.mrf.mxu0
      %v795 = vadd.f32 %v337, %v794
      %v796 = vpop.f32.mrf.mxu0
      %v797 = vpop.f32.mrf.mxu0
      %v798 = vadd.f32 %v337, %v797
      %v799 = vpop.f32.mrf.mxu0
      %800 = vmatprep.mubr.bf16.mxu0 %v512
      %801 = vmatmul.mubr.bf16.gmra.mxu0 %v511
      %v802 = vpop.f32.mrf.mxu0
      %v803 = vadd.f32 %v337, %v802
      %v804 = vpop.f32.mrf.mxu0
      %v805 = vpop.f32.mrf.mxu0
      %v806 = vadd.f32 %v337, %v805
      %v807 = vpop.f32.mrf.mxu0
      %808 = vmatprep.mubr.bf16.mxu0 %v515
      %809 = vmatmul.mubr.bf16.gmra.mxu0 %v514
      %v810 = vpop.f32.mrf.mxu0
      %v811 = vadd.f32 %v337, %v810
      %v812 = vpop.f32.mrf.mxu0
      %v813 = vpop.f32.mrf.mxu0
      %v814 = vadd.f32 %v337, %v813
      %v815 = vpop.f32.mrf.mxu0
      %816 = vmatprep.mubr.bf16.mxu0 %v518
      %817 = vmatmul.mubr.bf16.gmra.mxu0 %v517
      %v818 = vpop.f32.mrf.mxu0
      %v819 = vadd.f32 %v337, %v818
      %v820 = vpop.f32.mrf.mxu0
      %v821 = vpop.f32.mrf.mxu0
      %v822 = vadd.f32 %v337, %v821
      %v823 = vpop.f32.mrf.mxu0
      %824 = vmatprep.mubr.bf16.mxu0 %v521
      %825 = vmatmul.mubr.bf16.gmra.mxu0 %v520
      %v826 = vpop.f32.mrf.mxu0
      %v827 = vadd.f32 %v337, %v826
      %v828 = vpop.f32.mrf.mxu0
      %v829 = vpop.f32.mrf.mxu0
      %v830 = vadd.f32 %v337, %v829
      %v831 = vpop.f32.mrf.mxu0
      %832 = vmatprep.mubr.bf16.mxu0 %v524
      %833 = vmatmul.mubr.bf16.gmra.mxu0 %v523
      %v834 = vpop.f32.mrf.mxu0
      %v835 = vadd.f32 %v337, %v834
      %v836 = vpop.f32.mrf.mxu0
      %v837 = vpop.f32.mrf.mxu0
      %v838 = vadd.f32 %v337, %v837
      %v839 = vpop.f32.mrf.mxu0
      %840 = vmatprep.mubr.bf16.mxu0 %v527
      %841 = vmatmul.mubr.bf16.gmra.mxu0 %v526
      %v842 = vpop.f32.mrf.mxu0
      %v843 = vadd.f32 %v337, %v842
      %v844 = vpop.f32.mrf.mxu0
      %v845 = vpop.f32.mrf.mxu0
      %v846 = vadd.f32 %v337, %v845
      %v847 = vpop.f32.mrf.mxu0
      %848 = vmatprep.mubr.bf16.mxu0 %v530
      %849 = vmatmul.mubr.bf16.gmra.mxu0 %v529
      %v850 = vpop.f32.mrf.mxu0
      %v851 = vadd.f32 %v337, %v850
      %v852 = vpop.f32.mrf.mxu0
      %v853 = vpop.f32.mrf.mxu0
      %v854 = vadd.f32 %v337, %v853
      %v855 = vpop.f32.mrf.mxu0
      %856 = vmatprep.mubr.bf16.mxu0 %v533
      %857 = vmatmul.mubr.bf16.gmra.mxu0 %v532
      %v858 = vpop.f32.mrf.mxu0
      %v859 = vadd.f32 %v337, %v858
      %v860 = vpop.f32.mrf.mxu0
      %v861 = vpop.f32.mrf.mxu0
      %v862 = vadd.f32 %v337, %v861
      %v863 = vpop.f32.mrf.mxu0
      %864 = vmatprep.mubr.bf16.mxu0 %v536
      %865 = vmatmul.mubr.bf16.gmra.mxu0 %v535
      %v866 = vpop.f32.mrf.mxu0
      %v867 = vadd.f32 %v337, %v866
      %v868 = vpop.f32.mrf.mxu0
      %v869 = vpop.f32.mrf.mxu0
      %v870 = vadd.f32 %v337, %v869
      %v871 = vpop.f32.mrf.mxu0
      %872 = vmatprep.mubr.bf16.mxu0 %v539
      %873 = vmatmul.mubr.bf16.gmra.mxu0 %v538
      %v874 = vpop.f32.mrf.mxu0
      %v875 = vadd.f32 %v337, %v874
      %v876 = vpop.f32.mrf.mxu0
      %v877 = vpop.f32.mrf.mxu0
      %v878 = vadd.f32 %v337, %v877
      %v879 = vpop.f32.mrf.mxu0
      %880 = vmatprep.mubr.bf16.mxu0 %v542
      %881 = vmatmul.mubr.bf16.gmra.mxu0 %v541
      %v882 = vpop.f32.mrf.mxu0
      %v883 = vadd.f32 %v337, %v882
      %v884 = vpop.f32.mrf.mxu0
      %v885 = vpop.f32.mrf.mxu0
      %v886 = vadd.f32 %v337, %v885
      %v887 = vpop.f32.mrf.mxu0
      %888 = vmatprep.mubr.bf16.mxu0 %v545
      %889 = vmatmul.mubr.bf16.gmra.mxu0 %v544
      %v890 = vpop.f32.mrf.mxu0
      %v891 = vadd.f32 %v337, %v890
      %v892 = vpop.f32.mrf.mxu0
      %v893 = vpop.f32.mrf.mxu0
      %v894 = vadd.f32 %v337, %v893
      %v895 = vpop.f32.mrf.mxu0
      %896 = vdwg.mxu0
      %897 = vmatprep.subr.bf16.mxu0 0
      %898 = vmatpush1.bf16.msra.mxu0 0
      %899 = vmatprep.subr.bf16.mxu0 0
      %900 = vmatpush1.bf16.msra.mxu0 0
      %901 = vmatprep.subr.bf16.mxu0 0
      %902 = vmatpush1.bf16.msra.mxu0 0
      %903 = vmatprep.subr.bf16.mxu0 0
      %904 = vmatpush1.bf16.msra.mxu0 0
      %905 = vmatprep.subr.bf16.mxu0 0
      %906 = vmatpush1.bf16.msra.mxu0 0
      %907 = vmatprep.subr.bf16.mxu0 0
      %908 = vmatpush1.bf16.msra.mxu0 0
      %909 = vmatprep.subr.bf16.mxu0 0
      %910 = vmatpush1.bf16.msra.mxu0 %v668
      %911 = vmatprep.subr.bf16.mxu0 0
      %912 = vmatpush1.bf16.msra.mxu0 %v667
      %913 = vmatprep.subr.bf16.mxu0 0
      %914 = vmatpush2.bf16.msra.mxu0 0
      %915 = vmatprep.subr.bf16.mxu0 0
      %916 = vmatpush2.bf16.msra.mxu0 0
      %917 = vmatprep.subr.bf16.mxu0 0
      %918 = vmatpush2.bf16.msra.mxu0 0
      %919 = vmatprep.subr.bf16.mxu0 0
      %920 = vmatpush2.bf16.msra.mxu0 0
      %921 = vmatprep.subr.bf16.mxu0 0
      %922 = vmatpush2.bf16.msra.mxu0 0
      %923 = vmatprep.subr.bf16.mxu0 0
      %924 = vmatpush2.bf16.msra.mxu0 0
      %925 = vmatprep.subr.bf16.mxu0 0
      %926 = vmatpush2.bf16.msra.mxu0 0
      %927 = vmatprep.subr.bf16.mxu0 0
      %928 = vmatpush2.bf16.msra.mxu0 0
      %929 = vmatprep.mubr.bf16.mxu0 0
      %930 = vmatmul.mubr.bf16.gmra.mxu0 %v689
      %v931 = vpop.f32.mrf.mxu0
      %v932 = vadd.f32 %v771, %v931
      %v933 = vpop.f32.mrf.mxu0
      %v934 = vpop.f32.mrf.mxu0
      %v935 = vadd.f32 %v774, %v934
      %v936 = vpop.f32.mrf.mxu0
      %937 = vmatprep.mubr.bf16.mxu0 0
      %938 = vmatmul.mubr.bf16.gmra.mxu0 %v692
      %v939 = vpop.f32.mrf.mxu0
      %v940 = vadd.f32 %v779, %v939
      %v941 = vpop.f32.mrf.mxu0
      %v942 = vpop.f32.mrf.mxu0
      %v943 = vadd.f32 %v782, %v942
      %v944 = vpop.f32.mrf.mxu0
      %945 = vmatprep.mubr.bf16.mxu0 0
      %946 = vmatmul.mubr.bf16.gmra.mxu0 %v695
      %v947 = vpop.f32.mrf.mxu0
      %v948 = vadd.f32 %v787, %v947
      %v949 = vpop.f32.mrf.mxu0
      %v950 = vpop.f32.mrf.mxu0
      %v951 = vadd.f32 %v790, %v950
      %v952 = vpop.f32.mrf.mxu0
      %953 = vmatprep.mubr.bf16.mxu0 0
      %954 = vmatmul.mubr.bf16.gmra.mxu0 %v698
      %v955 = vpop.f32.mrf.mxu0
      %v956 = vadd.f32 %v795, %v955
      %v957 = vpop.f32.mrf.mxu0
      %v958 = vpop.f32.mrf.mxu0
      %v959 = vadd.f32 %v798, %v958
      %v960 = vpop.f32.mrf.mxu0
      %961 = vmatprep.mubr.bf16.mxu0 0
      %962 = vmatmul.mubr.bf16.gmra.mxu0 %v701
      %v963 = vpop.f32.mrf.mxu0
      %v964 = vadd.f32 %v803, %v963
      %v965 = vpop.f32.mrf.mxu0
      %v966 = vpop.f32.mrf.mxu0
      %v967 = vadd.f32 %v806, %v966
      %v968 = vpop.f32.mrf.mxu0
      %969 = vmatprep.mubr.bf16.mxu0 0
      %970 = vmatmul.mubr.bf16.gmra.mxu0 %v704
      %v971 = vpop.f32.mrf.mxu0
      %v972 = vadd.f32 %v811, %v971
      %v973 = vpop.f32.mrf.mxu0
      %v974 = vpop.f32.mrf.mxu0
      %v975 = vadd.f32 %v814, %v974
      %v976 = vpop.f32.mrf.mxu0
      %977 = vmatprep.mubr.bf16.mxu0 0
      %978 = vmatmul.mubr.bf16.gmra.mxu0 %v707
      %v979 = vpop.f32.mrf.mxu0
      %v980 = vadd.f32 %v819, %v979
      %v981 = vpop.f32.mrf.mxu0
      %v982 = vpop.f32.mrf.mxu0
      %v983 = vadd.f32 %v822, %v982
      %v984 = vpop.f32.mrf.mxu0
      %985 = vmatprep.mubr.bf16.mxu0 0
      %986 = vmatmul.mubr.bf16.gmra.mxu0 %v710
      %v987 = vpop.f32.mrf.mxu0
      %v988 = vadd.f32 %v827, %v987
      %v989 = vpop.f32.mrf.mxu0
      %v990 = vpop.f32.mrf.mxu0
      %v991 = vadd.f32 %v830, %v990
      %v992 = vpop.f32.mrf.mxu0
      %993 = vmatprep.mubr.bf16.mxu0 0
      %994 = vmatmul.mubr.bf16.gmra.mxu0 %v713
      %v995 = vpop.f32.mrf.mxu0
      %v996 = vadd.f32 %v835, %v995
      %v997 = vpop.f32.mrf.mxu0
      %v998 = vpop.f32.mrf.mxu0
      %v999 = vadd.f32 %v838, %v998
      %v1000 = vpop.f32.mrf.mxu0
      %1001 = vmatprep.mubr.bf16.mxu0 0
      %1002 = vmatmul.mubr.bf16.gmra.mxu0 %v716
      %v1003 = vpop.f32.mrf.mxu0
      %v1004 = vadd.f32 %v843, %v1003
      %v1005 = vpop.f32.mrf.mxu0
      %v1006 = vpop.f32.mrf.mxu0
      %v1007 = vadd.f32 %v846, %v1006
      %v1008 = vpop.f32.mrf.mxu0
      %1009 = vmatprep.mubr.bf16.mxu0 0
      %1010 = vmatmul.mubr.bf16.gmra.mxu0 %v719
      %v1011 = vpop.f32.mrf.mxu0
      %v1012 = vadd.f32 %v851, %v1011
      %v1013 = vpop.f32.mrf.mxu0
      %v1014 = vpop.f32.mrf.mxu0
      %v1015 = vadd.f32 %v854, %v1014
      %v1016 = vpop.f32.mrf.mxu0
      %1017 = vmatprep.mubr.bf16.mxu0 0
      %1018 = vmatmul.mubr.bf16.gmra.mxu0 %v722
      %v1019 = vpop.f32.mrf.mxu0
      %v1020 = vadd.f32 %v859, %v1019
      %v1021 = vpop.f32.mrf.mxu0
      %v1022 = vpop.f32.mrf.mxu0
      %v1023 = vadd.f32 %v862, %v1022
      %v1024 = vpop.f32.mrf.mxu0
      %1025 = vmatprep.mubr.bf16.mxu0 0
      %1026 = vmatmul.mubr.bf16.gmra.mxu0 %v725
      %v1027 = vpop.f32.mrf.mxu0
      %v1028 = vadd.f32 %v867, %v1027
      %v1029 = vpop.f32.mrf.mxu0
      %v1030 = vpop.f32.mrf.mxu0
      %v1031 = vadd.f32 %v870, %v1030
      %v1032 = vpop.f32.mrf.mxu0
      %1033 = vmatprep.mubr.bf16.mxu0 0
      %1034 = vmatmul.mubr.bf16.gmra.mxu0 %v728
      %v1035 = vpop.f32.mrf.mxu0
      %v1036 = vadd.f32 %v875, %v1035
      %v1037 = vpop.f32.mrf.mxu0
      %v1038 = vpop.f32.mrf.mxu0
      %v1039 = vadd.f32 %v878, %v1038
      %v1040 = vpop.f32.mrf.mxu0
      %1041 = vmatprep.mubr.bf16.mxu0 0
      %1042 = vmatmul.mubr.bf16.gmra.mxu0 %v731
      %v1043 = vpop.f32.mrf.mxu0
      %v1044 = vadd.f32 %v883, %v1043
      %v1045 = vpop.f32.mrf.mxu0
      %v1046 = vpop.f32.mrf.mxu0
      %v1047 = vadd.f32 %v886, %v1046
      %v1048 = vpop.f32.mrf.mxu0
      %1049 = vmatprep.mubr.bf16.mxu0 0
      %1050 = vmatmul.mubr.bf16.gmra.mxu0 %v734
      %v1051 = vpop.f32.mrf.mxu0
      %v1052 = vadd.f32 %v891, %v1051
      %v1053 = vpop.f32.mrf.mxu0
      %v1054 = vpop.f32.mrf.mxu0
      %v1055 = vadd.f32 %v894, %v1054
      %v1056 = vpop.f32.mrf.mxu0
      %1057 = vdwg.mxu0
      %v1058 = vmax.f32 %v932, 0.0
      %v1059 = vmax.f32 %v935, 0.0
      %v1060 = vmax.f32 %v940, 0.0
      %v1061 = vmax.f32 %v943, 0.0
      %v1062 = vmax.f32 %v948, 0.0
      %v1063 = vmax.f32 %v951, 0.0
      %v1064 = vmax.f32 %v956, 0.0
      %v1065 = vmax.f32 %v959, 0.0
      %v1066 = vmax.f32 %v964, 0.0
      %v1067 = vmax.f32 %v967, 0.0
      %v1068 = vmax.f32 %v972, 0.0
      %v1069 = vmax.f32 %v975, 0.0
      %v1070 = vmax.f32 %v980, 0.0
      %v1071 = vmax.f32 %v983, 0.0
      %v1072 = vmax.f32 %v988, 0.0
      %v1073 = vmax.f32 %v991, 0.0
      %v1074 = vmax.f32 %v996, 0.0
      %v1075 = vmax.f32 %v999, 0.0
      %v1076 = vmax.f32 %v1004, 0.0
      %v1077 = vmax.f32 %v1007, 0.0
      %v1078 = vmax.f32 %v1012, 0.0
      %v1079 = vmax.f32 %v1015, 0.0
      %v1080 = vmax.f32 %v1020, 0.0
      %v1081 = vmax.f32 %v1023, 0.0
      %v1082 = vmax.f32 %v1028, 0.0
      %v1083 = vmax.f32 %v1031, 0.0
      %v1084 = vmax.f32 %v1036, 0.0
      %v1085 = vmax.f32 %v1039, 0.0
      %v1086 = vmax.f32 %v1044, 0.0
      %v1087 = vmax.f32 %v1047, 0.0
      %v1088 = vmax.f32 %v1052, 0.0
      %v1089 = vmax.f32 %v1055, 0.0
      %v1090 = vpack.c.bf16 %v1059, %v1058
      %v1091 = vpack.c.bf16 %v1061, %v1060
      %v1092 = vpack.c.bf16 %v1063, %v1062
      %v1093 = vpack.c.bf16 %v1065, %v1064
      %v1094 = vpack.c.bf16 %v1067, %v1066
      %v1095 = vpack.c.bf16 %v1069, %v1068
      %v1096 = vpack.c.bf16 %v1071, %v1070
      %v1097 = vpack.c.bf16 %v1073, %v1072
      %v1098 = vpack.c.bf16 %v1075, %v1074
      %v1099 = vpack.c.bf16 %v1077, %v1076
      %v1100 = vpack.c.bf16 %v1079, %v1078
      %v1101 = vpack.c.bf16 %v1081, %v1080
      %v1102 = vpack.c.bf16 %v1083, %v1082
      %v1103 = vpack.c.bf16 %v1085, %v1084
      %v1104 = vpack.c.bf16 %v1087, %v1086
      %v1105 = vpack.c.bf16 %v1089, %v1088
      %v1106 = vld [vmem:[%s3] sm:$0xf]
      %v1107 = vld [vmem:[%s3 + $0x4] sm:$0xf]
      %v1108 = vld [vmem:[%s3 + $0x8] sm:$0xf]
      %v1109 = vld [vmem:[%s3 + $0xc] sm:$0xf]
      %v1110 = vld [vmem:[%s4] sm:$0x1]
      %v1112 = vlaneseq
      %v1113 = vshrl.u32 %v1112, 7
      %v1114 = vsub.s32 0, %v1113
      %v1115 = vrot.slane %v1110, %v1114
      %v1121 = vunpack.c.l.b16 %v1106
      %v1122 = vunpack.c.l.b16 %v1107
      %v1123 = vunpack.c.l.b16 %v1108
      %v1124 = vunpack.c.l.b16 %v1109
      %v1125 = vpack.c.b16 %v1122, %v1121
      %v1126 = vpack.c.b16 %v1124, %v1123
      %v1130 = vsel %vm687, %v1090, 0
      %v1133 = vsel %vm687, %v1091, 0
      %v1136 = vsel %vm687, %v1092, 0
      %v1139 = vsel %vm687, %v1093, 0
      %v1142 = vsel %vm687, %v1094, 0
      %v1145 = vsel %vm687, %v1095, 0
      %v1148 = vsel %vm687, %v1096, 0
      %v1151 = vsel %vm687, %v1097, 0
      %v1154 = vsel %vm687, %v1098, 0
      %v1157 = vsel %vm687, %v1099, 0
      %v1160 = vsel %vm687, %v1100, 0
      %v1163 = vsel %vm687, %v1101, 0
      %v1166 = vsel %vm687, %v1102, 0
      %v1169 = vsel %vm687, %v1103, 0
      %v1172 = vsel %vm687, %v1104, 0
      %v1175 = vsel %vm687, %v1105, 0
      %1177 = vmatprep.subr.bf16.mxu0 0
      %1178 = vmatpush1.bf16.msra.mxu0 0
      %1179 = vmatprep.subr.bf16.mxu0 0
      %1180 = vmatpush1.bf16.msra.mxu0 0
      %1181 = vmatprep.subr.bf16.mxu0 0
      %1182 = vmatpush1.bf16.msra.mxu0 0
      %1183 = vmatprep.subr.bf16.mxu0 0
      %1184 = vmatpush1.bf16.msra.mxu0 0
      %1185 = vmatprep.subr.bf16.mxu0 0
      %1186 = vmatpush1.bf16.msra.mxu0 0
      %1187 = vmatprep.subr.bf16.mxu0 0
      %1188 = vmatpush1.bf16.msra.mxu0 0
      %1189 = vmatprep.subr.bf16.mxu0 0
      %1190 = vmatpush1.bf16.msra.mxu0 %v1126
      %1191 = vmatprep.subr.bf16.mxu0 0
      %1192 = vmatpush1.bf16.msra.mxu0 %v1125
      %1193 = vmatprep.subr.bf16.mxu0 0
      %1194 = vmatpush2.bf16.msra.mxu0 0
      %1195 = vmatprep.subr.bf16.mxu0 0
      %1196 = vmatpush2.bf16.msra.mxu0 0
      %1197 = vmatprep.subr.bf16.mxu0 0
      %1198 = vmatpush2.bf16.msra.mxu0 0
      %1199 = vmatprep.subr.bf16.mxu0 0
      %1200 = vmatpush2.bf16.msra.mxu0 0
      %1201 = vmatprep.subr.bf16.mxu0 0
      %1202 = vmatpush2.bf16.msra.mxu0 0
      %1203 = vmatprep.subr.bf16.mxu0 0
      %1204 = vmatpush2.bf16.msra.mxu0 0
      %1205 = vmatprep.subr.bf16.mxu0 0
      %1206 = vmatpush2.bf16.msra.mxu0 0
      %1207 = vmatprep.subr.bf16.mxu0 0
      %1208 = vmatpush2.bf16.msra.mxu0 0
      %1209 = vmatprep.mubr.bf16.mxu0 0
      %1210 = vmatmul.mubr.bf16.gmra.mxu0 %v1130
      %v1211 = vpop.f32.mrf.mxu0
      %v1212 = vadd.f32 %v1115, %v1211
      %v1213 = vpop.f32.mrf.mxu0
      %v1214 = vpop.f32.mrf.mxu0
      %v1215 = vadd.f32 %v1115, %v1214
      %v1216 = vpop.f32.mrf.mxu0
      %1217 = vmatprep.mubr.bf16.mxu0 0
      %1218 = vmatmul.mubr.bf16.gmra.mxu0 %v1133
      %v1219 = vpop.f32.mrf.mxu0
      %v1220 = vadd.f32 %v1115, %v1219
      %v1221 = vpop.f32.mrf.mxu0
      %v1222 = vpop.f32.mrf.mxu0
      %v1223 = vadd.f32 %v1115, %v1222
      %v1224 = vpop.f32.mrf.mxu0
      %1225 = vmatprep.mubr.bf16.mxu0 0
      %1226 = vmatmul.mubr.bf16.gmra.mxu0 %v1136
      %v1227 = vpop.f32.mrf.mxu0
      %v1228 = vadd.f32 %v1115, %v1227
      %v1229 = vpop.f32.mrf.mxu0
      %v1230 = vpop.f32.mrf.mxu0
      %v1231 = vadd.f32 %v1115, %v1230
      %v1232 = vpop.f32.mrf.mxu0
      %1233 = vmatprep.mubr.bf16.mxu0 0
      %1234 = vmatmul.mubr.bf16.gmra.mxu0 %v1139
      %v1235 = vpop.f32.mrf.mxu0
      %v1236 = vadd.f32 %v1115, %v1235
      %v1237 = vpop.f32.mrf.mxu0
      %v1238 = vpop.f32.mrf.mxu0
      %v1239 = vadd.f32 %v1115, %v1238
      %v1240 = vpop.f32.mrf.mxu0
      %1241 = vmatprep.mubr.bf16.mxu0 0
      %1242 = vmatmul.mubr.bf16.gmra.mxu0 %v1142
      %v1243 = vpop.f32.mrf.mxu0
      %v1244 = vadd.f32 %v1115, %v1243
      %v1245 = vpop.f32.mrf.mxu0
      %v1246 = vpop.f32.mrf.mxu0
      %v1247 = vadd.f32 %v1115, %v1246
      %v1248 = vpop.f32.mrf.mxu0
      %1249 = vmatprep.mubr.bf16.mxu0 0
      %1250 = vmatmul.mubr.bf16.gmra.mxu0 %v1145
      %v1251 = vpop.f32.mrf.mxu0
      %v1252 = vadd.f32 %v1115, %v1251
      %v1253 = vpop.f32.mrf.mxu0
      %v1254 = vpop.f32.mrf.mxu0
      %v1255 = vadd.f32 %v1115, %v1254
      %v1256 = vpop.f32.mrf.mxu0
      %1257 = vmatprep.mubr.bf16.mxu0 0
      %1258 = vmatmul.mubr.bf16.gmra.mxu0 %v1148
      %v1259 = vpop.f32.mrf.mxu0
      %v1260 = vadd.f32 %v1115, %v1259
      %v1261 = vpop.f32.mrf.mxu0
      %v1262 = vpop.f32.mrf.mxu0
      %v1263 = vadd.f32 %v1115, %v1262
      %v1264 = vpop.f32.mrf.mxu0
      %1265 = vmatprep.mubr.bf16.mxu0 0
      %1266 = vmatmul.mubr.bf16.gmra.mxu0 %v1151
      %v1267 = vpop.f32.mrf.mxu0
      %v1268 = vadd.f32 %v1115, %v1267
      %v1269 = vpop.f32.mrf.mxu0
      %v1270 = vpop.f32.mrf.mxu0
      %v1271 = vadd.f32 %v1115, %v1270
      %v1272 = vpop.f32.mrf.mxu0
      %1273 = vmatprep.mubr.bf16.mxu0 0
      %1274 = vmatmul.mubr.bf16.gmra.mxu0 %v1154
      %v1275 = vpop.f32.mrf.mxu0
      %v1276 = vadd.f32 %v1115, %v1275
      %v1277 = vpop.f32.mrf.mxu0
      %v1278 = vpop.f32.mrf.mxu0
      %v1279 = vadd.f32 %v1115, %v1278
      %v1280 = vpop.f32.mrf.mxu0
      %1281 = vmatprep.mubr.bf16.mxu0 0
      %1282 = vmatmul.mubr.bf16.gmra.mxu0 %v1157
      %v1283 = vpop.f32.mrf.mxu0
      %v1284 = vadd.f32 %v1115, %v1283
      %v1285 = vpop.f32.mrf.mxu0
      %v1286 = vpop.f32.mrf.mxu0
      %v1287 = vadd.f32 %v1115, %v1286
      %v1288 = vpop.f32.mrf.mxu0
      %1289 = vmatprep.mubr.bf16.mxu0 0
      %1290 = vmatmul.mubr.bf16.gmra.mxu0 %v1160
      %v1291 = vpop.f32.mrf.mxu0
      %v1292 = vadd.f32 %v1115, %v1291
      %v1293 = vpop.f32.mrf.mxu0
      %v1294 = vpop.f32.mrf.mxu0
      %v1295 = vadd.f32 %v1115, %v1294
      %v1296 = vpop.f32.mrf.mxu0
      %1297 = vmatprep.mubr.bf16.mxu0 0
      %1298 = vmatmul.mubr.bf16.gmra.mxu0 %v1163
      %v1299 = vpop.f32.mrf.mxu0
      %v1300 = vadd.f32 %v1115, %v1299
      %v1301 = vpop.f32.mrf.mxu0
      %v1302 = vpop.f32.mrf.mxu0
      %v1303 = vadd.f32 %v1115, %v1302
      %v1304 = vpop.f32.mrf.mxu0
      %1305 = vmatprep.mubr.bf16.mxu0 0
      %1306 = vmatmul.mubr.bf16.gmra.mxu0 %v1166
      %v1307 = vpop.f32.mrf.mxu0
      %v1308 = vadd.f32 %v1115, %v1307
      %v1309 = vpop.f32.mrf.mxu0
      %v1310 = vpop.f32.mrf.mxu0
      %v1311 = vadd.f32 %v1115, %v1310
      %v1312 = vpop.f32.mrf.mxu0
      %1313 = vmatprep.mubr.bf16.mxu0 0
      %1314 = vmatmul.mubr.bf16.gmra.mxu0 %v1169
      %v1315 = vpop.f32.mrf.mxu0
      %v1316 = vadd.f32 %v1115, %v1315
      %v1317 = vpop.f32.mrf.mxu0
      %v1318 = vpop.f32.mrf.mxu0
      %v1319 = vadd.f32 %v1115, %v1318
      %v1320 = vpop.f32.mrf.mxu0
      %1321 = vmatprep.mubr.bf16.mxu0 0
      %1322 = vmatmul.mubr.bf16.gmra.mxu0 %v1172
      %v1323 = vpop.f32.mrf.mxu0
      %v1324 = vadd.f32 %v1115, %v1323
      %v1325 = vpop.f32.mrf.mxu0
      %v1326 = vpop.f32.mrf.mxu0
      %v1327 = vadd.f32 %v1115, %v1326
      %v1328 = vpop.f32.mrf.mxu0
      %1329 = vmatprep.mubr.bf16.mxu0 0
      %1330 = vmatmul.mubr.bf16.gmra.mxu0 %v1175
      %v1331 = vpop.f32.mrf.mxu0
      %v1332 = vadd.f32 %v1115, %v1331
      %v1333 = vpop.f32.mrf.mxu0
      %v1334 = vpop.f32.mrf.mxu0
      %v1335 = vadd.f32 %v1115, %v1334
      %v1336 = vpop.f32.mrf.mxu0
      %1337 = vdwg.mxu0
      %1338 = vst [vmem:[%s229] sm:$0xff] %v1212
      %1339 = vst [vmem:[%s229 + $0x8] sm:$0xff] %v1215
      %1340 = vst [vmem:[%s229 + $0x10] sm:$0xff] %v1220
      %1341 = vst [vmem:[%s229 + $0x18] sm:$0xff] %v1223
      %1342 = vst [vmem:[%s229 + $0x20] sm:$0xff] %v1228
      %1343 = vst [vmem:[%s229 + $0x28] sm:$0xff] %v1231
      %1344 = vst [vmem:[%s229 + $0x30] sm:$0xff] %v1236
      %1345 = vst [vmem:[%s229 + $0x38] sm:$0xff] %v1239
      %1346 = vst [vmem:[%s229 + $0x40] sm:$0xff] %v1244
      %1347 = vst [vmem:[%s229 + $0x48] sm:$0xff] %v1247
      %1348 = vst [vmem:[%s229 + $0x50] sm:$0xff] %v1252
      %1349 = vst [vmem:[%s229 + $0x58] sm:$0xff] %v1255
      %1350 = vst [vmem:[%s229 + $0x60] sm:$0xff] %v1260
      %1351 = vst [vmem:[%s229 + $0x68] sm:$0xff] %v1263
      %1352 = vst [vmem:[%s229 + $0x70] sm:$0xff] %v1268
      %1353 = vst [vmem:[%s229 + $0x78] sm:$0xff] %v1271
      %1354 = vst [vmem:[%s229 + $0x80] sm:$0xff] %v1276
      %1355 = vst [vmem:[%s229 + $0x88] sm:$0xff] %v1279
      %1356 = vst [vmem:[%s229 + $0x90] sm:$0xff] %v1284
      %1357 = vst [vmem:[%s229 + $0x98] sm:$0xff] %v1287
      %1358 = vst [vmem:[%s229 + $0xa0] sm:$0xff] %v1292
      %1359 = vst [vmem:[%s229 + $0xa8] sm:$0xff] %v1295
      %1360 = vst [vmem:[%s229 + $0xb0] sm:$0xff] %v1300
      %1361 = vst [vmem:[%s229 + $0xb8] sm:$0xff] %v1303
      %1362 = vst [vmem:[%s229 + $0xc0] sm:$0xff] %v1308
      %1363 = vst [vmem:[%s229 + $0xc8] sm:$0xff] %v1311
      %1364 = vst [vmem:[%s229 + $0xd0] sm:$0xff] %v1316
      %1365 = vst [vmem:[%s229 + $0xd8] sm:$0xff] %v1319
      %1366 = vst [vmem:[%s229 + $0xe0] sm:$0xff] %v1324
      %1367 = vst [vmem:[%s229 + $0xe8] sm:$0xff] %v1327
      %1368 = vst [vmem:[%s229 + $0xf0] sm:$0xff] %v1332
      %1369 = vst [vmem:[%s229 + $0xf8] sm:$0xff] %v1335
      %s1370 = smul.u32 32, %s16
      %p1371 = scmp.lt.s32.totalorder %s1370, 63
      %s1372 = scalar_select %p1371, %s1370, 63
      %s1373 = smul.addr %s1372, 8
      %s1374 = scalar_lea.vmem %s5, %s1373
      // Predicated region
      $region41: #{maskrcnn_benchmark_forward.4} parent=39 // pred_check
        %p1375 = pneg %p144
      $region42: #{maskrcnn_benchmark_forward.4} parent=39 // pred_check_branch
        %1377 = sbr.rel (%p1375) target = $region44
      $region43: #{maskrcnn_benchmark_forward.4} parent=39 // pred_region
        %s1378 = smul.u32 32, %s16
      $region44: #{maskrcnn_benchmark_forward.4} parent=39 // pred_fallthru
        _
    $region40: #{maskrcnn_benchmark_forward.4} parent=5 // pred_fallthru
      _
    %p1379 = scmp.le.s32.totalorder 2, %s11
    // Predicated region
    $region45: #{maskrcnn_benchmark_forward.4} parent=5 // pred_check
      %p1380 = pneg %p1379
    $region46: #{maskrcnn_benchmark_forward.4} parent=5 // pred_check_branch
      %1382 = sbr.rel (%p1380) target = $region48
    $region47: #{maskrcnn_benchmark_forward.4} parent=5 // pred_region
      %s1383 = ssub.s32 %s11, 2
      // Predicated region
      $region49: #{maskrcnn_benchmark_forward.4} parent=47 // pred_check
        %p1384 = pneg %p150
      $region50: #{maskrcnn_benchmark_forward.4} parent=47 // pred_check_branch
        %1386 = sbr.rel (%p1384) target = $region52
      $region51: #{maskrcnn_benchmark_forward.4} parent=47 // pred_region
        %s1387 = smul.u32 32, %s17
        %p1388 = scmp.lt.s32.totalorder %s1387, 63
        %s1389 = scalar_select %p1388, %s1387, 63
        %s1390 = smul.addr %s1389, 8
        %s1391 = scalar_lea.vmem %s5, %s1390
      $region52: #{maskrcnn_benchmark_forward.4} parent=47 // pred_fallthru
        _
    $region48: #{maskrcnn_benchmark_forward.4} parent=5 // pred_fallthru
      _
  $region6: #{maskrcnn_benchmark_forward.4} parent=0 // loop_footer
    %s15 = sadd.s32 1, %s11
  $region7: #{maskrcnn_benchmark_forward.4} parent=0 // loop_footer_branch
    %10 = sbr.rel target = $region3
  $region8: #{maskrcnn_benchmark_forward.4} parent=0 // loop_exit
    _

// kernel: custom-call
$region0: #{custom-call}
  #allocation0 [shape = 'u32[8,128]{1,0}', space=vmem, size = 0x1000, scoped, tag = 'scratch']
  #allocation1 [shape = 'u32[8,128]{1,0}', space=vmem, size = 0x1000, scoped, tag = 'scratch']
  #allocation2 [shape = 'u32[8,128]{1,0}', space=vmem, size = 0x1000, scoped, tag = 'scratch']
  #allocation3 [shape = 'u32[8,128]{1,0}', space=vmem, size = 0x1000, scoped, tag = 'scratch']
  #allocation4 [shape = 'u32[8,128]{1,0}', space=vmem, size = 0x1000, scoped, tag = 'scratch']
  #allocation5 [shape = 'u32[8,128]{1,0}', space=vmem, size = 0x1000, scoped, tag = 'scratch']
  #allocation6 [shape = 'u32[8,128]{1,0}', space=vmem, size = 0x1000, scoped, tag = 'scratch']
  %s0 = inlined_call_operand.vmem [shape: f32[2,768], index: 0, kind: input, shape index: {}]
  %s1 = inlined_call_operand.hbm [shape: f32[2,8], index: 1, kind: output, shape index: {0}]
  %s2 = inlined_call_operand.vmem [shape: s32[2,8], index: 2, kind: output, shape index: {1}]
  %3 = xla_tuple %s1, %s2
  %4 = xla_tuple 2147483648, 2147483647
  $region1: #{custom-call} parent=0
    #allocation7 [shape = 'u8[4096]{0}', space=vmem, size = 0x1000, scoped, tag = 'operand span for operand 1']
    #allocation8 [shape = 'u8[1024]{0}', space=vmem, size = 0x400, scoped, tag = 'packed  for operand 1']
    #allocation9 [shape = 's32[1]{0}', space=sflag, size = 0x4, scoped, tag = 'scoped memory for custom-call']
    #allocation10 [shape = 'u8[4096]{0}', space=vmem, size = 0x1000, scoped, tag = 'operand span for operand 2']
    #allocation11 [shape = 'u8[1024]{0}', space=vmem, size = 0x400, scoped, tag = 'packed  for operand 2']
    #allocation12 [shape = 'f32[8,2]{1,0:T(8,128)}', space=vmem, size = 0x1000, scoped, tag = 'scoped memory for custom-call']
    #allocation13 [shape = 'f32[8,2]{1,0:T(8,128)}', space=vmem, size = 0x1000, scoped, tag = 'scoped memory for custom-call']
    #allocation14 [shape = 's32[8,2]{1,0:T(8,128)}', space=vmem, size = 0x1000, scoped, tag = 'scoped memory for custom-call']
    #allocation15 [shape = 's32[8,2]{1,0:T(8,128)}', space=vmem, size = 0x1000, scoped, tag = 'scoped memory for custom-call']
    %5 = vsyncpa [#allocation9], 0
    %6 = xla_tuple [#allocation7], [#allocation10]
    %7 = vst [vmem:[#allocation12] sm:$0xff] 2147483648
    %8 = vst [vmem:[#allocation14] sm:$0xff] 2147483647
    %9 = xla_tuple [#allocation12], [#allocation14]
    %10 = xla_tuple [#allocation13], [#allocation15]
    $region2: #{custom-call} parent=1
      #allocation16 [shape = 'u8[8192]{0}', space=vmem, size = 0x2000, scoped, tag = 'operand span for operand 0']
      #allocation17 [shape = 's32[2048]{0}', space=vmem, size = 0x2000, scoped, tag = 'scoped memory for custom-call']
      // Predicated region
      $region3: #{custom-call} parent=2 // pred_check
        _
      $region4: #{custom-call} parent=2 // pred_check_branch
        %12 = sbr.rel (0) target = $region6
      $region5: #{custom-call} parent=2 // pred_region
        // Predicated region
        $region7: #{custom-call} parent=5 // pred_check
          _
        $region8: #{custom-call} parent=5 // pred_check_branch
          %14 = sbr.rel (0) target = $region10
        $region9: #{custom-call} parent=5 // pred_region
          // Predicated region
          $region11: #{custom-call} parent=9 // pred_check
            _
          $region12: #{custom-call} parent=9 // pred_check_branch
            %16 = sbr.rel (0) target = $region14
          $region13: #{custom-call} parent=9 // pred_region
            %s17 = scalar_lea.vmem %s0, 8
            %s18 = scalar_lea.vmem [#allocation16], 8
            loop: start=0, step=1, limit=1
            $region15: #{custom-call} parent=13 // loop_pre_header
              _
            $region16: #{custom-call} parent=13 // loop_header
              %s20 = sphi 0, %s24
              %p21 = scmp.ge.s32.totalorder %s20, 1
              %s25 = sphi %s0, %s0
              %s26 = sphi [#allocation16], [#allocation16]
            $region17: #{custom-call} parent=13 // loop_header_branch
              %23 = sbr.rel (%p21) target = $region21
            $region18: #{custom-call} parent=13 // loop_body
              %v27 = vld [vmem:[%s25] sm:$0xff]
              %28 = vst [vmem:[%s26] sm:$0xff] %v27
            $region19: #{custom-call} parent=13 // loop_footer
              %s24 = sadd.s32 1, %s20
            $region20: #{custom-call} parent=13 // loop_footer_branch
              %19 = sbr.rel target = $region16
            $region21: #{custom-call} parent=13 // loop_exit
              _
            %s30 = ssub.s32 16, 1
            loop: start=0, step=1, limit=1
            $region22: #{custom-call} parent=13 // loop_pre_header
              _
            $region23: #{custom-call} parent=13 // loop_header
              %s32 = sphi 0, %s36
              %p33 = scmp.ge.s32.totalorder %s32, 1
              %s37 = sphi %s17, %s17
              %s38 = sphi %s18, %s18
            $region24: #{custom-call} parent=13 // loop_header_branch
              %35 = sbr.rel (%p33) target = $region28
            $region25: #{custom-call} parent=13 // loop_body
              %v39 = vld [vmem:[%s37] sm:%s30]
              %40 = vst [vmem:[%s38] sm:%s30] %v39
            $region26: #{custom-call} parent=13 // loop_footer
              %s36 = sadd.s32 1, %s32
            $region27: #{custom-call} parent=13 // loop_footer_branch
              %31 = sbr.rel target = $region23
            $region28: #{custom-call} parent=13 // loop_exit
              _
          $region14: #{custom-call} parent=9 // pred_fallthru
            _
        $region10: #{custom-call} parent=5 // pred_fallthru
          _
        %41 = vnop
      $region6: #{custom-call} parent=2 // pred_fallthru
        _
      // Predicated region
      $region29: #{custom-call} parent=2 // pred_check
        _
      $region30: #{custom-call} parent=2 // pred_check_branch
        %43 = sbr.rel (0) target = $region32
      $region31: #{custom-call} parent=2 // pred_region
        _
      $region32: #{custom-call} parent=2 // pred_fallthru
        _
      %v44 = vlaneseq
      %v45 = vand.u32 %v44, 127
      %v46 = vlaneseq
      %v47 = vshrl.u32 %v46, 7
      %v48 = vshrl.u32 %v47, 1
      %v49 = vand.u32 %v47, 1
      %v50 = vmul.u32 %v48, 128
      %v51 = vadd.s32 %v45, %v50
      %v53 = vld [vmem:[#allocation16] sm:$0xff]
      %vm54 = vcmp.lt.s32.totalorder %v53, 0
      %v55 = vsub.s32 2147483647, %v53
      %v56 = vsel %vm54, %v55, %v53
      %vm58 = vcmp.lt.s32.totalorder %v51, 768
      %v59 = vsel %vm58, %v56, 2147483648
      %60 = vst [vmem:[#allocation16] sm:$0xff] %v59
      %s61 = scalar_lea.vmem [#allocation16], 8
      %v62 = vld [vmem:[%s61] sm:$0xff]
      %vm63 = vcmp.lt.s32.totalorder %v62, 0
      %v64 = vsub.s32 2147483647, %v62
      %v65 = vsel %vm63, %v64, %v62
      %v66 = vadd.s32 %v51, 512
      %vm67 = vcmp.lt.s32.totalorder %v66, 768
      %v68 = vsel %vm67, %v65, 2147483648
      %69 = vst [vmem:[%s61] sm:$0xff] %v68
      %v70 = vlaneseq
      %v71 = vand.u32 %v70, 127
      %v72 = vlaneseq
      %v73 = vshrl.u32 %v72, 7
      %v74 = vshrl.u32 %v73, 1
      %v75 = vand.u32 %v73, 1
      %v76 = vmul.u32 %v74, 128
      %v77 = vadd.s32 %v71, %v76
      %80 = vst [vmem:[#allocation17] sm:$0xff] %v77
      %v81 = vadd.s32 %v77, 512
      %s82 = scalar_lea.vmem [#allocation17], 8
      %83 = vst [vmem:[%s82] sm:$0xff] %v81
      %84 = xla_tuple [#allocation16], [#allocation17]
      %85 = vst [vmem:[#allocation13] sm:$0xff] 2147483648
      %86 = vst [vmem:[#allocation15] sm:$0xff] 2147483647
      %87 = xla_tuple [#allocation13], [#allocation15]
      loop: start=0, step=1, limit=8
      $region33: #{custom-call} parent=2 // loop_pre_header
        _
      $region34: #{custom-call} parent=2 // loop_header
        %s89 = sphi 0, %s93
        %p90 = scmp.ge.s32.totalorder %s89, 8
      $region35: #{custom-call} parent=2 // loop_header_branch
        %92 = sbr.rel (%p90) target = $region39
      $region36: #{custom-call} parent=2 // loop_body
        %v94 = vld [vmem:[#allocation16] sm:$0xff]
        %v95 = vld [vmem:[#allocation17] sm:$0xff]
        %96 = xla_tuple %v94, %v95
        %s97 = scalar_lea.vmem [#allocation16], 8
        %v98 = vld [vmem:[%s97] sm:$0xff]
        %s99 = scalar_lea.vmem [#allocation17], 8
        %v100 = vld [vmem:[%s99] sm:$0xff]
        %101 = xla_tuple %v98, %v100
        %vm102 = vcmp.gt.s32.totalorder %v98, %v94
        %vm103 = vcmp.eq.s32.totalorder %v98, %v94
        %vm104 = vcmp.lt.s32.totalorder %v100, %v95
        %vm105 = vmand %vm103, %vm104
        %vm106 = vmor %vm102, %vm105
        %v107 = vsel %vm106, %v98, %v94
        %v108 = vsel %vm106, %v100, %v95
        %109 = xla_tuple %v107, %v108
        %v110 = vrot.slane %v107, 2
        %v111 = vrot.slane %v108, 2
        %112 = xla_tuple %v110, %v111
        %vm113 = vcmp.gt.s32.totalorder %v110, %v107
        %vm114 = vcmp.eq.s32.totalorder %v110, %v107
        %vm115 = vcmp.lt.s32.totalorder %v111, %v108
        %vm116 = vmand %vm114, %vm115
        %vm117 = vmor %vm113, %vm116
        %v118 = vsel %vm117, %v110, %v107
        %v119 = vsel %vm117, %v111, %v108
        %120 = xla_tuple %v118, %v119
        %v121 = vrot.slane %v118, 2
        %v122 = vrot.slane %v119, 2
        %123 = xla_tuple %v121, %v122
        %vm124 = vcmp.gt.s32.totalorder %v121, %v118
        %vm125 = vcmp.eq.s32.totalorder %v121, %v118
        %vm126 = vcmp.lt.s32.totalorder %v122, %v119
        %vm127 = vmand %vm125, %vm126
        %vm128 = vmor %vm124, %vm127
        %v129 = vsel %vm128, %v121, %v118
        %v130 = vsel %vm128, %v122, %v119
        %131 = xla_tuple %v129, %v130
        %v132 = vrot.slane %v129, 2
        %v133 = vrot.slane %v130, 2
        %134 = xla_tuple %v132, %v133
        %vm135 = vcmp.gt.s32.totalorder %v132, %v129
        %vm136 = vcmp.eq.s32.totalorder %v132, %v129
        %vm137 = vcmp.lt.s32.totalorder %v133, %v130
        %vm138 = vmand %vm136, %vm137
        %vm139 = vmor %vm135, %vm138
        %v140 = vsel %vm139, %v132, %v129
        %v141 = vsel %vm139, %v133, %v130
        %142 = xla_tuple %v140, %v141
        %143 = vxpose.xlu0.b32.start [1/16] %v140, 128
        %144 = vxpose.xlu0.b32.cont [2/16] %v140, 128
        %145 = vxpose.xlu0.b32.cont [3/16] %v140, 128
        %146 = vxpose.xlu0.b32.cont [4/16] %v140, 128
        %147 = vxpose.xlu0.b32.cont [5/16] %v140, 128
        %148 = vxpose.xlu0.b32.cont [6/16] %v140, 128
        %149 = vxpose.xlu0.b32.cont [7/16] %v140, 128
        %150 = vxpose.xlu0.b32.cont [8/16] %v140, 128
        %151 = vxpose.xlu0.b32.cont [9/16] %v140, 128
        %152 = vxpose.xlu0.b32.cont [10/16] %v140, 128
        %153 = vxpose.xlu0.b32.cont [11/16] %v140, 128
        %154 = vxpose.xlu0.b32.cont [12/16] %v140, 128
        %155 = vxpose.xlu0.b32.cont [13/16] %v140, 128
        %156 = vxpose.xlu0.b32.cont [14/16] %v140, 128
        %157 = vxpose.xlu0.b32.cont [15/16] %v140, 128
        %158 = vxpose.xlu0.b32.end [16/16] %v140, 128
        %v159 = vpop.trf.xlu0
        %v160 = vpop.trf.xlu0
        %v161 = vpop.trf.xlu0
        %v162 = vpop.trf.xlu0
        %v163 = vpop.trf.xlu0
        %v164 = vpop.trf.xlu0
        %v165 = vpop.trf.xlu0
        %v166 = vpop.trf.xlu0
        %v167 = vpop.trf.xlu0
        %v168 = vpop.trf.xlu0
        %v169 = vpop.trf.xlu0
        %v170 = vpop.trf.xlu0
        %v171 = vpop.trf.xlu0
        %v172 = vpop.trf.xlu0
        %v173 = vpop.trf.xlu0
        %v174 = vpop.trf.xlu0
        %175 = vxpose.xlu0.b32.start [1/16] %v141, 128
        %176 = vxpose.xlu0.b32.cont [2/16] %v141, 128
        %177 = vxpose.xlu0.b32.cont [3/16] %v141, 128
        %178 = vxpose.xlu0.b32.cont [4/16] %v141, 128
        %179 = vxpose.xlu0.b32.cont [5/16] %v141, 128
        %180 = vxpose.xlu0.b32.cont [6/16] %v141, 128
        %181 = vxpose.xlu0.b32.cont [7/16] %v141, 128
        %182 = vxpose.xlu0.b32.cont [8/16] %v141, 128
        %183 = vxpose.xlu0.b32.cont [9/16] %v141, 128
        %184 = vxpose.xlu0.b32.cont [10/16] %v141, 128
        %185 = vxpose.xlu0.b32.cont [11/16] %v141, 128
        %186 = vxpose.xlu0.b32.cont [12/16] %v141, 128
        %187 = vxpose.xlu0.b32.cont [13/16] %v141, 128
        %188 = vxpose.xlu0.b32.cont [14/16] %v141, 128
        %189 = vxpose.xlu0.b32.cont [15/16] %v141, 128
        %190 = vxpose.xlu0.b32.end [16/16] %v141, 128
        %v191 = vpop.trf.xlu0
        %v192 = vpop.trf.xlu0
        %v193 = vpop.trf.xlu0
        %v194 = vpop.trf.xlu0
        %v195 = vpop.trf.xlu0
        %v196 = vpop.trf.xlu0
        %v197 = vpop.trf.xlu0
        %v198 = vpop.trf.xlu0
        %v199 = vpop.trf.xlu0
        %v200 = vpop.trf.xlu0
        %v201 = vpop.trf.xlu0
        %v202 = vpop.trf.xlu0
        %v203 = vpop.trf.xlu0
        %v204 = vpop.trf.xlu0
        %v205 = vpop.trf.xlu0
        %v206 = vpop.trf.xlu0
        %207 = xla_tuple %v159, %v191
        %208 = xla_tuple %v160, %v192
        %vm209 = vcmp.gt.s32.totalorder %v160, %v159
        %vm210 = vcmp.eq.s32.totalorder %v160, %v159
        %vm211 = vcmp.lt.s32.totalorder %v192, %v191
        %vm212 = vmand %vm210, %vm211
        %vm213 = vmor %vm209, %vm212
        %v214 = vsel %vm213, %v160, %v159
        %v215 = vsel %vm213, %v192, %v191
        %216 = xla_tuple %v214, %v215
        %217 = xla_tuple %v161, %v193
        %vm218 = vcmp.gt.s32.totalorder %v161, %v214
        %vm219 = vcmp.eq.s32.totalorder %v161, %v214
        %vm220 = vcmp.lt.s32.totalorder %v193, %v215
        %vm221 = vmand %vm219, %vm220
        %vm222 = vmor %vm218, %vm221
        %v223 = vsel %vm222, %v161, %v214
        %v224 = vsel %vm222, %v193, %v215
        %225 = xla_tuple %v223, %v224
        %226 = xla_tuple %v162, %v194
        %vm227 = vcmp.gt.s32.totalorder %v162, %v223
        %vm228 = vcmp.eq.s32.totalorder %v162, %v223
        %vm229 = vcmp.lt.s32.totalorder %v194, %v224
        %vm230 = vmand %vm228, %vm229
        %vm231 = vmor %vm227, %vm230
        %v232 = vsel %vm231, %v162, %v223
        %v233 = vsel %vm231, %v194, %v224
        %234 = xla_tuple %v232, %v233
        %235 = xla_tuple %v163, %v195
        %vm236 = vcmp.gt.s32.totalorder %v163, %v232
        %vm237 = vcmp.eq.s32.totalorder %v163, %v232
        %vm238 = vcmp.lt.s32.totalorder %v195, %v233
        %vm239 = vmand %vm237, %vm238
        %vm240 = vmor %vm236, %vm239
        %v241 = vsel %vm240, %v163, %v232
        %v242 = vsel %vm240, %v195, %v233
        %243 = xla_tuple %v241, %v242
        %244 = xla_tuple %v164, %v196
        %vm245 = vcmp.gt.s32.totalorder %v164, %v241
        %vm246 = vcmp.eq.s32.totalorder %v164, %v241
        %vm247 = vcmp.lt.s32.totalorder %v196, %v242
        %vm248 = vmand %vm246, %vm247
        %vm249 = vmor %vm245, %vm248
        %v250 = vsel %vm249, %v164, %v241
        %v251 = vsel %vm249, %v196, %v242
        %252 = xla_tuple %v250, %v251
        %253 = xla_tuple %v165, %v197
        %vm254 = vcmp.gt.s32.totalorder %v165, %v250
        %vm255 = vcmp.eq.s32.totalorder %v165, %v250
        %vm256 = vcmp.lt.s32.totalorder %v197, %v251
        %vm257 = vmand %vm255, %vm256
        %vm258 = vmor %vm254, %vm257
        %v259 = vsel %vm258, %v165, %v250
        %v260 = vsel %vm258, %v197, %v251
        %261 = xla_tuple %v259, %v260
        %262 = xla_tuple %v166, %v198
        %vm263 = vcmp.gt.s32.totalorder %v166, %v259
        %vm264 = vcmp.eq.s32.totalorder %v166, %v259
        %vm265 = vcmp.lt.s32.totalorder %v198, %v260
        %vm266 = vmand %vm264, %vm265
        %vm267 = vmor %vm263, %vm266
        %v268 = vsel %vm267, %v166, %v259
        %v269 = vsel %vm267, %v198, %v260
        %270 = xla_tuple %v268, %v269
        %271 = xla_tuple %v167, %v199
        %vm272 = vcmp.gt.s32.totalorder %v167, %v268
        %vm273 = vcmp.eq.s32.totalorder %v167, %v268
        %vm274 = vcmp.lt.s32.totalorder %v199, %v269
        %vm275 = vmand %vm273, %vm274
        %vm276 = vmor %vm272, %vm275
        %v277 = vsel %vm276, %v167, %v268
        %v278 = vsel %vm276, %v199, %v269
        %279 = xla_tuple %v277, %v278
        %280 = xla_tuple %v168, %v200
        %vm281 = vcmp.gt.s32.totalorder %v168, %v277
        %vm282 = vcmp.eq.s32.totalorder %v168, %v277
        %vm283 = vcmp.lt.s32.totalorder %v200, %v278
        %vm284 = vmand %vm282, %vm283
        %vm285 = vmor %vm281, %vm284
        %v286 = vsel %vm285, %v168, %v277
        %v287 = vsel %vm285, %v200, %v278
        %288 = xla_tuple %v286, %v287
        %289 = xla_tuple %v169, %v201
        %vm290 = vcmp.gt.s32.totalorder %v169, %v286
        %vm291 = vcmp.eq.s32.totalorder %v169, %v286
        %vm292 = vcmp.lt.s32.totalorder %v201, %v287
        %vm293 = vmand %vm291, %vm292
        %vm294 = vmor %vm290, %vm293
        %v295 = vsel %vm294, %v169, %v286
        %v296 = vsel %vm294, %v201, %v287
        %297 = xla_tuple %v295, %v296
        %298 = xla_tuple %v170, %v202
        %vm299 = vcmp.gt.s32.totalorder %v170, %v295
        %vm300 = vcmp.eq.s32.totalorder %v170, %v295
        %vm301 = vcmp.lt.s32.totalorder %v202, %v296
        %vm302 = vmand %vm300, %vm301
        %vm303 = vmor %vm299, %vm302
        %v304 = vsel %vm303, %v170, %v295
        %v305 = vsel %vm303, %v202, %v296
        %306 = xla_tuple %v304, %v305
        %307 = xla_tuple %v171, %v203
        %vm308 = vcmp.gt.s32.totalorder %v171, %v304
        %vm309 = vcmp.eq.s32.totalorder %v171, %v304
        %vm310 = vcmp.lt.s32.totalorder %v203, %v305
        %vm311 = vmand %vm309, %vm310
        %vm312 = vmor %vm308, %vm311
        %v313 = vsel %vm312, %v171, %v304
        %v314 = vsel %vm312, %v203, %v305
        %315 = xla_tuple %v313, %v314
        %316 = xla_tuple %v172, %v204
        %vm317 = vcmp.gt.s32.totalorder %v172, %v313
        %vm318 = vcmp.eq.s32.totalorder %v172, %v313
        %vm319 = vcmp.lt.s32.totalorder %v204, %v314
        %vm320 = vmand %vm318, %vm319
        %vm321 = vmor %vm317, %vm320
        %v322 = vsel %vm321, %v172, %v313
        %v323 = vsel %vm321, %v204, %v314
        %324 = xla_tuple %v322, %v323
        %325 = xla_tuple %v173, %v205
        %vm326 = vcmp.gt.s32.totalorder %v173, %v322
        %vm327 = vcmp.eq.s32.totalorder %v173, %v322
        %vm328 = vcmp.lt.s32.totalorder %v205, %v323
        %vm329 = vmand %vm327, %vm328
        %vm330 = vmor %vm326, %vm329
        %v331 = vsel %vm330, %v173, %v322
        %v332 = vsel %vm330, %v205, %v323
        %333 = xla_tuple %v331, %v332
        %334 = xla_tuple %v174, %v206
        %vm335 = vcmp.gt.s32.totalorder %v174, %v331
        %vm336 = vcmp.eq.s32.totalorder %v174, %v331
        %vm337 = vcmp.lt.s32.totalorder %v206, %v332
        %vm338 = vmand %vm336, %vm337
        %vm339 = vmor %vm335, %vm338
        %v340 = vsel %vm339, %v174, %v331
        %v341 = vsel %vm339, %v206, %v332
        %342 = xla_tuple %v340, %v341
        %v343 = vrot.slane %v340, 1
        %v344 = vrot.slane %v341, 1
        %345 = xla_tuple %v343, %v344
        %vm346 = vcmp.gt.s32.totalorder %v343, %v340
        %vm347 = vcmp.eq.s32.totalorder %v343, %v340
        %vm348 = vcmp.lt.s32.totalorder %v344, %v341
        %vm349 = vmand %vm347, %vm348
        %vm350 = vmor %vm346, %vm349
        %v351 = vsel %vm350, %v343, %v340
        %v352 = vsel %vm350, %v344, %v341
        %353 = xla_tuple %v351, %v352
        %v354 = vrot.slane %v351, 1
        %v355 = vrot.slane %v352, 1
        %356 = xla_tuple %v354, %v355
        %vm357 = vcmp.gt.s32.totalorder %v354, %v351
        %vm358 = vcmp.eq.s32.totalorder %v354, %v351
        %vm359 = vcmp.lt.s32.totalorder %v355, %v352
        %vm360 = vmand %vm358, %vm359
        %vm361 = vmor %vm357, %vm360
        %v362 = vsel %vm361, %v354, %v351
        %v363 = vsel %vm361, %v355, %v352
        %364 = xla_tuple %v362, %v363
        %v365 = vrot.slane %v362, 1
        %v366 = vrot.slane %v363, 1
        %367 = xla_tuple %v365, %v366
        %vm368 = vcmp.gt.s32.totalorder %v365, %v362
        %vm369 = vcmp.eq.s32.totalorder %v365, %v362
        %vm370 = vcmp.lt.s32.totalorder %v366, %v363
        %vm371 = vmand %vm369, %vm370
        %vm372 = vmor %vm368, %vm371
        %v373 = vsel %vm372, %v365, %v362
        %v374 = vsel %vm372, %v366, %v363
        %375 = xla_tuple %v373, %v374
        %v376 = vrot.slane %v373, 1
        %v377 = vrot.slane %v374, 1
        %378 = xla_tuple %v376, %v377
        %vm379 = vcmp.gt.s32.totalorder %v376, %v373
        %vm380 = vcmp.eq.s32.totalorder %v376, %v373
        %vm381 = vcmp.lt.s32.totalorder %v377, %v374
        %vm382 = vmand %vm380, %vm381
        %vm383 = vmor %vm379, %vm382
        %v384 = vsel %vm383, %v376, %v373
        %v385 = vsel %vm383, %v377, %v374
        %386 = xla_tuple %v384, %v385
        %v387 = vrot.slane %v384, 1
        %v388 = vrot.slane %v385, 1
        %389 = xla_tuple %v387, %v388
        %vm390 = vcmp.gt.s32.totalorder %v387, %v384
        %vm391 = vcmp.eq.s32.totalorder %v387, %v384
        %vm392 = vcmp.lt.s32.totalorder %v388, %v385
        %vm393 = vmand %vm391, %vm392
        %vm394 = vmor %vm390, %vm393
        %v395 = vsel %vm394, %v387, %v384
        %v396 = vsel %vm394, %v388, %v385
        %397 = xla_tuple %v395, %v396
        %v398 = vrot.slane %v395, 1
        %v399 = vrot.slane %v396, 1
        %400 = xla_tuple %v398, %v399
        %vm401 = vcmp.gt.s32.totalorder %v398, %v395
        %vm402 = vcmp.eq.s32.totalorder %v398, %v395
        %vm403 = vcmp.lt.s32.totalorder %v399, %v396
        %vm404 = vmand %vm402, %vm403
        %vm405 = vmor %vm401, %vm404
        %v406 = vsel %vm405, %v398, %v395
        %v407 = vsel %vm405, %v399, %v396
        %408 = xla_tuple %v406, %v407
        %v409 = vrot.slane %v406, 1
        %v410 = vrot.slane %v407, 1
        %411 = xla_tuple %v409, %v410
        %vm412 = vcmp.gt.s32.totalorder %v409, %v406
        %vm413 = vcmp.eq.s32.totalorder %v409, %v406
        %vm414 = vcmp.lt.s32.totalorder %v410, %v407
        %vm415 = vmand %vm413, %vm414
        %vm416 = vmor %vm412, %vm415
        %v417 = vsel %vm416, %v409, %v406
        %v418 = vsel %vm416, %v410, %v407
        %419 = xla_tuple %v417, %v418
        %s420 = scalar_lea.vmem [#allocation13], %s89
        %421 = vst [vmem:[%s420] sm:$0x1] %v417
        %s422 = scalar_lea.vmem [#allocation15], %s89
        %423 = vst [vmem:[%s422] sm:$0x1] %v418
        %424 = xla_tuple %421, %423
        %425 = vxpose.xlu0.b32.start [1/16] %v418, 128
        %426 = vxpose.xlu0.b32.cont [2/16] 0.0, 128
        %427 = vxpose.xlu0.b32.cont [3/16] 0.0, 128
        %428 = vxpose.xlu0.b32.cont [4/16] 0.0, 128
        %429 = vxpose.xlu0.b32.cont [5/16] 0.0, 128
        %430 = vxpose.xlu0.b32.cont [6/16] 0.0, 128
        %431 = vxpose.xlu0.b32.cont [7/16] 0.0, 128
        %432 = vxpose.xlu0.b32.cont [8/16] 0.0, 128
        %433 = vxpose.xlu0.b32.cont [9/16] 0.0, 128
        %434 = vxpose.xlu0.b32.cont [10/16] 0.0, 128
        %435 = vxpose.xlu0.b32.cont [11/16] 0.0, 128
        %436 = vxpose.xlu0.b32.cont [12/16] 0.0, 128
        %437 = vxpose.xlu0.b32.cont [13/16] 0.0, 128
        %438 = vxpose.xlu0.b32.cont [14/16] 0.0, 128
        %439 = vxpose.xlu0.b32.cont [15/16] 0.0, 128
        %440 = vxpose.xlu0.b32.end [16/16] 0.0, 128
        %v441 = vpop.trf.xlu0
        %v442 = vpop.trf.xlu0
        %v443 = vpop.trf.xlu0
        %v444 = vpop.trf.xlu0
        %v445 = vpop.trf.xlu0
        %v446 = vpop.trf.xlu0
        %v447 = vpop.trf.xlu0
        %v448 = vpop.trf.xlu0
        %v449 = vpop.trf.xlu0
        %v450 = vpop.trf.xlu0
        %v451 = vpop.trf.xlu0
        %v452 = vpop.trf.xlu0
        %v453 = vpop.trf.xlu0
        %v454 = vpop.trf.xlu0
        %v455 = vpop.trf.xlu0
        %v456 = vpop.trf.xlu0
        %s457 = vtos %v441
        %s458 = sshrl.u32 %s457, 9
        %p459 = scmp.lt.s32.totalorder %s457, 0
        %s460 = ssub.s32 0, %s457
        %s461 = scalar_select %p459, %s460, %s457
        %s462 = sand.u32 %s461, 511
        %s463 = ssub.s32 0, %s462
        %s464 = scalar_select %p459, %s463, %s462
        %s465 = sshrl.u32 %s464, 7
        %s466 = smul.u32 %s465, 256
        %s467 = sand.u32 %s464, 127
        %s468 = sadd.s32 %s466, %s467
        %v469 = vlaneseq
        %v470 = vstv %s468
        %vm472 = vcmp.eq.s32.totalorder %v469, %v470
        %s473 = smul.addr %s458, 8
        %s474 = scalar_lea.vmem [#allocation16], %s473
        %475 = vst.msk [vmem:[%s474] sm:$0xff] %vm472, 2147483648
        %s476 = smul.addr %s458, 8
        %s477 = scalar_lea.vmem [#allocation17], %s476
        %478 = vst.msk [vmem:[%s477] sm:$0xff] %vm472, 2147483647
        %479 = xla_tuple %475, %478
        %v480 = vrot.slane %v441, 1
        %s481 = vtos %v480
        %s482 = sshrl.u32 %s481, 9
        %p483 = scmp.lt.s32.totalorder %s481, 0
        %s484 = ssub.s32 0, %s481
        %s485 = scalar_select %p483, %s484, %s481
        %s486 = sand.u32 %s485, 511
        %s487 = ssub.s32 0, %s486
        %s488 = scalar_select %p483, %s487, %s486
        %s489 = sshrl.u32 %s488, 7
        %s490 = smul.u32 %s489, 256
        %s491 = sand.u32 %s488, 127
        %s492 = sadd.s32 %s490, %s491
        %v493 = vlaneseq
        %v494 = vstv %s492
        %v495 = vadd.s32 %v494, 128
        %vm496 = vcmp.eq.s32.totalorder %v493, %v495
        %s497 = smul.addr %s482, 8
        %s498 = scalar_lea.vmem [#allocation16], %s497
        %499 = vst.msk [vmem:[%s498] sm:$0xff] %vm496, 2147483648
        %s500 = smul.addr %s482, 8
        %s501 = scalar_lea.vmem [#allocation17], %s500
        %502 = vst.msk [vmem:[%s501] sm:$0xff] %vm496, 2147483647
        %503 = xla_tuple %499, %502
        %v504 = vrot.slane %v480, 1
      $region37: #{custom-call} parent=2 // loop_footer
        %s93 = sadd.s32 1, %s89
      $region38: #{custom-call} parent=2 // loop_footer_branch
        %88 = sbr.rel target = $region34
      $region39: #{custom-call} parent=2 // loop_exit
        _
      %s505 = scalar_lea.vmem [#allocation13], 7
      %v506 = vld [vmem:[%s505] ss:$-1 sm:$0xff]
      %s507 = scalar_lea.vmem [#allocation13], 7
      %v508 = vld [vmem:[%s507] ss:$-1 sm:$0xff]
      %509 = vst [vmem:[#allocation13] sm:$0xff] %v508
      %510 = vst [vmem:[#allocation13] sm:$0xff] %v506
      %s511 = scalar_lea.vmem [#allocation15], 7
      %v512 = vld [vmem:[%s511] ss:$-1 sm:$0xff]
      %s513 = scalar_lea.vmem [#allocation15], 7
      %v514 = vld [vmem:[%s513] ss:$-1 sm:$0xff]
      %515 = vst [vmem:[#allocation15] sm:$0xff] %v514
      %516 = vst [vmem:[#allocation15] sm:$0xff] %v512
      %517 = xla_tuple %510, %516
      %v518 = vld [vmem:[#allocation12] sm:$0xff]
      %v519 = vld [vmem:[#allocation14] sm:$0xff]
      %520 = xla_tuple %v518, %v519
      %v521 = vld [vmem:[#allocation13] sm:$0xff]
      %v522 = vld [vmem:[#allocation15] sm:$0xff]
      %523 = xla_tuple %v521, %v522
      %vm524 = vcmp.gt.s32.totalorder %v518, %v521
      %vm525 = vcmp.eq.s32.totalorder %v518, %v521
      %vm526 = vcmp.lt.s32.totalorder %v519, %v522
      %vm527 = vmand %vm525, %vm526
      %vm528 = vmor %vm524, %vm527
      %v529 = vsel %vm528, %v518, %v521
      %530 = vst [vmem:[#allocation12] sm:$0xff] %v529
      %v531 = vsel %vm528, %v521, %v518
      %532 = vst [vmem:[#allocation13] sm:$0xff] %v531
      %v533 = vsel %vm528, %v519, %v522
      %534 = vst [vmem:[#allocation14] sm:$0xff] %v533
      %v535 = vsel %vm528, %v522, %v519
      %536 = vst [vmem:[#allocation15] sm:$0xff] %v535
      %537 = xla_tuple %532, %536
      %538 = xla_tuple [#allocation12], [#allocation14]
      %v539 = vld [vmem:[#allocation12] sm:$0xff]
      %v540 = vld [vmem:[#allocation14] sm:$0xff]
      %541 = xla_tuple %v539, %v540
      %v543 = vunpack.c.l.s4 839939668
      %v544 = vunpack.c.0.s8 %v543
      %v545 = vlaneseq
      %v546 = vshrl.u32 %v545, 7
      %v547 = vsub.s32 %v544, %v546
      %v548 = vrot.slane %v539, %v547
      %v550 = vunpack.c.l.s4 839939668
      %v551 = vunpack.c.0.s8 %v550
      %v552 = vlaneseq
      %v553 = vshrl.u32 %v552, 7
      %v554 = vsub.s32 %v551, %v553
      %v555 = vrot.slane %v540, %v554
      %556 = xla_tuple %v548, %v555
      %vm557 = vcmp.gt.s32.totalorder %v539, %v548
      %vm558 = vcmp.eq.s32.totalorder %v539, %v548
      %vm559 = vcmp.lt.s32.totalorder %v540, %v555
      %vm560 = vmand %vm558, %vm559
      %vm561 = vmor %vm557, %vm560
      %v562 = vlaneseq
      %v563 = vshrl.u32 %v562, 7
      %v564 = vand.u32 %v563, 4
      %vm565 = vcmp.ne.s32.totalorder %v564, 0
      %vm566 = vmxor %vm561, %vm565
      %v567 = vsel %vm566, %v539, %v548
      %v568 = vsel %vm566, %v540, %v555
      %569 = xla_tuple %v567, %v568
      %v571 = vunpack.c.l.s4 1417023538
      %v572 = vunpack.c.0.s8 %v571
      %v573 = vlaneseq
      %v574 = vshrl.u32 %v573, 7
      %v575 = vsub.s32 %v572, %v574
      %v576 = vrot.slane %v567, %v575
      %v578 = vunpack.c.l.s4 1417023538
      %v579 = vunpack.c.0.s8 %v578
      %v580 = vlaneseq
      %v581 = vshrl.u32 %v580, 7
      %v582 = vsub.s32 %v579, %v581
      %v583 = vrot.slane %v568, %v582
      %584 = xla_tuple %v576, %v583
      %vm585 = vcmp.gt.s32.totalorder %v567, %v576
      %vm586 = vcmp.eq.s32.totalorder %v567, %v576
      %vm587 = vcmp.lt.s32.totalorder %v568, %v583
      %vm588 = vmand %vm586, %vm587
      %vm589 = vmor %vm585, %vm588
      %v590 = vlaneseq
      %v591 = vshrl.u32 %v590, 7
      %v592 = vand.u32 %v591, 2
      %vm593 = vcmp.ne.s32.totalorder %v592, 0
      %vm594 = vmxor %vm589, %vm593
      %v595 = vsel %vm594, %v567, %v576
      %v596 = vsel %vm594, %v568, %v583
      %597 = xla_tuple %v595, %v596
      %v599 = vunpack.c.l.s4 1732584193
      %v600 = vunpack.c.0.s8 %v599
      %v601 = vlaneseq
      %v602 = vshrl.u32 %v601, 7
      %v603 = vsub.s32 %v600, %v602
      %v604 = vrot.slane %v595, %v603
      %v606 = vunpack.c.l.s4 1732584193
      %v607 = vunpack.c.0.s8 %v606
      %v608 = vlaneseq
      %v609 = vshrl.u32 %v608, 7
      %v610 = vsub.s32 %v607, %v609
      %v611 = vrot.slane %v596, %v610
      %612 = xla_tuple %v604, %v611
      %vm613 = vcmp.gt.s32.totalorder %v595, %v604
      %vm614 = vcmp.eq.s32.totalorder %v595, %v604
      %vm615 = vcmp.lt.s32.totalorder %v596, %v611
      %vm616 = vmand %vm614, %vm615
      %vm617 = vmor %vm613, %vm616
      %v618 = vlaneseq
      %v619 = vshrl.u32 %v618, 7
      %v620 = vand.u32 %v619, 1
      %vm621 = vcmp.ne.s32.totalorder %v620, 0
      %vm622 = vmxor %vm617, %vm621
      %v623 = vsel %vm622, %v595, %v604
      %v624 = vsel %vm622, %v596, %v611
      %625 = xla_tuple %v623, %v624
      %626 = vst [vmem:[#allocation12] sm:$0xff] %v623
      %627 = vst [vmem:[#allocation14] sm:$0xff] %v624
      %628 = xla_tuple %626, %627
      %v629 = vld [vmem:[#allocation12] sm:$0xff]
      %v630 = vld [vmem:[#allocation14] sm:$0xff]
      %631 = xla_tuple %v629, %v630
      %v633 = vunpack.c.l.s4 839939668
      %v634 = vunpack.c.0.s8 %v633
      %v635 = vlaneseq
      %v636 = vshrl.u32 %v635, 7
      %v637 = vsub.s32 %v634, %v636
      %v638 = vrot.slane %v629, %v637
      %v640 = vunpack.c.l.s4 839939668
      %v641 = vunpack.c.0.s8 %v640
      %v642 = vlaneseq
      %v643 = vshrl.u32 %v642, 7
      %v644 = vsub.s32 %v641, %v643
      %v645 = vrot.slane %v630, %v644
      %646 = xla_tuple %v638, %v645
      %vm647 = vcmp.gt.s32.totalorder %v629, %v638
      %vm648 = vcmp.eq.s32.totalorder %v629, %v638
      %vm649 = vcmp.lt.s32.totalorder %v630, %v645
      %vm650 = vmand %vm648, %vm649
      %vm651 = vmor %vm647, %vm650
      %v652 = vlaneseq
      %v653 = vshrl.u32 %v652, 7
      %v654 = vand.u32 %v653, 4
      %vm655 = vcmp.ne.s32.totalorder %v654, 0
      %vm656 = vmxor %vm651, %vm655
      %v657 = vsel %vm656, %v629, %v638
      %v658 = vsel %vm656, %v630, %v645
      %659 = xla_tuple %v657, %v658
      %v661 = vunpack.c.l.s4 1417023538
      %v662 = vunpack.c.0.s8 %v661
      %v663 = vlaneseq
      %v664 = vshrl.u32 %v663, 7
      %v665 = vsub.s32 %v662, %v664
      %v666 = vrot.slane %v657, %v665
      %v668 = vunpack.c.l.s4 1417023538
      %v669 = vunpack.c.0.s8 %v668
      %v670 = vlaneseq
      %v671 = vshrl.u32 %v670, 7
      %v672 = vsub.s32 %v669, %v671
      %v673 = vrot.slane %v658, %v672
      %674 = xla_tuple %v666, %v673
      %vm675 = vcmp.gt.s32.totalorder %v657, %v666
      %vm676 = vcmp.eq.s32.totalorder %v657, %v666
      %vm677 = vcmp.lt.s32.totalorder %v658, %v673
      %vm678 = vmand %vm676, %vm677
      %vm679 = vmor %vm675, %vm678
      %v680 = vlaneseq
      %v681 = vshrl.u32 %v680, 7
      %v682 = vand.u32 %v681, 2
      %vm683 = vcmp.ne.s32.totalorder %v682, 0
      %vm684 = vmxor %vm679, %vm683
      %v685 = vsel %vm684, %v657, %v666
      %v686 = vsel %vm684, %v658, %v673
      %687 = xla_tuple %v685, %v686
      %v689 = vunpack.c.l.s4 1732584193
      %v690 = vunpack.c.0.s8 %v689
      %v691 = vlaneseq
      %v692 = vshrl.u32 %v691, 7
      %v693 = vsub.s32 %v690, %v692
      %v694 = vrot.slane %v685, %v693
      %v696 = vunpack.c.l.s4 1732584193
      %v697 = vunpack.c.0.s8 %v696
      %v698 = vlaneseq
      %v699 = vshrl.u32 %v698, 7
      %v700 = vsub.s32 %v697, %v699
      %v701 = vrot.slane %v686, %v700
      %702 = xla_tuple %v694, %v701
      %vm703 = vcmp.gt.s32.totalorder %v685, %v694
      %vm704 = vcmp.eq.s32.totalorder %v685, %v694
      %vm705 = vcmp.lt.s32.totalorder %v686, %v701
      %vm706 = vmand %vm704, %vm705
      %vm707 = vmor %vm703, %vm706
      %v708 = vlaneseq
      %v709 = vshrl.u32 %v708, 7
      %v710 = vand.u32 %v709, 1
      %vm711 = vcmp.ne.s32.totalorder %v710, 0
      %vm712 = vmxor %vm707, %vm711
      %v713 = vsel %vm712, %v685, %v694
      %v714 = vsel %vm712, %v686, %v701
      %715 = xla_tuple %v713, %v714
      %716 = vst [vmem:[#allocation12] sm:$0xff] %v713
      %717 = vst [vmem:[#allocation14] sm:$0xff] %v714
      %718 = xla_tuple %716, %717
      %719 = xla_tuple [#allocation13], [#allocation15]
      %v720 = vld [vmem:[#allocation13] sm:$0xff]
      %v721 = vld [vmem:[#allocation15] sm:$0xff]
      %722 = xla_tuple %v720, %v721
      %v724 = vunpack.c.l.s4 839939668
      %v725 = vunpack.c.0.s8 %v724
      %v726 = vlaneseq
      %v727 = vshrl.u32 %v726, 7
      %v728 = vsub.s32 %v725, %v727
      %v729 = vrot.slane %v720, %v728
      %v731 = vunpack.c.l.s4 839939668
      %v732 = vunpack.c.0.s8 %v731
      %v733 = vlaneseq
      %v734 = vshrl.u32 %v733, 7
      %v735 = vsub.s32 %v732, %v734
      %v736 = vrot.slane %v721, %v735
      %737 = xla_tuple %v729, %v736
      %vm738 = vcmp.gt.s32.totalorder %v720, %v729
      %vm739 = vcmp.eq.s32.totalorder %v720, %v729
      %vm740 = vcmp.lt.s32.totalorder %v721, %v736
      %vm741 = vmand %vm739, %vm740
      %vm742 = vmor %vm738, %vm741
      %v743 = vlaneseq
      %v744 = vshrl.u32 %v743, 7
      %v745 = vand.u32 %v744, 4
      %vm746 = vcmp.ne.s32.totalorder %v745, 0
      %vm747 = vmxor %vm742, %vm746
      %v748 = vsel %vm747, %v720, %v729
      %v749 = vsel %vm747, %v721, %v736
      %750 = xla_tuple %v748, %v749
      %v752 = vunpack.c.l.s4 1417023538
      %v753 = vunpack.c.0.s8 %v752
      %v754 = vlaneseq
      %v755 = vshrl.u32 %v754, 7
      %v756 = vsub.s32 %v753, %v755
      %v757 = vrot.slane %v748, %v756
      %v759 = vunpack.c.l.s4 1417023538
      %v760 = vunpack.c.0.s8 %v759
      %v761 = vlaneseq
      %v762 = vshrl.u32 %v761, 7
      %v763 = vsub.s32 %v760, %v762
      %v764 = vrot.slane %v749, %v763
      %765 = xla_tuple %v757, %v764
      %vm766 = vcmp.gt.s32.totalorder %v748, %v757
      %vm767 = vcmp.eq.s32.totalorder %v748, %v757
      %vm768 = vcmp.lt.s32.totalorder %v749, %v764
      %vm769 = vmand %vm767, %vm768
      %vm770 = vmor %vm766, %vm769
      %v771 = vlaneseq
      %v772 = vshrl.u32 %v771, 7
      %v773 = vand.u32 %v772, 2
      %vm774 = vcmp.ne.s32.totalorder %v773, 0
      %vm775 = vmxor %vm770, %vm774
      %v776 = vsel %vm775, %v748, %v757
      %v777 = vsel %vm775, %v749, %v764
      %778 = xla_tuple %v776, %v777
      %v780 = vunpack.c.l.s4 1732584193
      %v781 = vunpack.c.0.s8 %v780
      %v782 = vlaneseq
      %v783 = vshrl.u32 %v782, 7
      %v784 = vsub.s32 %v781, %v783
      %v785 = vrot.slane %v776, %v784
      %v787 = vunpack.c.l.s4 1732584193
      %v788 = vunpack.c.0.s8 %v787
      %v789 = vlaneseq
      %v790 = vshrl.u32 %v789, 7
      %v791 = vsub.s32 %v788, %v790
      %v792 = vrot.slane %v777, %v791
      %793 = xla_tuple %v785, %v792
      %vm794 = vcmp.gt.s32.totalorder %v776, %v785
      %vm795 = vcmp.eq.s32.totalorder %v776, %v785
      %vm796 = vcmp.lt.s32.totalorder %v777, %v792
      %vm797 = vmand %vm795, %vm796
      %vm798 = vmor %vm794, %vm797
      %v799 = vlaneseq
      %v800 = vshrl.u32 %v799, 7
      %v801 = vand.u32 %v800, 1
      %vm802 = vcmp.ne.s32.totalorder %v801, 0
      %vm803 = vmxor %vm798, %vm802
      %v804 = vsel %vm803, %v776, %v785
      %v805 = vsel %vm803, %v777, %v792
      %806 = xla_tuple %v804, %v805
      %807 = vst [vmem:[#allocation13] sm:$0xff] %v804
      %808 = vst [vmem:[#allocation15] sm:$0xff] %v805
      %809 = xla_tuple %807, %808
      %v810 = vld [vmem:[#allocation13] sm:$0xff]
      %v811 = vld [vmem:[#allocation15] sm:$0xff]
      %812 = xla_tuple %v810, %v811
      %v814 = vunpack.c.l.s4 839939668
      %v815 = vunpack.c.0.s8 %v814
      %v816 = vlaneseq
      %v817 = vshrl.u32 %v816, 7
      %v818 = vsub.s32 %v815, %v817
      %v819 = vrot.slane %v810, %v818
      %v821 = vunpack.c.l.s4 839939668
      %v822 = vunpack.c.0.s8 %v821
      %v823 = vlaneseq
      %v824 = vshrl.u32 %v823, 7
      %v825 = vsub.s32 %v822, %v824
      %v826 = vrot.slane %v811, %v825
      %827 = xla_tuple %v819, %v826
      %vm828 = vcmp.gt.s32.totalorder %v810, %v819
      %vm829 = vcmp.eq.s32.totalorder %v810, %v819
      %vm830 = vcmp.lt.s32.totalorder %v811, %v826
      %vm831 = vmand %vm829, %vm830
      %vm832 = vmor %vm828, %vm831
      %v833 = vlaneseq
      %v834 = vshrl.u32 %v833, 7
      %v835 = vand.u32 %v834, 4
      %vm836 = vcmp.ne.s32.totalorder %v835, 0
      %vm837 = vmxor %vm832, %vm836
      %v838 = vsel %vm837, %v810, %v819
      %v839 = vsel %vm837, %v811, %v826
      %840 = xla_tuple %v838, %v839
      %v842 = vunpack.c.l.s4 1417023538
      %v843 = vunpack.c.0.s8 %v842
      %v844 = vlaneseq
      %v845 = vshrl.u32 %v844, 7
      %v846 = vsub.s32 %v843, %v845
      %v847 = vrot.slane %v838, %v846
      %v849 = vunpack.c.l.s4 1417023538
      %v850 = vunpack.c.0.s8 %v849
      %v851 = vlaneseq
      %v852 = vshrl.u32 %v851, 7
      %v853 = vsub.s32 %v850, %v852
      %v854 = vrot.slane %v839, %v853
      %855 = xla_tuple %v847, %v854
      %vm856 = vcmp.gt.s32.totalorder %v838, %v847
      %vm857 = vcmp.eq.s32.totalorder %v838, %v847
      %vm858 = vcmp.lt.s32.totalorder %v839, %v854
      %vm859 = vmand %vm857, %vm858
      %vm860 = vmor %vm856, %vm859
      %v861 = vlaneseq
      %v862 = vshrl.u32 %v861, 7
      %v863 = vand.u32 %v862, 2
      %vm864 = vcmp.ne.s32.totalorder %v863, 0
      %vm865 = vmxor %vm860, %vm864
      %v866 = vsel %vm865, %v838, %v847
      %v867 = vsel %vm865, %v839, %v854
      %868 = xla_tuple %v866, %v867
      %v870 = vunpack.c.l.s4 1732584193
      %v871 = vunpack.c.0.s8 %v870
      %v872 = vlaneseq
      %v873 = vshrl.u32 %v872, 7
      %v874 = vsub.s32 %v871, %v873
      %v875 = vrot.slane %v866, %v874
      %v877 = vunpack.c.l.s4 1732584193
      %v878 = vunpack.c.0.s8 %v877
      %v879 = vlaneseq
      %v880 = vshrl.u32 %v879, 7
      %v881 = vsub.s32 %v878, %v880
      %v882 = vrot.slane %v867, %v881
      %883 = xla_tuple %v875, %v882
      %vm884 = vcmp.gt.s32.totalorder %v866, %v875
      %vm885 = vcmp.eq.s32.totalorder %v866, %v875
      %vm886 = vcmp.lt.s32.totalorder %v867, %v882
      %vm887 = vmand %vm885, %vm886
      %vm888 = vmor %vm884, %vm887
      %v889 = vlaneseq
      %v890 = vshrl.u32 %v889, 7
      %v891 = vand.u32 %v890, 1
      %vm892 = vcmp.ne.s32.totalorder %v891, 0
      %vm893 = vmxor %vm888, %vm892
      %v894 = vsel %vm893, %v866, %v875
      %v895 = vsel %vm893, %v867, %v882
      %896 = xla_tuple %v894, %v895
      %897 = vst [vmem:[#allocation13] sm:$0xff] %v894
      %898 = vst [vmem:[#allocation15] sm:$0xff] %v895
      %899 = xla_tuple %897, %898
    %v900 = vld [vmem:[#allocation12] sm:$0xff]
    %vm901 = vcmp.lt.s32.totalorder %v900, 0
    %v902 = vsub.s32 2147483647, %v900
    %v903 = vsel %vm901, %v902, %v900
    %904 = vst [vmem:[#allocation12] sm:$0xff] %v903
    %v905 = vld [vmem:[#allocation12] sm:$0xff]
    %906 = vxpose.xlu0.b32.start.end [1/1] (short) %v905, 128
    %v907 = vpop.trf.xlu0
    %v908 = vpop.trf.xlu0
    %v909 = vpop.trf.xlu0
    %v910 = vpop.trf.xlu0
    %v911 = vpop.trf.xlu0
    %v912 = vpop.trf.xlu0
    %v913 = vpop.trf.xlu0
    %v914 = vpop.trf.xlu0
    %v915 = vpop.trf.xlu0
    %v916 = vpop.trf.xlu0
    %v917 = vpop.trf.xlu0
    %v918 = vpop.trf.xlu0
    %v919 = vpop.trf.xlu0
    %v920 = vpop.trf.xlu0
    %v921 = vpop.trf.xlu0
    %v922 = vpop.trf.xlu0
    %923 = vst [vmem:[#allocation7] sm:$0xff] %v907
    %v924 = vld [vmem:[#allocation14] sm:$0xff]
    %925 = vxpose.xlu0.b32.start.end [1/1] (short) %v924, 128
    %v926 = vpop.trf.xlu0
    %v927 = vpop.trf.xlu0
    %v928 = vpop.trf.xlu0
    %v929 = vpop.trf.xlu0
    %v930 = vpop.trf.xlu0
    %v931 = vpop.trf.xlu0
    %v932 = vpop.trf.xlu0
    %v933 = vpop.trf.xlu0
    %v934 = vpop.trf.xlu0
    %v935 = vpop.trf.xlu0
    %v936 = vpop.trf.xlu0
    %v937 = vpop.trf.xlu0
    %v938 = vpop.trf.xlu0
    %v939 = vpop.trf.xlu0
    %v940 = vpop.trf.xlu0
    %v941 = vpop.trf.xlu0
    %942 = vst [vmem:[#allocation10] sm:$0xff] %v926
    %s944 = sshll.u32 1, 2
    %s945 = ssub.s32 %s944, 1
    %v947 = vld [vmem:[#allocation7] sm:%s945]
    %s948 = sshll.u32 1, 2
    %s949 = ssub.s32 %s948, 1
    %950 = vst [vmem:[#allocation8] sm:%s949] %v947
    %s952 = sshll.u32 1, 2
    %s953 = ssub.s32 %s952, 1
    %v955 = vld [vmem:[#allocation10] sm:%s953]
    %s956 = sshll.u32 1, 2
    %s957 = ssub.s32 %s956, 1
    %958 = vst [vmem:[#allocation11] sm:%s957] %v955
    %s960 = ssub.s32 32, 32
    %961 = vsyncadd [#allocation9], %s960
    %s963 = sshll.u32 [#allocation8], 4
    %s964 = int_to_ptr.vmem [resolvable:$true] %s963
    %966 = dma.vmem_to_hbm [thread:$0]  %s964, 32, %s1, [#allocation9]
    // Predicated region
    $region40: #{custom-call} parent=1 // pred_check
      _
    $region41: #{custom-call} parent=1 // pred_check_branch
      %968 = sbr.rel (0) target = $region43
    $region42: #{custom-call} parent=1 // pred_region
      // Predicated region
      $region44: #{custom-call} parent=42 // pred_check
        _
      $region45: #{custom-call} parent=42 // pred_check_branch
        %970 = sbr.rel target = $region47
      $region46: #{custom-call} parent=42 // pred_region
        // Predicated region
        $region59: #{custom-call} parent=46 // pred_check
          _
        $region60: #{custom-call} parent=46 // pred_check_branch
          %986 = sbr.rel (0) target = $region62
        $region61: #{custom-call} parent=46 // pred_region
          %s988 = ssub.s32 4, 1
          loop: start=0, step=1, limit=1
          $region63: #{custom-call} parent=61 // loop_pre_header
            _
          $region64: #{custom-call} parent=61 // loop_header
            %s990 = sphi 0, %s994
            %p991 = scmp.ge.s32.totalorder %s990, 1
            %s995 = sphi [#allocation11], [#allocation11]
            %s996 = sphi %s2, %s2
          $region65: #{custom-call} parent=61 // loop_header_branch
            %993 = sbr.rel (%p991) target = $region69
          $region66: #{custom-call} parent=61 // loop_body
            %v997 = vld [vmem:[%s995] sm:%s988]
            %998 = vst [vmem:[%s996] sm:%s988] %v997
          $region67: #{custom-call} parent=61 // loop_footer
            %s994 = sadd.s32 1, %s990
          $region68: #{custom-call} parent=61 // loop_footer_branch
            %989 = sbr.rel target = $region64
          $region69: #{custom-call} parent=61 // loop_exit
            _
        $region62: #{custom-call} parent=46 // pred_fallthru
          _
      $region47: #{custom-call} parent=42 // pred_fallthru
        _
      // Predicated region
      $region48: #{custom-call} parent=42 // pred_check
        _
      $region49: #{custom-call} parent=42 // pred_check_branch
        %972 = sbr.rel (0) target = $region51
      $region50: #{custom-call} parent=42 // pred_region
        %s974 = ssub.s32 4, 1
        loop: start=0, step=1, limit=1
        $region52: #{custom-call} parent=50 // loop_pre_header
          _
        $region53: #{custom-call} parent=50 // loop_header
          %s976 = sphi 0, %s980
          %p977 = scmp.ge.s32.totalorder %s976, 1
          %s981 = sphi [#allocation11], [#allocation11]
          %s982 = sphi %s2, %s2
        $region54: #{custom-call} parent=50 // loop_header_branch
          %979 = sbr.rel (%p977) target = $region58
        $region55: #{custom-call} parent=50 // loop_body
          %v983 = vld [vmem:[%s981] sm:%s974]
          %984 = vst [vmem:[%s982] sm:%s974] %v983
        $region56: #{custom-call} parent=50 // loop_footer
          %s980 = sadd.s32 1, %s976
        $region57: #{custom-call} parent=50 // loop_footer_branch
          %975 = sbr.rel target = $region53
        $region58: #{custom-call} parent=50 // loop_exit
          _
      $region51: #{custom-call} parent=42 // pred_fallthru
        _
    $region43: #{custom-call} parent=1 // pred_fallthru
      _
    %999 = vnop
    %1000 = dma.done [#allocation9], 32
    %1001 = vsyncpa [#allocation9], 1

// kernel: maskrcnn_benchmark_forward.5
$region0: #{maskrcnn_benchmark_forward.5}
  #allocation0 [shape = 'u32[]', space=smem, size = 0x4, offset = 0x4, fixed_abs, tag = 'smem constant byte address 0x4 - core index']
  #allocation1 [shape = 'u32[144,128]{1,0:T(1,128)}', space=vmem, size = 0x12000, scoped, tag = 'internal scratch']
  #allocation2 [shape = 'f32[8,1568]{1,0:T(8,128)}', space=vmem, size = 0xd000, scoped, tag = 'scratch operand']
  %s0 = inlined_call_operand.vmem [shape: s32[2,392,1], index: 0, kind: input, shape index: {}]
  %s1 = inlined_call_operand.vmem [shape: bf16[2,256,32], index: 1, kind: input, shape index: {}]
  %s2 = inlined_call_operand.vmem [shape: bf16[1568,64], index: 2, kind: input, shape index: {}]
  %s3 = inlined_call_operand.vmem [shape: f32[1,64], index: 3, kind: input, shape index: {}]
  %s4 = inlined_call_operand.vmem [shape: bf16[64,64], index: 4, kind: input, shape index: {}]
  %s5 = inlined_call_operand.vmem [shape: f32[1,64], index: 5, kind: input, shape index: {}]
  %s6 = inlined_call_operand.hbm [shape: f32[2,8,64], index: 6, kind: output, shape index: {}]
  %s7 = sld [smem:[#allocation0]]
  $region57: #{maskrcnn_benchmark_forward.5} parent=0
    _
  %s9 = ssub.s32 1, %s7
  %s10 = scalar_select 0, %s9, %s7
  $region1: #{maskrcnn_benchmark_forward.5} parent=0
    #allocation3 [shape = 'u8[8192]{0}', space=vmem, size = 0x2000, scoped, tag = 'output window, operand 0']
    #allocation4 [shape = 's32[2]{0}', space=sflag, size = 0x8, scoped, tag = 'scoped memory for maskrcnn_benchmark_forward.5']
    %11 = vsyncpa [#allocation4], 0
    %s12 = scalar_lea.sflag [#allocation4], 1
    %13 = vsyncpa %s12, 0
    loop: start=0, step=1, limit=4
    $region2: #{maskrcnn_benchmark_forward.5} parent=1 // loop_pre_header
      _
    $region3: #{maskrcnn_benchmark_forward.5} parent=1 // loop_header
      %s15 = sphi 0, %s19
      %p16 = scmp.ge.s32.totalorder %s15, 4
      %s25 = sphi 0, %s27
      %s28 = sphi 0, %s25
      %s29 = sphi 0, %s28
      %s45 = sphi 0, %s29
      %s51 = sphi 0, %s53
      %s54 = sphi 0, %s51
      %s55 = sphi 0, %s54
      %s71 = sphi 0, %s55
      %s75 = sphi 0, %s75
      %s77 = sphi 0, %s75
      %s78 = sphi 0, %s77
      %s92 = sphi 0, %s78
      %s96 = sphi 0, %s96
      %s98 = sphi 0, %s96
      %s99 = sphi 0, %s98
      %s113 = sphi 0, %s99
      %s117 = sphi 0, %s117
      %s119 = sphi 0, %s117
      %s120 = sphi 0, %s119
      %s134 = sphi 0, %s120
      %s138 = sphi 0, %s138
      %s140 = sphi 0, %s138
      %s141 = sphi 0, %s140
      %s155 = sphi 0, %s141
      %s161 = sphi 0, %s163
      %s164 = sphi 0, %s161
      %s165 = sphi 0, %s164
      %s181 = sphi 0, %s165
    $region4: #{maskrcnn_benchmark_forward.5} parent=1 // loop_header_branch
      %18 = sbr.rel (%p16) target = $region8
    $region5: #{maskrcnn_benchmark_forward.5} parent=1 // loop_body
      %s20 = ssub.s32 %s15, 1
      %s21 = ssub.s32 %s15, 2
      %s22 = sadd.s32 %s15, 1
      %s23 = ssub.s32 %s15, %s22
      %p24 = scmp.eq.s32.totalorder %s23, 0
      %s26 = sadd.s32 %s25, 1
      %s27 = scalar_select %p24, %s25, %s26
      %p30 = pneg %p24
      %p31 = scmp.eq.s32.totalorder %s15, 1
      %p32 = por %p30, %p31
      %p33 = scmp.ne.s32.totalorder %s25, %s28
      %p34 = scmp.eq.s32.totalorder %s15, 0
      %p35 = por %p33, %p34
      %p36 = scmp.ne.s32.totalorder %s25, %s28
      %p37 = scmp.eq.s32.totalorder %s20, 1
      %p38 = por %p36, %p37
      %p39 = scmp.ne.s32.totalorder %s28, %s29
      %p40 = scmp.eq.s32.totalorder %s20, 0
      %p41 = por %p39, %p40
      %p42 = scmp.ne.s32.totalorder %s28, %s29
      %p43 = scmp.eq.s32.totalorder %s21, 1
      %p44 = por %p42, %p43
      %p46 = scmp.ne.s32.totalorder %s29, %s45
      %p47 = scmp.eq.s32.totalorder %s21, 0
      %p48 = por %p46, %p47
      %s49 = ssub.s32 %s15, %s22
      %p50 = scmp.eq.s32.totalorder %s49, 0
      %s52 = sadd.s32 %s51, 1
      %s53 = scalar_select %p50, %s51, %s52
      %p56 = pneg %p50
      %p57 = scmp.eq.s32.totalorder %s15, 1
      %p58 = por %p56, %p57
      %p59 = scmp.ne.s32.totalorder %s51, %s54
      %p60 = scmp.eq.s32.totalorder %s15, 0
      %p61 = por %p59, %p60
      %p62 = scmp.ne.s32.totalorder %s51, %s54
      %p63 = scmp.eq.s32.totalorder %s20, 1
      %p64 = por %p62, %p63
      %p65 = scmp.ne.s32.totalorder %s54, %s55
      %p66 = scmp.eq.s32.totalorder %s20, 0
      %p67 = por %p65, %p66
      %p68 = scmp.ne.s32.totalorder %s54, %s55
      %p69 = scmp.eq.s32.totalorder %s21, 1
      %p70 = por %p68, %p69
      %p72 = scmp.ne.s32.totalorder %s55, %s71
      %p73 = scmp.eq.s32.totalorder %s21, 0
      %p74 = por %p72, %p73
      %s76 = sadd.s32 %s75, 1
      %p79 = scmp.eq.s32.totalorder %s15, 1
      %p80 = scmp.ne.s32.totalorder %s75, %s77
      %p81 = scmp.eq.s32.totalorder %s15, 0
      %p82 = por %p80, %p81
      %p83 = scmp.ne.s32.totalorder %s75, %s77
      %p84 = scmp.eq.s32.totalorder %s20, 1
      %p85 = por %p83, %p84
      %p86 = scmp.ne.s32.totalorder %s77, %s78
      %p87 = scmp.eq.s32.totalorder %s20, 0
      %p88 = por %p86, %p87
      %p89 = scmp.ne.s32.totalorder %s77, %s78
      %p90 = scmp.eq.s32.totalorder %s21, 1
      %p91 = por %p89, %p90
      %p93 = scmp.ne.s32.totalorder %s78, %s92
      %p94 = scmp.eq.s32.totalorder %s21, 0
      %p95 = por %p93, %p94
      %s97 = sadd.s32 %s96, 1
      %p100 = scmp.eq.s32.totalorder %s15, 1
      %p101 = scmp.ne.s32.totalorder %s96, %s98
      %p102 = scmp.eq.s32.totalorder %s15, 0
      %p103 = por %p101, %p102
      %p104 = scmp.ne.s32.totalorder %s96, %s98
      %p105 = scmp.eq.s32.totalorder %s20, 1
      %p106 = por %p104, %p105
      %p107 = scmp.ne.s32.totalorder %s98, %s99
      %p108 = scmp.eq.s32.totalorder %s20, 0
      %p109 = por %p107, %p108
      %p110 = scmp.ne.s32.totalorder %s98, %s99
      %p111 = scmp.eq.s32.totalorder %s21, 1
      %p112 = por %p110, %p111
      %p114 = scmp.ne.s32.totalorder %s99, %s113
      %p115 = scmp.eq.s32.totalorder %s21, 0
      %p116 = por %p114, %p115
      %s118 = sadd.s32 %s117, 1
      %p121 = scmp.eq.s32.totalorder %s15, 1
      %p122 = scmp.ne.s32.totalorder %s117, %s119
      %p123 = scmp.eq.s32.totalorder %s15, 0
      %p124 = por %p122, %p123
      %p125 = scmp.ne.s32.totalorder %s117, %s119
      %p126 = scmp.eq.s32.totalorder %s20, 1
      %p127 = por %p125, %p126
      %p128 = scmp.ne.s32.totalorder %s119, %s120
      %p129 = scmp.eq.s32.totalorder %s20, 0
      %p130 = por %p128, %p129
      %p131 = scmp.ne.s32.totalorder %s119, %s120
      %p132 = scmp.eq.s32.totalorder %s21, 1
      %p133 = por %p131, %p132
      %p135 = scmp.ne.s32.totalorder %s120, %s134
      %p136 = scmp.eq.s32.totalorder %s21, 0
      %p137 = por %p135, %p136
      %s139 = sadd.s32 %s138, 1
      %p142 = scmp.eq.s32.totalorder %s15, 1
      %p143 = scmp.ne.s32.totalorder %s138, %s140
      %p144 = scmp.eq.s32.totalorder %s15, 0
      %p145 = por %p143, %p144
      %p146 = scmp.ne.s32.totalorder %s138, %s140
      %p147 = scmp.eq.s32.totalorder %s20, 1
      %p148 = por %p146, %p147
      %p149 = scmp.ne.s32.totalorder %s140, %s141
      %p150 = scmp.eq.s32.totalorder %s20, 0
      %p151 = por %p149, %p150
      %p152 = scmp.ne.s32.totalorder %s140, %s141
      %p153 = scmp.eq.s32.totalorder %s21, 1
      %p154 = por %p152, %p153
      %p156 = scmp.ne.s32.totalorder %s141, %s155
      %p157 = scmp.eq.s32.totalorder %s21, 0
      %p158 = por %p156, %p157
      %s159 = ssub.s32 %s15, %s22
      %p160 = scmp.eq.s32.totalorder %s159, 0
      %s162 = sadd.s32 %s161, 1
      %s163 = scalar_select %p160, %s161, %s162
      %p166 = pneg %p160
      %p167 = scmp.eq.s32.totalorder %s15, 1
      %p168 = por %p166, %p167
      %p169 = scmp.ne.s32.totalorder %s161, %s164
      %p170 = scmp.eq.s32.totalorder %s15, 0
      %p171 = por %p169, %p170
      %p172 = scmp.ne.s32.totalorder %s161, %s164
      %p173 = scmp.eq.s32.totalorder %s20, 1
      %p174 = por %p172, %p173
      %p175 = scmp.ne.s32.totalorder %s164, %s165
      %p176 = scmp.eq.s32.totalorder %s20, 0
      %p177 = por %p175, %p176
      %p178 = scmp.ne.s32.totalorder %s164, %s165
      %p179 = scmp.eq.s32.totalorder %s21, 1
      %p180 = por %p178, %p179
      %p182 = scmp.ne.s32.totalorder %s165, %s181
      %p183 = scmp.eq.s32.totalorder %s21, 0
      %p184 = por %p182, %p183
      %p185 = scmp.le.s32.totalorder 1, %s15
      %p186 = scmp.lt.s32.totalorder %s15, 3
      %p187 = pnand %p185, %p186
      %p188 = pneg %p187
      // Predicated region
      $region9: #{maskrcnn_benchmark_forward.5} parent=5 // pred_check
        _
      $region10: #{maskrcnn_benchmark_forward.5} parent=5 // pred_check_branch
        %190 = sbr.rel (%p187) target = $region12
      $region11: #{maskrcnn_benchmark_forward.5} parent=5 // pred_region
        %s191 = ssub.s32 %s15, 1
        // Predicated region
        $region13: #{maskrcnn_benchmark_forward.5} parent=11 // pred_check
          %p192 = pneg %p88
        $region14: #{maskrcnn_benchmark_forward.5} parent=11 // pred_check_branch
          %194 = sbr.rel (%p192) target = $region16
        $region15: #{maskrcnn_benchmark_forward.5} parent=11 // pred_region
          _
        $region16: #{maskrcnn_benchmark_forward.5} parent=11 // pred_fallthru
          _
        // Predicated region
        $region17: #{maskrcnn_benchmark_forward.5} parent=11 // pred_check
          %p195 = pneg %p109
        $region18: #{maskrcnn_benchmark_forward.5} parent=11 // pred_check_branch
          %197 = sbr.rel (%p195) target = $region20
        $region19: #{maskrcnn_benchmark_forward.5} parent=11 // pred_region
          _
        $region20: #{maskrcnn_benchmark_forward.5} parent=11 // pred_fallthru
          _
        // Predicated region
        $region21: #{maskrcnn_benchmark_forward.5} parent=11 // pred_check
          %p198 = pneg %p130
        $region22: #{maskrcnn_benchmark_forward.5} parent=11 // pred_check_branch
          %200 = sbr.rel (%p198) target = $region24
        $region23: #{maskrcnn_benchmark_forward.5} parent=11 // pred_region
          _
        $region24: #{maskrcnn_benchmark_forward.5} parent=11 // pred_fallthru
          _
        // Predicated region
        $region25: #{maskrcnn_benchmark_forward.5} parent=11 // pred_check
          %p201 = pneg %p151
        $region26: #{maskrcnn_benchmark_forward.5} parent=11 // pred_check_branch
          %203 = sbr.rel (%p201) target = $region28
        $region27: #{maskrcnn_benchmark_forward.5} parent=11 // pred_region
          _
        $region28: #{maskrcnn_benchmark_forward.5} parent=11 // pred_fallthru
          _
      $region12: #{maskrcnn_benchmark_forward.5} parent=5 // pred_fallthru
        _
      %p204 = scmp.lt.s32.totalorder %s15, 2
      // Predicated region
      $region29: #{maskrcnn_benchmark_forward.5} parent=5 // pred_check
        %p205 = pneg %p204
      $region30: #{maskrcnn_benchmark_forward.5} parent=5 // pred_check_branch
        %207 = sbr.rel (%p205) target = $region32
      $region31: #{maskrcnn_benchmark_forward.5} parent=5 // pred_region
        // Predicated region
        $region33: #{maskrcnn_benchmark_forward.5} parent=31 // pred_check
          %p208 = pneg %p35
        $region34: #{maskrcnn_benchmark_forward.5} parent=31 // pred_check_branch
          %210 = sbr.rel (%p208) target = $region36
        $region35: #{maskrcnn_benchmark_forward.5} parent=31 // pred_region
          %p211 = scmp.lt.s32.totalorder %s15, 1
          %s212 = scalar_select %p211, %s15, 1
          %s213 = smul.addr %s212, 49
          %s214 = smul.addr %s213, 8
          %s215 = scalar_lea.vmem %s0, %s214
        $region36: #{maskrcnn_benchmark_forward.5} parent=31 // pred_fallthru
          _
        // Predicated region
        $region37: #{maskrcnn_benchmark_forward.5} parent=31 // pred_check
          %p216 = pneg %p61
        $region38: #{maskrcnn_benchmark_forward.5} parent=31 // pred_check_branch
          %218 = sbr.rel (%p216) target = $region40
        $region39: #{maskrcnn_benchmark_forward.5} parent=31 // pred_region
          %p219 = scmp.lt.s32.totalorder %s15, 1
          %s220 = scalar_select %p219, %s15, 1
          %s221 = smul.addr %s220, 32
          %s222 = smul.addr %s221, 4
          %s223 = scalar_lea.vmem %s1, %s222
        $region40: #{maskrcnn_benchmark_forward.5} parent=31 // pred_fallthru
          _
      $region32: #{maskrcnn_benchmark_forward.5} parent=5 // pred_fallthru
        _
      %p224 = scmp.le.s32.totalorder 1, %s15
      %p225 = scmp.lt.s32.totalorder %s15, 3
      %p226 = pnand %p224, %p225
      %p227 = pneg %p226
      // Predicated region
      $region41: #{maskrcnn_benchmark_forward.5} parent=5 // pred_check
        _
      $region42: #{maskrcnn_benchmark_forward.5} parent=5 // pred_check_branch
        %229 = sbr.rel (%p226) target = $region44
      $region43: #{maskrcnn_benchmark_forward.5} parent=5 // pred_region
        %s230 = ssub.s32 %s15, 1
        %p231 = scmp.lt.s32.totalorder %s20, 1
        %s232 = scalar_select %p231, %s20, 1
        %s233 = smul.addr %s232, 49
        %s234 = smul.addr %s233, 8
        %s235 = scalar_lea.vmem %s0, %s234
        %p236 = pneg %p41
        %p237 = pneg %p38
        %p238 = scmp.lt.s32.totalorder %s20, 1
        %s239 = scalar_select %p238, %s20, 1
        %s240 = smul.addr %s239, 32
        %s241 = smul.addr %s240, 4
        %s242 = scalar_lea.vmem %s1, %s241
        %p243 = pneg %p67
        %p244 = pneg %p64
        %p245 = pneg %p88
        %p246 = pneg %p85
        %p247 = pneg %p109
        %p248 = pneg %p106
        %p249 = pneg %p130
        %p250 = pneg %p127
        %p251 = pneg %p151
        %p252 = pneg %p148
        %p253 = pneg %p177
        %p254 = pneg %p174
        %s255 = sand.u32 %s164, 1
        %s256 = scalar_lea.sflag [#allocation4], %s255
        %s257 = sand.u32 %s164, 1
        %s258 = smul.addr %s257, 8
        %s259 = scalar_lea.vmem [#allocation3], %s258
        %p260 = scmp.lt.s32.totalorder %s20, 1
        %s261 = scalar_select %p260, %s20, 1
        %s262 = smul.addr %s261, 49
        %s263 = smul.addr %s262, 8
        %s264 = scalar_lea.vmem %s0, %s263
        %p265 = scmp.lt.s32.totalorder %s20, 1
        %s266 = scalar_select %p265, %s20, 1
        %s267 = smul.addr %s266, 32
        %s268 = smul.addr %s267, 4
        %s269 = scalar_lea.vmem %s1, %s268
        %v271 = vld [vmem:[%s264] sm:$0xff]
        %v272 = vld [vmem:[%s264 + $0x8] sm:$0xff]
        %v273 = vld [vmem:[%s264 + $0x10] sm:$0xff]
        %v274 = vld [vmem:[%s264 + $0x18] sm:$0xff]
        %v275 = vld [vmem:[%s264 + $0x20] sm:$0xff]
        %v276 = vld [vmem:[%s264 + $0x28] sm:$0xff]
        %v277 = vld [vmem:[%s264 + $0x30] sm:$0xff]
        %v278 = vld [vmem:[%s264 + $0x38] sm:$0xff]
        %v279 = vld [vmem:[%s264 + $0x40] sm:$0xff]
        %v280 = vld [vmem:[%s264 + $0x48] sm:$0xff]
        %v281 = vld [vmem:[%s264 + $0x50] sm:$0xff]
        %v282 = vld [vmem:[%s264 + $0x58] sm:$0xff]
        %v283 = vld [vmem:[%s264 + $0x60] sm:$0xff]
        %v284 = vld [vmem:[%s264 + $0x68] sm:$0xff]
        %v285 = vld [vmem:[%s264 + $0x70] sm:$0xff]
        %v286 = vld [vmem:[%s264 + $0x78] sm:$0xff]
        %v287 = vld [vmem:[%s264 + $0x80] sm:$0xff]
        %v288 = vld [vmem:[%s264 + $0x88] sm:$0xff]
        %v289 = vld [vmem:[%s264 + $0x90] sm:$0xff]
        %v290 = vld [vmem:[%s264 + $0x98] sm:$0xff]
        %v291 = vld [vmem:[%s264 + $0xa0] sm:$0xff]
        %v292 = vld [vmem:[%s264 + $0xa8] sm:$0xff]
        %v293 = vld [vmem:[%s264 + $0xb0] sm:$0xff]
        %v294 = vld [vmem:[%s264 + $0xb8] sm:$0xff]
        %v295 = vld [vmem:[%s264 + $0xc0] sm:$0xff]
        %v296 = vld [vmem:[%s264 + $0xc8] sm:$0xff]
        %v297 = vld [vmem:[%s264 + $0xd0] sm:$0xff]
        %v298 = vld [vmem:[%s264 + $0xd8] sm:$0xff]
        %v299 = vld [vmem:[%s264 + $0xe0] sm:$0xff]
        %v300 = vld [vmem:[%s264 + $0xe8] sm:$0xff]
        %v301 = vld [vmem:[%s264 + $0xf0] sm:$0xff]
        %v302 = vld [vmem:[%s264 + $0xf8] sm:$0xff]
        %v303 = vld [vmem:[%s264 + $0x100] sm:$0xff]
        %v304 = vld [vmem:[%s264 + $0x108] sm:$0xff]
        %v305 = vld [vmem:[%s264 + $0x110] sm:$0xff]
        %v306 = vld [vmem:[%s264 + $0x118] sm:$0xff]
        %v307 = vld [vmem:[%s264 + $0x120] sm:$0xff]
        %v308 = vld [vmem:[%s264 + $0x128] sm:$0xff]
        %v309 = vld [vmem:[%s264 + $0x130] sm:$0xff]
        %v310 = vld [vmem:[%s264 + $0x138] sm:$0xff]
        %v311 = vld [vmem:[%s264 + $0x140] sm:$0xff]
        %v312 = vld [vmem:[%s264 + $0x148] sm:$0xff]
        %v313 = vld [vmem:[%s264 + $0x150] sm:$0xff]
        %v314 = vld [vmem:[%s264 + $0x158] sm:$0xff]
        %v315 = vld [vmem:[%s264 + $0x160] sm:$0xff]
        %v316 = vld [vmem:[%s264 + $0x168] sm:$0xff]
        %v317 = vld [vmem:[%s264 + $0x170] sm:$0xff]
        %v318 = vld [vmem:[%s264 + $0x178] sm:$0xff]
        %v319 = vld [vmem:[%s264 + $0x180] sm:$0xff]
        %v320 = vlaneseq
        %v321 = vand.u32 %v320, 127
        %v322 = vadd.s32 %v321, 128
        %323 = vset.pattern.permute.xlu0 0
        %324 = vperm.xlu0 %323, %v271
        %v325 = vpop.permute.xlu0 %324
        %326 = vset.pattern.permute.xlu0 0
        %327 = vperm.xlu0 %326, %v272
        %v328 = vpop.permute.xlu0 %327
        %329 = vset.pattern.permute.xlu0 0
        %330 = vperm.xlu0 %329, %v273
        %v331 = vpop.permute.xlu0 %330
        %332 = vset.pattern.permute.xlu0 0
        %333 = vperm.xlu0 %332, %v274
        %v334 = vpop.permute.xlu0 %333
        %335 = vset.pattern.permute.xlu0 0
        %336 = vperm.xlu0 %335, %v275
        %v337 = vpop.permute.xlu0 %336
        %338 = vset.pattern.permute.xlu0 0
        %339 = vperm.xlu0 %338, %v276
        %v340 = vpop.permute.xlu0 %339
        %341 = vset.pattern.permute.xlu0 0
        %342 = vperm.xlu0 %341, %v277
        %v343 = vpop.permute.xlu0 %342
        %344 = vset.pattern.permute.xlu0 0
        %345 = vperm.xlu0 %344, %v278
        %v346 = vpop.permute.xlu0 %345
        %347 = vset.pattern.permute.xlu0 0
        %348 = vperm.xlu0 %347, %v279
        %v349 = vpop.permute.xlu0 %348
        %350 = vset.pattern.permute.xlu0 0
        %351 = vperm.xlu0 %350, %v280
        %v352 = vpop.permute.xlu0 %351
        %353 = vset.pattern.permute.xlu0 0
        %354 = vperm.xlu0 %353, %v281
        %v355 = vpop.permute.xlu0 %354
        %356 = vset.pattern.permute.xlu0 0
        %357 = vperm.xlu0 %356, %v282
        %v358 = vpop.permute.xlu0 %357
        %359 = vset.pattern.permute.xlu0 0
        %360 = vperm.xlu0 %359, %v283
        %v361 = vpop.permute.xlu0 %360
        %362 = vset.pattern.permute.xlu0 0
        %363 = vperm.xlu0 %362, %v284
        %v364 = vpop.permute.xlu0 %363
        %365 = vset.pattern.permute.xlu0 0
        %366 = vperm.xlu0 %365, %v285
        %v367 = vpop.permute.xlu0 %366
        %368 = vset.pattern.permute.xlu0 0
        %369 = vperm.xlu0 %368, %v286
        %v370 = vpop.permute.xlu0 %369
        %371 = vset.pattern.permute.xlu0 0
        %372 = vperm.xlu0 %371, %v287
        %v373 = vpop.permute.xlu0 %372
        %374 = vset.pattern.permute.xlu0 0
        %375 = vperm.xlu0 %374, %v288
        %v376 = vpop.permute.xlu0 %375
        %377 = vset.pattern.permute.xlu0 0
        %378 = vperm.xlu0 %377, %v289
        %v379 = vpop.permute.xlu0 %378
        %380 = vset.pattern.permute.xlu0 0
        %381 = vperm.xlu0 %380, %v290
        %v382 = vpop.permute.xlu0 %381
        %383 = vset.pattern.permute.xlu0 0
        %384 = vperm.xlu0 %383, %v291
        %v385 = vpop.permute.xlu0 %384
        %386 = vset.pattern.permute.xlu0 0
        %387 = vperm.xlu0 %386, %v292
        %v388 = vpop.permute.xlu0 %387
        %389 = vset.pattern.permute.xlu0 0
        %390 = vperm.xlu0 %389, %v293
        %v391 = vpop.permute.xlu0 %390
        %392 = vset.pattern.permute.xlu0 0
        %393 = vperm.xlu0 %392, %v294
        %v394 = vpop.permute.xlu0 %393
        %395 = vset.pattern.permute.xlu0 0
        %396 = vperm.xlu0 %395, %v295
        %v397 = vpop.permute.xlu0 %396
        %398 = vset.pattern.permute.xlu0 0
        %399 = vperm.xlu0 %398, %v296
        %v400 = vpop.permute.xlu0 %399
        %401 = vset.pattern.permute.xlu0 0
        %402 = vperm.xlu0 %401, %v297
        %v403 = vpop.permute.xlu0 %402
        %404 = vset.pattern.permute.xlu0 0
        %405 = vperm.xlu0 %404, %v298
        %v406 = vpop.permute.xlu0 %405
        %407 = vset.pattern.permute.xlu0 0
        %408 = vperm.xlu0 %407, %v299
        %v409 = vpop.permute.xlu0 %408
        %410 = vset.pattern.permute.xlu0 0
        %411 = vperm.xlu0 %410, %v300
        %v412 = vpop.permute.xlu0 %411
        %413 = vset.pattern.permute.xlu0 0
        %414 = vperm.xlu0 %413, %v301
        %v415 = vpop.permute.xlu0 %414
        %416 = vset.pattern.permute.xlu0 0
        %417 = vperm.xlu0 %416, %v302
        %v418 = vpop.permute.xlu0 %417
        %419 = vset.pattern.permute.xlu0 0
        %420 = vperm.xlu0 %419, %v303
        %v421 = vpop.permute.xlu0 %420
        %422 = vset.pattern.permute.xlu0 0
        %423 = vperm.xlu0 %422, %v304
        %v424 = vpop.permute.xlu0 %423
        %425 = vset.pattern.permute.xlu0 0
        %426 = vperm.xlu0 %425, %v305
        %v427 = vpop.permute.xlu0 %426
        %428 = vset.pattern.permute.xlu0 0
        %429 = vperm.xlu0 %428, %v306
        %v430 = vpop.permute.xlu0 %429
        %431 = vset.pattern.permute.xlu0 0
        %432 = vperm.xlu0 %431, %v307
        %v433 = vpop.permute.xlu0 %432
        %434 = vset.pattern.permute.xlu0 0
        %435 = vperm.xlu0 %434, %v308
        %v436 = vpop.permute.xlu0 %435
        %437 = vset.pattern.permute.xlu0 0
        %438 = vperm.xlu0 %437, %v309
        %v439 = vpop.permute.xlu0 %438
        %440 = vset.pattern.permute.xlu0 0
        %441 = vperm.xlu0 %440, %v310
        %v442 = vpop.permute.xlu0 %441
        %443 = vset.pattern.permute.xlu0 0
        %444 = vperm.xlu0 %443, %v311
        %v445 = vpop.permute.xlu0 %444
        %446 = vset.pattern.permute.xlu0 0
        %447 = vperm.xlu0 %446, %v312
        %v448 = vpop.permute.xlu0 %447
        %449 = vset.pattern.permute.xlu0 0
        %450 = vperm.xlu0 %449, %v313
        %v451 = vpop.permute.xlu0 %450
        %452 = vset.pattern.permute.xlu0 0
        %453 = vperm.xlu0 %452, %v314
        %v454 = vpop.permute.xlu0 %453
        %455 = vset.pattern.permute.xlu0 0
        %456 = vperm.xlu0 %455, %v315
        %v457 = vpop.permute.xlu0 %456
        %458 = vset.pattern.permute.xlu0 0
        %459 = vperm.xlu0 %458, %v316
        %v460 = vpop.permute.xlu0 %459
        %461 = vset.pattern.permute.xlu0 0
        %462 = vperm.xlu0 %461, %v317
        %v463 = vpop.permute.xlu0 %462
        %464 = vset.pattern.permute.xlu0 0
        %465 = vperm.xlu0 %464, %v318
        %v466 = vpop.permute.xlu0 %465
        %467 = vset.pattern.permute.xlu0 0
        %468 = vperm.xlu0 %467, %v319
        %v469 = vpop.permute.xlu0 %468
        %vm470 = vcmp.eq.s32.totalorder %v321, %v325
        %vm471 = vcmp.eq.s32.totalorder %v322, %v325
        %vm472 = vcmp.eq.s32.totalorder %v321, %v328
        %vm473 = vcmp.eq.s32.totalorder %v322, %v328
        %vm474 = vcmp.eq.s32.totalorder %v321, %v331
        %vm475 = vcmp.eq.s32.totalorder %v322, %v331
        %vm476 = vcmp.eq.s32.totalorder %v321, %v334
        %vm477 = vcmp.eq.s32.totalorder %v322, %v334
        %vm478 = vcmp.eq.s32.totalorder %v321, %v337
        %vm479 = vcmp.eq.s32.totalorder %v322, %v337
        %vm480 = vcmp.eq.s32.totalorder %v321, %v340
        %vm481 = vcmp.eq.s32.totalorder %v322, %v340
        %vm482 = vcmp.eq.s32.totalorder %v321, %v343
        %vm483 = vcmp.eq.s32.totalorder %v322, %v343
        %vm484 = vcmp.eq.s32.totalorder %v321, %v346
        %vm485 = vcmp.eq.s32.totalorder %v322, %v346
        %vm486 = vcmp.eq.s32.totalorder %v321, %v349
        %vm487 = vcmp.eq.s32.totalorder %v322, %v349
        %vm488 = vcmp.eq.s32.totalorder %v321, %v352
        %vm489 = vcmp.eq.s32.totalorder %v322, %v352
        %vm490 = vcmp.eq.s32.totalorder %v321, %v355
        %vm491 = vcmp.eq.s32.totalorder %v322, %v355
        %vm492 = vcmp.eq.s32.totalorder %v321, %v358
        %vm493 = vcmp.eq.s32.totalorder %v322, %v358
        %vm494 = vcmp.eq.s32.totalorder %v321, %v361
        %vm495 = vcmp.eq.s32.totalorder %v322, %v361
        %vm496 = vcmp.eq.s32.totalorder %v321, %v364
        %vm497 = vcmp.eq.s32.totalorder %v322, %v364
        %vm498 = vcmp.eq.s32.totalorder %v321, %v367
        %vm499 = vcmp.eq.s32.totalorder %v322, %v367
        %vm500 = vcmp.eq.s32.totalorder %v321, %v370
        %vm501 = vcmp.eq.s32.totalorder %v322, %v370
        %vm502 = vcmp.eq.s32.totalorder %v321, %v373
        %vm503 = vcmp.eq.s32.totalorder %v322, %v373
        %vm504 = vcmp.eq.s32.totalorder %v321, %v376
        %vm505 = vcmp.eq.s32.totalorder %v322, %v376
        %vm506 = vcmp.eq.s32.totalorder %v321, %v379
        %vm507 = vcmp.eq.s32.totalorder %v322, %v379
        %vm508 = vcmp.eq.s32.totalorder %v321, %v382
        %vm509 = vcmp.eq.s32.totalorder %v322, %v382
        %vm510 = vcmp.eq.s32.totalorder %v321, %v385
        %vm511 = vcmp.eq.s32.totalorder %v322, %v385
        %vm512 = vcmp.eq.s32.totalorder %v321, %v388
        %vm513 = vcmp.eq.s32.totalorder %v322, %v388
        %vm514 = vcmp.eq.s32.totalorder %v321, %v391
        %vm515 = vcmp.eq.s32.totalorder %v322, %v391
        %vm516 = vcmp.eq.s32.totalorder %v321, %v394
        %vm517 = vcmp.eq.s32.totalorder %v322, %v394
        %vm518 = vcmp.eq.s32.totalorder %v321, %v397
        %vm519 = vcmp.eq.s32.totalorder %v322, %v397
        %vm520 = vcmp.eq.s32.totalorder %v321, %v400
        %vm521 = vcmp.eq.s32.totalorder %v322, %v400
        %vm522 = vcmp.eq.s32.totalorder %v321, %v403
        %vm523 = vcmp.eq.s32.totalorder %v322, %v403
        %vm524 = vcmp.eq.s32.totalorder %v321, %v406
        %vm525 = vcmp.eq.s32.totalorder %v322, %v406
        %vm526 = vcmp.eq.s32.totalorder %v321, %v409
        %vm527 = vcmp.eq.s32.totalorder %v322, %v409
        %vm528 = vcmp.eq.s32.totalorder %v321, %v412
        %vm529 = vcmp.eq.s32.totalorder %v322, %v412
        %vm530 = vcmp.eq.s32.totalorder %v321, %v415
        %vm531 = vcmp.eq.s32.totalorder %v322, %v415
        %vm532 = vcmp.eq.s32.totalorder %v321, %v418
        %vm533 = vcmp.eq.s32.totalorder %v322, %v418
        %vm534 = vcmp.eq.s32.totalorder %v321, %v421
        %vm535 = vcmp.eq.s32.totalorder %v322, %v421
        %vm536 = vcmp.eq.s32.totalorder %v321, %v424
        %vm537 = vcmp.eq.s32.totalorder %v322, %v424
        %vm538 = vcmp.eq.s32.totalorder %v321, %v427
        %vm539 = vcmp.eq.s32.totalorder %v322, %v427
        %vm540 = vcmp.eq.s32.totalorder %v321, %v430
        %vm541 = vcmp.eq.s32.totalorder %v322, %v430
        %vm542 = vcmp.eq.s32.totalorder %v321, %v433
        %vm543 = vcmp.eq.s32.totalorder %v322, %v433
        %vm544 = vcmp.eq.s32.totalorder %v321, %v436
        %vm545 = vcmp.eq.s32.totalorder %v322, %v436
        %vm546 = vcmp.eq.s32.totalorder %v321, %v439
        %vm547 = vcmp.eq.s32.totalorder %v322, %v439
        %vm548 = vcmp.eq.s32.totalorder %v321, %v442
        %vm549 = vcmp.eq.s32.totalorder %v322, %v442
        %vm550 = vcmp.eq.s32.totalorder %v321, %v445
        %vm551 = vcmp.eq.s32.totalorder %v322, %v445
        %vm552 = vcmp.eq.s32.totalorder %v321, %v448
        %vm553 = vcmp.eq.s32.totalorder %v322, %v448
        %vm554 = vcmp.eq.s32.totalorder %v321, %v451
        %vm555 = vcmp.eq.s32.totalorder %v322, %v451
        %vm556 = vcmp.eq.s32.totalorder %v321, %v454
        %vm557 = vcmp.eq.s32.totalorder %v322, %v454
        %vm558 = vcmp.eq.s32.totalorder %v321, %v457
        %vm559 = vcmp.eq.s32.totalorder %v322, %v457
        %vm560 = vcmp.eq.s32.totalorder %v321, %v460
        %vm561 = vcmp.eq.s32.totalorder %v322, %v460
        %vm562 = vcmp.eq.s32.totalorder %v321, %v463
        %vm563 = vcmp.eq.s32.totalorder %v322, %v463
        %vm564 = vcmp.eq.s32.totalorder %v321, %v466
        %vm565 = vcmp.eq.s32.totalorder %v322, %v466
        %vm566 = vcmp.eq.s32.totalorder %v321, %v469
        %vm567 = vcmp.eq.s32.totalorder %v322, %v469
        %v568 = vsel %vm470, 1, 0
        %v569 = vsel %vm471, 1, 0
        %v570 = vsel %vm472, 1, 0
        %v571 = vsel %vm473, 1, 0
        %v572 = vsel %vm474, 1, 0
        %v573 = vsel %vm475, 1, 0
        %v574 = vsel %vm476, 1, 0
        %v575 = vsel %vm477, 1, 0
        %v576 = vsel %vm478, 1, 0
        %v577 = vsel %vm479, 1, 0
        %v578 = vsel %vm480, 1, 0
        %v579 = vsel %vm481, 1, 0
        %v580 = vsel %vm482, 1, 0
        %v581 = vsel %vm483, 1, 0
        %v582 = vsel %vm484, 1, 0
        %v583 = vsel %vm485, 1, 0
        %v584 = vsel %vm486, 1, 0
        %v585 = vsel %vm487, 1, 0
        %v586 = vsel %vm488, 1, 0
        %v587 = vsel %vm489, 1, 0
        %v588 = vsel %vm490, 1, 0
        %v589 = vsel %vm491, 1, 0
        %v590 = vsel %vm492, 1, 0
        %v591 = vsel %vm493, 1, 0
        %v592 = vsel %vm494, 1, 0
        %v593 = vsel %vm495, 1, 0
        %v594 = vsel %vm496, 1, 0
        %v595 = vsel %vm497, 1, 0
        %v596 = vsel %vm498, 1, 0
        %v597 = vsel %vm499, 1, 0
        %v598 = vsel %vm500, 1, 0
        %v599 = vsel %vm501, 1, 0
        %v600 = vsel %vm502, 1, 0
        %v601 = vsel %vm503, 1, 0
        %v602 = vsel %vm504, 1, 0
        %v603 = vsel %vm505, 1, 0
        %v604 = vsel %vm506, 1, 0
        %v605 = vsel %vm507, 1, 0
        %v606 = vsel %vm508, 1, 0
        %v607 = vsel %vm509, 1, 0
        %v608 = vsel %vm510, 1, 0
        %v609 = vsel %vm511, 1, 0
        %v610 = vsel %vm512, 1, 0
        %v611 = vsel %vm513, 1, 0
        %v612 = vsel %vm514, 1, 0
        %v613 = vsel %vm515, 1, 0
        %v614 = vsel %vm516, 1, 0
        %v615 = vsel %vm517, 1, 0
        %v616 = vsel %vm518, 1, 0
        %v617 = vsel %vm519, 1, 0
        %v618 = vsel %vm520, 1, 0
        %v619 = vsel %vm521, 1, 0
        %v620 = vsel %vm522, 1, 0
        %v621 = vsel %vm523, 1, 0
        %v622 = vsel %vm524, 1, 0
        %v623 = vsel %vm525, 1, 0
        %v624 = vsel %vm526, 1, 0
        %v625 = vsel %vm527, 1, 0
        %v626 = vsel %vm528, 1, 0
        %v627 = vsel %vm529, 1, 0
        %v628 = vsel %vm530, 1, 0
        %v629 = vsel %vm531, 1, 0
        %v630 = vsel %vm532, 1, 0
        %v631 = vsel %vm533, 1, 0
        %v632 = vsel %vm534, 1, 0
        %v633 = vsel %vm535, 1, 0
        %v634 = vsel %vm536, 1, 0
        %v635 = vsel %vm537, 1, 0
        %v636 = vsel %vm538, 1, 0
        %v637 = vsel %vm539, 1, 0
        %v638 = vsel %vm540, 1, 0
        %v639 = vsel %vm541, 1, 0
        %v640 = vsel %vm542, 1, 0
        %v641 = vsel %vm543, 1, 0
        %v642 = vsel %vm544, 1, 0
        %v643 = vsel %vm545, 1, 0
        %v644 = vsel %vm546, 1, 0
        %v645 = vsel %vm547, 1, 0
        %v646 = vsel %vm548, 1, 0
        %v647 = vsel %vm549, 1, 0
        %v648 = vsel %vm550, 1, 0
        %v649 = vsel %vm551, 1, 0
        %v650 = vsel %vm552, 1, 0
        %v651 = vsel %vm553, 1, 0
        %v652 = vsel %vm554, 1, 0
        %v653 = vsel %vm555, 1, 0
        %v654 = vsel %vm556, 1, 0
        %v655 = vsel %vm557, 1, 0
        %v656 = vsel %vm558, 1, 0
        %v657 = vsel %vm559, 1, 0
        %v658 = vsel %vm560, 1, 0
        %v659 = vsel %vm561, 1, 0
        %v660 = vsel %vm562, 1, 0
        %v661 = vsel %vm563, 1, 0
        %v662 = vsel %vm564, 1, 0
        %v663 = vsel %vm565, 1, 0
        %v664 = vsel %vm566, 1, 0
        %v665 = vsel %vm567, 1, 0
        %v666 = vcvt.s32.f32 %v568
        %v667 = vcvt.s32.f32 %v569
        %v668 = vcvt.s32.f32 %v570
        %v669 = vcvt.s32.f32 %v571
        %v670 = vcvt.s32.f32 %v572
        %v671 = vcvt.s32.f32 %v573
        %v672 = vcvt.s32.f32 %v574
        %v673 = vcvt.s32.f32 %v575
        %v674 = vcvt.s32.f32 %v576
        %v675 = vcvt.s32.f32 %v577
        %v676 = vcvt.s32.f32 %v578
        %v677 = vcvt.s32.f32 %v579
        %v678 = vcvt.s32.f32 %v580
        %v679 = vcvt.s32.f32 %v581
        %v680 = vcvt.s32.f32 %v582
        %v681 = vcvt.s32.f32 %v583
        %v682 = vcvt.s32.f32 %v584
        %v683 = vcvt.s32.f32 %v585
        %v684 = vcvt.s32.f32 %v586
        %v685 = vcvt.s32.f32 %v587
        %v686 = vcvt.s32.f32 %v588
        %v687 = vcvt.s32.f32 %v589
        %v688 = vcvt.s32.f32 %v590
        %v689 = vcvt.s32.f32 %v591
        %v690 = vcvt.s32.f32 %v592
        %v691 = vcvt.s32.f32 %v593
        %v692 = vcvt.s32.f32 %v594
        %v693 = vcvt.s32.f32 %v595
        %v694 = vcvt.s32.f32 %v596
        %v695 = vcvt.s32.f32 %v597
        %v696 = vcvt.s32.f32 %v598
        %v697 = vcvt.s32.f32 %v599
        %v698 = vcvt.s32.f32 %v600
        %v699 = vcvt.s32.f32 %v601
        %v700 = vcvt.s32.f32 %v602
        %v701 = vcvt.s32.f32 %v603
        %v702 = vcvt.s32.f32 %v604
        %v703 = vcvt.s32.f32 %v605
        %v704 = vcvt.s32.f32 %v606
        %v705 = vcvt.s32.f32 %v607
        %v706 = vcvt.s32.f32 %v608
        %v707 = vcvt.s32.f32 %v609
        %v708 = vcvt.s32.f32 %v610
        %v709 = vcvt.s32.f32 %v611
        %v710 = vcvt.s32.f32 %v612
        %v711 = vcvt.s32.f32 %v613
        %v712 = vcvt.s32.f32 %v614
        %v713 = vcvt.s32.f32 %v615
        %v714 = vcvt.s32.f32 %v616
        %v715 = vcvt.s32.f32 %v617
        %v716 = vcvt.s32.f32 %v618
        %v717 = vcvt.s32.f32 %v619
        %v718 = vcvt.s32.f32 %v620
        %v719 = vcvt.s32.f32 %v621
        %v720 = vcvt.s32.f32 %v622
        %v721 = vcvt.s32.f32 %v623
        %v722 = vcvt.s32.f32 %v624
        %v723 = vcvt.s32.f32 %v625
        %v724 = vcvt.s32.f32 %v626
        %v725 = vcvt.s32.f32 %v627
        %v726 = vcvt.s32.f32 %v628
        %v727 = vcvt.s32.f32 %v629
        %v728 = vcvt.s32.f32 %v630
        %v729 = vcvt.s32.f32 %v631
        %v730 = vcvt.s32.f32 %v632
        %v731 = vcvt.s32.f32 %v633
        %v732 = vcvt.s32.f32 %v634
        %v733 = vcvt.s32.f32 %v635
        %v734 = vcvt.s32.f32 %v636
        %v735 = vcvt.s32.f32 %v637
        %v736 = vcvt.s32.f32 %v638
        %v737 = vcvt.s32.f32 %v639
        %v738 = vcvt.s32.f32 %v640
        %v739 = vcvt.s32.f32 %v641
        %v740 = vcvt.s32.f32 %v642
        %v741 = vcvt.s32.f32 %v643
        %v742 = vcvt.s32.f32 %v644
        %v743 = vcvt.s32.f32 %v645
        %v744 = vcvt.s32.f32 %v646
        %v745 = vcvt.s32.f32 %v647
        %v746 = vcvt.s32.f32 %v648
        %v747 = vcvt.s32.f32 %v649
        %v748 = vcvt.s32.f32 %v650
        %v749 = vcvt.s32.f32 %v651
        %v750 = vcvt.s32.f32 %v652
        %v751 = vcvt.s32.f32 %v653
        %v752 = vcvt.s32.f32 %v654
        %v753 = vcvt.s32.f32 %v655
        %v754 = vcvt.s32.f32 %v656
        %v755 = vcvt.s32.f32 %v657
        %v756 = vcvt.s32.f32 %v658
        %v757 = vcvt.s32.f32 %v659
        %v758 = vcvt.s32.f32 %v660
        %v759 = vcvt.s32.f32 %v661
        %v760 = vcvt.s32.f32 %v662
        %v761 = vcvt.s32.f32 %v663
        %v762 = vcvt.s32.f32 %v664
        %v763 = vcvt.s32.f32 %v665
        %v764 = vpack.c.bf16 %v668, %v666
        %v765 = vpack.c.bf16 %v669, %v667
        %v766 = vpack.c.bf16 %v672, %v670
        %v767 = vpack.c.bf16 %v673, %v671
        %v768 = vpack.c.bf16 %v676, %v674
        %v769 = vpack.c.bf16 %v677, %v675
        %v770 = vpack.c.bf16 %v680, %v678
        %v771 = vpack.c.bf16 %v681, %v679
        %v772 = vpack.c.bf16 %v684, %v682
        %v773 = vpack.c.bf16 %v685, %v683
        %v774 = vpack.c.bf16 %v688, %v686
        %v775 = vpack.c.bf16 %v689, %v687
        %v776 = vpack.c.bf16 %v692, %v690
        %v777 = vpack.c.bf16 %v693, %v691
        %v778 = vpack.c.bf16 %v696, %v694
        %v779 = vpack.c.bf16 %v697, %v695
        %v780 = vpack.c.bf16 %v700, %v698
        %v781 = vpack.c.bf16 %v701, %v699
        %v782 = vpack.c.bf16 %v704, %v702
        %v783 = vpack.c.bf16 %v705, %v703
        %v784 = vpack.c.bf16 %v708, %v706
        %v785 = vpack.c.bf16 %v709, %v707
        %v786 = vpack.c.bf16 %v712, %v710
        %v787 = vpack.c.bf16 %v713, %v711
        %v788 = vpack.c.bf16 %v716, %v714
        %v789 = vpack.c.bf16 %v717, %v715
        %v790 = vpack.c.bf16 %v720, %v718
        %v791 = vpack.c.bf16 %v721, %v719
        %v792 = vpack.c.bf16 %v724, %v722
        %v793 = vpack.c.bf16 %v725, %v723
        %v794 = vpack.c.bf16 %v728, %v726
        %v795 = vpack.c.bf16 %v729, %v727
        %v796 = vpack.c.bf16 %v732, %v730
        %v797 = vpack.c.bf16 %v733, %v731
        %v798 = vpack.c.bf16 %v736, %v734
        %v799 = vpack.c.bf16 %v737, %v735
        %v800 = vpack.c.bf16 %v740, %v738
        %v801 = vpack.c.bf16 %v741, %v739
        %v802 = vpack.c.bf16 %v744, %v742
        %v803 = vpack.c.bf16 %v745, %v743
        %v804 = vpack.c.bf16 %v748, %v746
        %v805 = vpack.c.bf16 %v749, %v747
        %v806 = vpack.c.bf16 %v752, %v750
        %v807 = vpack.c.bf16 %v753, %v751
        %v808 = vpack.c.bf16 %v756, %v754
        %v809 = vpack.c.bf16 %v757, %v755
        %v810 = vpack.c.bf16 %v760, %v758
        %v811 = vpack.c.bf16 %v761, %v759
        %v812 = vpack.c.bf16 %v762, %v762
        %v813 = vpack.c.bf16 %v763, %v763
        %v814 = vld [vmem:[%s269] sm:$0xf]
        %v815 = vld [vmem:[%s269 + $0x4] sm:$0xf]
        %v816 = vld [vmem:[%s269 + $0x8] sm:$0xf]
        %v817 = vld [vmem:[%s269 + $0xc] sm:$0xf]
        %v818 = vld [vmem:[%s269 + $0x10] sm:$0xf]
        %v819 = vld [vmem:[%s269 + $0x14] sm:$0xf]
        %v820 = vld [vmem:[%s269 + $0x18] sm:$0xf]
        %v821 = vld [vmem:[%s269 + $0x1c] sm:$0xf]
        %v822 = vld [vmem:[%s269 + $0x20] sm:$0xf]
        %v823 = vld [vmem:[%s269 + $0x24] sm:$0xf]
        %v824 = vld [vmem:[%s269 + $0x28] sm:$0xf]
        %v825 = vld [vmem:[%s269 + $0x2c] sm:$0xf]
        %v826 = vld [vmem:[%s269 + $0x30] sm:$0xf]
        %v827 = vld [vmem:[%s269 + $0x34] sm:$0xf]
        %v828 = vld [vmem:[%s269 + $0x38] sm:$0xf]
        %v829 = vld [vmem:[%s269 + $0x3c] sm:$0xf]
        %v830 = vld [vmem:[%s269 + $0x40] sm:$0xf]
        %v831 = vld [vmem:[%s269 + $0x44] sm:$0xf]
        %v832 = vld [vmem:[%s269 + $0x48] sm:$0xf]
        %v833 = vld [vmem:[%s269 + $0x4c] sm:$0xf]
        %v834 = vld [vmem:[%s269 + $0x50] sm:$0xf]
        %v835 = vld [vmem:[%s269 + $0x54] sm:$0xf]
        %v836 = vld [vmem:[%s269 + $0x58] sm:$0xf]
        %v837 = vld [vmem:[%s269 + $0x5c] sm:$0xf]
        %v838 = vld [vmem:[%s269 + $0x60] sm:$0xf]
        %v839 = vld [vmem:[%s269 + $0x64] sm:$0xf]
        %v840 = vld [vmem:[%s269 + $0x68] sm:$0xf]
        %v841 = vld [vmem:[%s269 + $0x6c] sm:$0xf]
        %v842 = vld [vmem:[%s269 + $0x70] sm:$0xf]
        %v843 = vld [vmem:[%s269 + $0x74] sm:$0xf]
        %v844 = vld [vmem:[%s269 + $0x78] sm:$0xf]
        %v845 = vld [vmem:[%s269 + $0x7c] sm:$0xf]
        %v878 = vunpack.c.l.b16 %v814
        %v879 = vunpack.c.l.b16 %v815
        %v880 = vunpack.c.l.b16 %v816
        %v881 = vunpack.c.l.b16 %v817
        %v882 = vunpack.c.l.b16 %v818
        %v883 = vunpack.c.l.b16 %v819
        %v884 = vunpack.c.l.b16 %v820
        %v885 = vunpack.c.l.b16 %v821
        %v886 = vunpack.c.l.b16 %v822
        %v887 = vunpack.c.l.b16 %v823
        %v888 = vunpack.c.l.b16 %v824
        %v889 = vunpack.c.l.b16 %v825
        %v890 = vunpack.c.l.b16 %v826
        %v891 = vunpack.c.l.b16 %v827
        %v892 = vunpack.c.l.b16 %v828
        %v893 = vunpack.c.l.b16 %v829
        %v894 = vunpack.c.l.b16 %v830
        %v895 = vunpack.c.l.b16 %v831
        %v896 = vunpack.c.l.b16 %v832
        %v897 = vunpack.c.l.b16 %v833
        %v898 = vunpack.c.l.b16 %v834
        %v899 = vunpack.c.l.b16 %v835
        %v900 = vunpack.c.l.b16 %v836
        %v901 = vunpack.c.l.b16 %v837
        %v902 = vunpack.c.l.b16 %v838
        %v903 = vunpack.c.l.b16 %v839
        %v904 = vunpack.c.l.b16 %v840
        %v905 = vunpack.c.l.b16 %v841
        %v906 = vunpack.c.l.b16 %v842
        %v907 = vunpack.c.l.b16 %v843
        %v908 = vunpack.c.l.b16 %v844
        %v909 = vunpack.c.l.b16 %v845
        %v910 = vpack.c.b16 %v879, %v878
        %v911 = vpack.c.b16 %v881, %v880
        %v912 = vpack.c.b16 %v883, %v882
        %v913 = vpack.c.b16 %v885, %v884
        %v914 = vpack.c.b16 %v887, %v886
        %v915 = vpack.c.b16 %v889, %v888
        %v916 = vpack.c.b16 %v891, %v890
        %v917 = vpack.c.b16 %v893, %v892
        %v918 = vpack.c.b16 %v895, %v894
        %v919 = vpack.c.b16 %v897, %v896
        %v920 = vpack.c.b16 %v899, %v898
        %v921 = vpack.c.b16 %v901, %v900
        %v922 = vpack.c.b16 %v903, %v902
        %v923 = vpack.c.b16 %v905, %v904
        %v924 = vpack.c.b16 %v907, %v906
        %v925 = vpack.c.b16 %v909, %v908
        %942 = vmatprep.subr.bf16.mxu0 0
        %943 = vmatpush1.bf16.msra.mxu0 %v917
        %944 = vmatprep.subr.bf16.mxu0 0
        %945 = vmatpush1.bf16.msra.mxu0 %v916
        %946 = vmatprep.subr.bf16.mxu0 0
        %947 = vmatpush1.bf16.msra.mxu0 %v915
        %948 = vmatprep.subr.bf16.mxu0 0
        %949 = vmatpush1.bf16.msra.mxu0 %v914
        %950 = vmatprep.subr.bf16.mxu0 0
        %951 = vmatpush1.bf16.msra.mxu0 %v913
        %952 = vmatprep.subr.bf16.mxu0 0
        %953 = vmatpush1.bf16.msra.mxu0 %v912
        %954 = vmatprep.subr.bf16.mxu0 0
        %955 = vmatpush1.bf16.msra.mxu0 %v911
        %956 = vmatprep.subr.bf16.mxu0 0
        %957 = vmatpush1.bf16.msra.mxu0 %v910
        %958 = vmatprep.subr.bf16.mxu0 0
        %959 = vmatpush2.bf16.msra.mxu0 %v925
        %960 = vmatprep.subr.bf16.mxu0 0
        %961 = vmatpush2.bf16.msra.mxu0 %v924
        %962 = vmatprep.subr.bf16.mxu0 0
        %963 = vmatpush2.bf16.msra.mxu0 %v923
        %964 = vmatprep.subr.bf16.mxu0 0
        %965 = vmatpush2.bf16.msra.mxu0 %v922
        %966 = vmatprep.subr.bf16.mxu0 0
        %967 = vmatpush2.bf16.msra.mxu0 %v921
        %968 = vmatprep.subr.bf16.mxu0 0
        %969 = vmatpush2.bf16.msra.mxu0 %v920
        %970 = vmatprep.subr.bf16.mxu0 0
        %971 = vmatpush2.bf16.msra.mxu0 %v919
        %972 = vmatprep.subr.bf16.mxu0 0
        %973 = vmatpush2.bf16.msra.mxu0 %v918
        %974 = vmatprep.mubr.bf16.mxu0 %v765
        %975 = vmatmul.mubr.bf16.gmra.mxu0 %v764
        %v976 = vpop.f32.mrf.mxu0
        %v977 = vadd.f32 0.0, %v976
        %v978 = vpop.f32.mrf.mxu0
        %v979 = vpop.f32.mrf.mxu0
        %v980 = vadd.f32 0.0, %v979
        %v981 = vpop.f32.mrf.mxu0
        %982 = vmatprep.mubr.bf16.mxu0 %v767
        %983 = vmatmul.mubr.bf16.gmra.mxu0 %v766
        %v984 = vpop.f32.mrf.mxu0
        %v985 = vadd.f32 0.0, %v984
        %v986 = vpop.f32.mrf.mxu0
        %v987 = vpop.f32.mrf.mxu0
        %v988 = vadd.f32 0.0, %v987
        %v989 = vpop.f32.mrf.mxu0
        %990 = vmatprep.mubr.bf16.mxu0 %v769
        %991 = vmatmul.mubr.bf16.gmra.mxu0 %v768
        %v992 = vpop.f32.mrf.mxu0
        %v993 = vadd.f32 0.0, %v992
        %v994 = vpop.f32.mrf.mxu0
        %v995 = vpop.f32.mrf.mxu0
        %v996 = vadd.f32 0.0, %v995
        %v997 = vpop.f32.mrf.mxu0
        %998 = vmatprep.mubr.bf16.mxu0 %v771
        %999 = vmatmul.mubr.bf16.gmra.mxu0 %v770
        %v1000 = vpop.f32.mrf.mxu0
        %v1001 = vadd.f32 0.0, %v1000
        %v1002 = vpop.f32.mrf.mxu0
        %v1003 = vpop.f32.mrf.mxu0
        %v1004 = vadd.f32 0.0, %v1003
        %v1005 = vpop.f32.mrf.mxu0
        %1006 = vmatprep.mubr.bf16.mxu0 %v773
        %1007 = vmatmul.mubr.bf16.gmra.mxu0 %v772
        %v1008 = vpop.f32.mrf.mxu0
        %v1009 = vadd.f32 0.0, %v1008
        %v1010 = vpop.f32.mrf.mxu0
        %v1011 = vpop.f32.mrf.mxu0
        %v1012 = vadd.f32 0.0, %v1011
        %v1013 = vpop.f32.mrf.mxu0
        %1014 = vmatprep.mubr.bf16.mxu0 %v775
        %1015 = vmatmul.mubr.bf16.gmra.mxu0 %v774
        %v1016 = vpop.f32.mrf.mxu0
        %v1017 = vadd.f32 0.0, %v1016
        %v1018 = vpop.f32.mrf.mxu0
        %v1019 = vpop.f32.mrf.mxu0
        %v1020 = vadd.f32 0.0, %v1019
        %v1021 = vpop.f32.mrf.mxu0
        %1022 = vmatprep.mubr.bf16.mxu0 %v777
        %1023 = vmatmul.mubr.bf16.gmra.mxu0 %v776
        %v1024 = vpop.f32.mrf.mxu0
        %v1025 = vadd.f32 0.0, %v1024
        %v1026 = vpop.f32.mrf.mxu0
        %v1027 = vpop.f32.mrf.mxu0
        %v1028 = vadd.f32 0.0, %v1027
        %v1029 = vpop.f32.mrf.mxu0
        %1030 = vmatprep.mubr.bf16.mxu0 %v779
        %1031 = vmatmul.mubr.bf16.gmra.mxu0 %v778
        %v1032 = vpop.f32.mrf.mxu0
        %v1033 = vadd.f32 0.0, %v1032
        %v1034 = vpop.f32.mrf.mxu0
        %v1035 = vpop.f32.mrf.mxu0
        %v1036 = vadd.f32 0.0, %v1035
        %v1037 = vpop.f32.mrf.mxu0
        %1038 = vmatprep.mubr.bf16.mxu0 %v781
        %1039 = vmatmul.mubr.bf16.gmra.mxu0 %v780
        %v1040 = vpop.f32.mrf.mxu0
        %v1041 = vadd.f32 0.0, %v1040
        %v1042 = vpop.f32.mrf.mxu0
        %v1043 = vpop.f32.mrf.mxu0
        %v1044 = vadd.f32 0.0, %v1043
        %v1045 = vpop.f32.mrf.mxu0
        %1046 = vmatprep.mubr.bf16.mxu0 %v783
        %1047 = vmatmul.mubr.bf16.gmra.mxu0 %v782
        %v1048 = vpop.f32.mrf.mxu0
        %v1049 = vadd.f32 0.0, %v1048
        %v1050 = vpop.f32.mrf.mxu0
        %v1051 = vpop.f32.mrf.mxu0
        %v1052 = vadd.f32 0.0, %v1051
        %v1053 = vpop.f32.mrf.mxu0
        %1054 = vmatprep.mubr.bf16.mxu0 %v785
        %1055 = vmatmul.mubr.bf16.gmra.mxu0 %v784
        %v1056 = vpop.f32.mrf.mxu0
        %v1057 = vadd.f32 0.0, %v1056
        %v1058 = vpop.f32.mrf.mxu0
        %v1059 = vpop.f32.mrf.mxu0
        %v1060 = vadd.f32 0.0, %v1059
        %v1061 = vpop.f32.mrf.mxu0
        %1062 = vmatprep.mubr.bf16.mxu0 %v787
        %1063 = vmatmul.mubr.bf16.gmra.mxu0 %v786
        %v1064 = vpop.f32.mrf.mxu0
        %v1065 = vadd.f32 0.0, %v1064
        %v1066 = vpop.f32.mrf.mxu0
        %v1067 = vpop.f32.mrf.mxu0
        %v1068 = vadd.f32 0.0, %v1067
        %v1069 = vpop.f32.mrf.mxu0
        %1070 = vmatprep.mubr.bf16.mxu0 %v789
        %1071 = vmatmul.mubr.bf16.gmra.mxu0 %v788
        %v1072 = vpop.f32.mrf.mxu0
        %v1073 = vadd.f32 0.0, %v1072
        %v1074 = vpop.f32.mrf.mxu0
        %v1075 = vpop.f32.mrf.mxu0
        %v1076 = vadd.f32 0.0, %v1075
        %v1077 = vpop.f32.mrf.mxu0
        %1078 = vmatprep.mubr.bf16.mxu0 %v791
        %1079 = vmatmul.mubr.bf16.gmra.mxu0 %v790
        %v1080 = vpop.f32.mrf.mxu0
        %v1081 = vadd.f32 0.0, %v1080
        %v1082 = vpop.f32.mrf.mxu0
        %v1083 = vpop.f32.mrf.mxu0
        %v1084 = vadd.f32 0.0, %v1083
        %v1085 = vpop.f32.mrf.mxu0
        %1086 = vmatprep.mubr.bf16.mxu0 %v793
        %1087 = vmatmul.mubr.bf16.gmra.mxu0 %v792
        %v1088 = vpop.f32.mrf.mxu0
        %v1089 = vadd.f32 0.0, %v1088
        %v1090 = vpop.f32.mrf.mxu0
        %v1091 = vpop.f32.mrf.mxu0
        %v1092 = vadd.f32 0.0, %v1091
        %v1093 = vpop.f32.mrf.mxu0
        %1094 = vmatprep.mubr.bf16.mxu0 %v795
        %1095 = vmatmul.mubr.bf16.gmra.mxu0 %v794
        %v1096 = vpop.f32.mrf.mxu0
        %v1097 = vadd.f32 0.0, %v1096
        %v1098 = vpop.f32.mrf.mxu0
        %v1099 = vpop.f32.mrf.mxu0
        %v1100 = vadd.f32 0.0, %v1099
        %v1101 = vpop.f32.mrf.mxu0
        %1102 = vmatprep.mubr.bf16.mxu0 %v797
        %1103 = vmatmul.mubr.bf16.gmra.mxu0 %v796
        %v1104 = vpop.f32.mrf.mxu0
        %v1105 = vadd.f32 0.0, %v1104
        %v1106 = vpop.f32.mrf.mxu0
        %v1107 = vpop.f32.mrf.mxu0
        %v1108 = vadd.f32 0.0, %v1107
        %v1109 = vpop.f32.mrf.mxu0
        %1110 = vmatprep.mubr.bf16.mxu0 %v799
        %1111 = vmatmul.mubr.bf16.gmra.mxu0 %v798
        %v1112 = vpop.f32.mrf.mxu0
        %v1113 = vadd.f32 0.0, %v1112
        %v1114 = vpop.f32.mrf.mxu0
        %v1115 = vpop.f32.mrf.mxu0
        %v1116 = vadd.f32 0.0, %v1115
        %v1117 = vpop.f32.mrf.mxu0
        %1118 = vmatprep.mubr.bf16.mxu0 %v801
        %1119 = vmatmul.mubr.bf16.gmra.mxu0 %v800
        %v1120 = vpop.f32.mrf.mxu0
        %v1121 = vadd.f32 0.0, %v1120
        %v1122 = vpop.f32.mrf.mxu0
        %v1123 = vpop.f32.mrf.mxu0
        %v1124 = vadd.f32 0.0, %v1123
        %v1125 = vpop.f32.mrf.mxu0
        %1126 = vmatprep.mubr.bf16.mxu0 %v803
        %1127 = vmatmul.mubr.bf16.gmra.mxu0 %v802
        %v1128 = vpop.f32.mrf.mxu0
        %v1129 = vadd.f32 0.0, %v1128
        %v1130 = vpop.f32.mrf.mxu0
        %v1131 = vpop.f32.mrf.mxu0
        %v1132 = vadd.f32 0.0, %v1131
        %v1133 = vpop.f32.mrf.mxu0
        %1134 = vmatprep.mubr.bf16.mxu0 %v805
        %1135 = vmatmul.mubr.bf16.gmra.mxu0 %v804
        %v1136 = vpop.f32.mrf.mxu0
        %v1137 = vadd.f32 0.0, %v1136
        %v1138 = vpop.f32.mrf.mxu0
        %v1139 = vpop.f32.mrf.mxu0
        %v1140 = vadd.f32 0.0, %v1139
        %v1141 = vpop.f32.mrf.mxu0
        %1142 = vmatprep.mubr.bf16.mxu0 %v807
        %1143 = vmatmul.mubr.bf16.gmra.mxu0 %v806
        %v1144 = vpop.f32.mrf.mxu0
        %v1145 = vadd.f32 0.0, %v1144
        %v1146 = vpop.f32.mrf.mxu0
        %v1147 = vpop.f32.mrf.mxu0
        %v1148 = vadd.f32 0.0, %v1147
        %v1149 = vpop.f32.mrf.mxu0
        %1150 = vmatprep.mubr.bf16.mxu0 %v809
        %1151 = vmatmul.mubr.bf16.gmra.mxu0 %v808
        %v1152 = vpop.f32.mrf.mxu0
        %v1153 = vadd.f32 0.0, %v1152
        %v1154 = vpop.f32.mrf.mxu0
        %v1155 = vpop.f32.mrf.mxu0
        %v1156 = vadd.f32 0.0, %v1155
        %v1157 = vpop.f32.mrf.mxu0
        %1158 = vmatprep.mubr.bf16.mxu0 %v811
        %1159 = vmatmul.mubr.bf16.gmra.mxu0 %v810
        %v1160 = vpop.f32.mrf.mxu0
        %v1161 = vadd.f32 0.0, %v1160
        %v1162 = vpop.f32.mrf.mxu0
        %v1163 = vpop.f32.mrf.mxu0
        %v1164 = vadd.f32 0.0, %v1163
        %v1165 = vpop.f32.mrf.mxu0
        %1166 = vmatprep.mubr.bf16.mxu0 %v813
        %1167 = vmatmul.mubr.bf16.gmra.mxu0 %v812
        %v1168 = vpop.f32.mrf.mxu0
        %v1169 = vadd.f32 0.0, %v1168
        %v1170 = vpop.f32.mrf.mxu0
        %v1171 = vpop.f32.mrf.mxu0
        %v1172 = vpop.f32.mrf.mxu0
        %1173 = vdwg.mxu0
        %vm1174 = vcmask 261120
        %1175 = vst.msk [vmem:[#allocation2] sm:$0xff] %vm1174, %v977
        %1177 = vrot.lane.b32.xlu0 %v980, 32
        %v1178 = vpop.permute.xlu0 %1177
        %vm1180 = vcmask 523520
        %1181 = vst.msk [vmem:[#allocation2] sm:$0xff] %vm1180, %v1178
        %1183 = vrot.lane.b32.xlu0 %v985, 64
        %v1184 = vpop.permute.xlu0 %1183
        %vm1186 = vcmask 785920
        %1187 = vst.msk [vmem:[#allocation2] sm:$0xff] %vm1186, %v1184
        %1189 = vrot.lane.b32.xlu0 %v988, 96
        %v1190 = vpop.permute.xlu0 %1189
        %vm1192 = vcmask 1048320
        %1193 = vst.msk [vmem:[#allocation2] sm:$0xff] %vm1192, %v1190
        %1194 = vst.msk [vmem:[#allocation2 + $0x8] sm:$0xff] %vm1174, %v993
        %1196 = vrot.lane.b32.xlu0 %v996, 32
        %v1197 = vpop.permute.xlu0 %1196
        %1199 = vst.msk [vmem:[#allocation2 + $0x8] sm:$0xff] %vm1180, %v1197
        %1201 = vrot.lane.b32.xlu0 %v1001, 64
        %v1202 = vpop.permute.xlu0 %1201
        %1204 = vst.msk [vmem:[#allocation2 + $0x8] sm:$0xff] %vm1186, %v1202
        %1206 = vrot.lane.b32.xlu0 %v1004, 96
        %v1207 = vpop.permute.xlu0 %1206
        %1209 = vst.msk [vmem:[#allocation2 + $0x8] sm:$0xff] %vm1192, %v1207
        %1210 = vst.msk [vmem:[#allocation2 + $0x10] sm:$0xff] %vm1174, %v1009
        %1212 = vrot.lane.b32.xlu0 %v1012, 32
        %v1213 = vpop.permute.xlu0 %1212
        %1215 = vst.msk [vmem:[#allocation2 + $0x10] sm:$0xff] %vm1180, %v1213
        %1217 = vrot.lane.b32.xlu0 %v1017, 64
        %v1218 = vpop.permute.xlu0 %1217
        %1220 = vst.msk [vmem:[#allocation2 + $0x10] sm:$0xff] %vm1186, %v1218
        %1222 = vrot.lane.b32.xlu0 %v1020, 96
        %v1223 = vpop.permute.xlu0 %1222
        %1225 = vst.msk [vmem:[#allocation2 + $0x10] sm:$0xff] %vm1192, %v1223
        %1226 = vst.msk [vmem:[#allocation2 + $0x18] sm:$0xff] %vm1174, %v1025
        %1228 = vrot.lane.b32.xlu0 %v1028, 32
        %v1229 = vpop.permute.xlu0 %1228
        %1231 = vst.msk [vmem:[#allocation2 + $0x18] sm:$0xff] %vm1180, %v1229
        %1233 = vrot.lane.b32.xlu0 %v1033, 64
        %v1234 = vpop.permute.xlu0 %1233
        %1236 = vst.msk [vmem:[#allocation2 + $0x18] sm:$0xff] %vm1186, %v1234
        %1238 = vrot.lane.b32.xlu0 %v1036, 96
        %v1239 = vpop.permute.xlu0 %1238
        %1241 = vst.msk [vmem:[#allocation2 + $0x18] sm:$0xff] %vm1192, %v1239
        %1242 = vst.msk [vmem:[#allocation2 + $0x20] sm:$0xff] %vm1174, %v1041
        %1244 = vrot.lane.b32.xlu0 %v1044, 32
        %v1245 = vpop.permute.xlu0 %1244
        %1247 = vst.msk [vmem:[#allocation2 + $0x20] sm:$0xff] %vm1180, %v1245
        %1249 = vrot.lane.b32.xlu0 %v1049, 64
        %v1250 = vpop.permute.xlu0 %1249
        %1252 = vst.msk [vmem:[#allocation2 + $0x20] sm:$0xff] %vm1186, %v1250
        %1254 = vrot.lane.b32.xlu0 %v1052, 96
        %v1255 = vpop.permute.xlu0 %1254
        %1257 = vst.msk [vmem:[#allocation2 + $0x20] sm:$0xff] %vm1192, %v1255
        %1258 = vst.msk [vmem:[#allocation2 + $0x28] sm:$0xff] %vm1174, %v1057
        %1260 = vrot.lane.b32.xlu0 %v1060, 32
        %v1261 = vpop.permute.xlu0 %1260
        %1263 = vst.msk [vmem:[#allocation2 + $0x28] sm:$0xff] %vm1180, %v1261
        %1265 = vrot.lane.b32.xlu0 %v1065, 64
        %v1266 = vpop.permute.xlu0 %1265
        %1268 = vst.msk [vmem:[#allocation2 + $0x28] sm:$0xff] %vm1186, %v1266
        %1270 = vrot.lane.b32.xlu0 %v1068, 96
        %v1271 = vpop.permute.xlu0 %1270
        %1273 = vst.msk [vmem:[#allocation2 + $0x28] sm:$0xff] %vm1192, %v1271
        %1274 = vst.msk [vmem:[#allocation2 + $0x30] sm:$0xff] %vm1174, %v1073
        %1276 = vrot.lane.b32.xlu0 %v1076, 32
        %v1277 = vpop.permute.xlu0 %1276
        %1279 = vst.msk [vmem:[#allocation2 + $0x30] sm:$0xff] %vm1180, %v1277
        %1281 = vrot.lane.b32.xlu0 %v1081, 64
        %v1282 = vpop.permute.xlu0 %1281
        %1284 = vst.msk [vmem:[#allocation2 + $0x30] sm:$0xff] %vm1186, %v1282
        %1286 = vrot.lane.b32.xlu0 %v1084, 96
        %v1287 = vpop.permute.xlu0 %1286
        %1289 = vst.msk [vmem:[#allocation2 + $0x30] sm:$0xff] %vm1192, %v1287
        %1290 = vst.msk [vmem:[#allocation2 + $0x38] sm:$0xff] %vm1174, %v1089
        %1292 = vrot.lane.b32.xlu0 %v1092, 32
        %v1293 = vpop.permute.xlu0 %1292
        %1295 = vst.msk [vmem:[#allocation2 + $0x38] sm:$0xff] %vm1180, %v1293
        %1297 = vrot.lane.b32.xlu0 %v1097, 64
        %v1298 = vpop.permute.xlu0 %1297
        %1300 = vst.msk [vmem:[#allocation2 + $0x38] sm:$0xff] %vm1186, %v1298
        %1302 = vrot.lane.b32.xlu0 %v1100, 96
        %v1303 = vpop.permute.xlu0 %1302
        %1305 = vst.msk [vmem:[#allocation2 + $0x38] sm:$0xff] %vm1192, %v1303
        %1306 = vst.msk [vmem:[#allocation2 + $0x40] sm:$0xff] %vm1174, %v1105
        %1308 = vrot.lane.b32.xlu0 %v1108, 32
        %v1309 = vpop.permute.xlu0 %1308
        %1311 = vst.msk [vmem:[#allocation2 + $0x40] sm:$0xff] %vm1180, %v1309
        %1313 = vrot.lane.b32.xlu0 %v1113, 64
        %v1314 = vpop.permute.xlu0 %1313
        %1316 = vst.msk [vmem:[#allocation2 + $0x40] sm:$0xff] %vm1186, %v1314
        %1318 = vrot.lane.b32.xlu0 %v1116, 96
        %v1319 = vpop.permute.xlu0 %1318
        %1321 = vst.msk [vmem:[#allocation2 + $0x40] sm:$0xff] %vm1192, %v1319
        %1322 = vst.msk [vmem:[#allocation2 + $0x48] sm:$0xff] %vm1174, %v1121
        %1324 = vrot.lane.b32.xlu0 %v1124, 32
        %v1325 = vpop.permute.xlu0 %1324
        %1327 = vst.msk [vmem:[#allocation2 + $0x48] sm:$0xff] %vm1180, %v1325
        %1329 = vrot.lane.b32.xlu0 %v1129, 64
        %v1330 = vpop.permute.xlu0 %1329
        %1332 = vst.msk [vmem:[#allocation2 + $0x48] sm:$0xff] %vm1186, %v1330
        %1334 = vrot.lane.b32.xlu0 %v1132, 96
        %v1335 = vpop.permute.xlu0 %1334
        %1337 = vst.msk [vmem:[#allocation2 + $0x48] sm:$0xff] %vm1192, %v1335
        %1338 = vst.msk [vmem:[#allocation2 + $0x50] sm:$0xff] %vm1174, %v1137
        %1340 = vrot.lane.b32.xlu0 %v1140, 32
        %v1341 = vpop.permute.xlu0 %1340
        %1343 = vst.msk [vmem:[#allocation2 + $0x50] sm:$0xff] %vm1180, %v1341
        %1345 = vrot.lane.b32.xlu0 %v1145, 64
        %v1346 = vpop.permute.xlu0 %1345
        %1348 = vst.msk [vmem:[#allocation2 + $0x50] sm:$0xff] %vm1186, %v1346
        %1350 = vrot.lane.b32.xlu0 %v1148, 96
        %v1351 = vpop.permute.xlu0 %1350
        %1353 = vst.msk [vmem:[#allocation2 + $0x50] sm:$0xff] %vm1192, %v1351
        %1354 = vst.msk [vmem:[#allocation2 + $0x58] sm:$0xff] %vm1174, %v1153
        %1356 = vrot.lane.b32.xlu0 %v1156, 32
        %v1357 = vpop.permute.xlu0 %1356
        %1359 = vst.msk [vmem:[#allocation2 + $0x58] sm:$0xff] %vm1180, %v1357
        %1361 = vrot.lane.b32.xlu0 %v1161, 64
        %v1362 = vpop.permute.xlu0 %1361
        %1364 = vst.msk [vmem:[#allocation2 + $0x58] sm:$0xff] %vm1186, %v1362
        %1366 = vrot.lane.b32.xlu0 %v1164, 96
        %v1367 = vpop.permute.xlu0 %1366
        %1369 = vst.msk [vmem:[#allocation2 + $0x58] sm:$0xff] %vm1192, %v1367
        %1370 = vst.msk [vmem:[#allocation2 + $0x60] sm:$0xff] %vm1174, %v1169
        %v1371 = vld [vmem:[#allocation2] sm:$0xff]
        %v1372 = vld [vmem:[#allocation2 + $0x8] sm:$0xff]
        %v1373 = vld [vmem:[#allocation2 + $0x10] sm:$0xff]
        %v1374 = vld [vmem:[#allocation2 + $0x18] sm:$0xff]
        %v1375 = vld [vmem:[#allocation2 + $0x20] sm:$0xff]
        %v1376 = vld [vmem:[#allocation2 + $0x28] sm:$0xff]
        %v1377 = vld [vmem:[#allocation2 + $0x30] sm:$0xff]
        %v1378 = vld [vmem:[#allocation2 + $0x38] sm:$0xff]
        %v1379 = vld [vmem:[#allocation2 + $0x40] sm:$0xff]
        %v1380 = vld [vmem:[#allocation2 + $0x48] sm:$0xff]
        %v1381 = vld [vmem:[#allocation2 + $0x50] sm:$0xff]
        %v1382 = vld [vmem:[#allocation2 + $0x58] sm:$0xff]
        %v1383 = vld [vmem:[#allocation2 + $0x60] sm:$0xff]
        %v1384 = vpack.c.bf16 %v1371, %v1371
        %v1385 = vpack.c.bf16 %v1372, %v1372
        %v1386 = vpack.c.bf16 %v1373, %v1373
        %v1387 = vpack.c.bf16 %v1374, %v1374
        %v1388 = vpack.c.bf16 %v1375, %v1375
        %v1389 = vpack.c.bf16 %v1376, %v1376
        %v1390 = vpack.c.bf16 %v1377, %v1377
        %v1391 = vpack.c.bf16 %v1378, %v1378
        %v1392 = vpack.c.bf16 %v1379, %v1379
        %v1393 = vpack.c.bf16 %v1380, %v1380
        %v1394 = vpack.c.bf16 %v1381, %v1381
        %v1395 = vpack.c.bf16 %v1382, %v1382
        %v1396 = vpack.c.bf16 %v1383, %v1383
        %v1397 = vld [vmem:[%s2] sm:$0xf]
        %v1398 = vld [vmem:[%s2 + $0x4] sm:$0xf]
        %v1399 = vld [vmem:[%s2 + $0x8] sm:$0xf]
        %v1400 = vld [vmem:[%s2 + $0xc] sm:$0xf]
        %v1401 = vld [vmem:[%s2 + $0x10] sm:$0xf]
        %v1402 = vld [vmem:[%s2 + $0x14] sm:$0xf]
        %v1403 = vld [vmem:[%s2 + $0x18] sm:$0xf]
        %v1404 = vld [vmem:[%s2 + $0x1c] sm:$0xf]
        %v1405 = vld [vmem:[%s2 + $0x20] sm:$0xf]
        %v1406 = vld [vmem:[%s2 + $0x24] sm:$0xf]
        %v1407 = vld [vmem:[%s2 + $0x28] sm:$0xf]
        %v1408 = vld [vmem:[%s2 + $0x2c] sm:$0xf]
        %v1409 = vld [vmem:[%s2 + $0x30] sm:$0xf]
        %v1410 = vld [vmem:[%s2 + $0x34] sm:$0xf]
        %v1411 = vld [vmem:[%s2 + $0x38] sm:$0xf]
        %v1412 = vld [vmem:[%s2 + $0x3c] sm:$0xf]
        %v1413 = vld [vmem:[%s2 + $0x40] sm:$0xf]
        %v1414 = vld [vmem:[%s2 + $0x44] sm:$0xf]
        %v1415 = vld [vmem:[%s2 + $0x48] sm:$0xf]
        %v1416 = vld [vmem:[%s2 + $0x4c] sm:$0xf]
        %v1417 = vld [vmem:[%s2 + $0x50] sm:$0xf]
        %v1418 = vld [vmem:[%s2 + $0x54] sm:$0xf]
        %v1419 = vld [vmem:[%s2 + $0x58] sm:$0xf]
        %v1420 = vld [vmem:[%s2 + $0x5c] sm:$0xf]
        %v1421 = vld [vmem:[%s2 + $0x60] sm:$0xf]
        %v1422 = vld [vmem:[%s2 + $0x64] sm:$0xf]
        %v1423 = vld [vmem:[%s2 + $0x68] sm:$0xf]
        %v1424 = vld [vmem:[%s2 + $0x6c] sm:$0xf]
        %v1425 = vld [vmem:[%s2 + $0x70] sm:$0xf]
        %v1426 = vld [vmem:[%s2 + $0x74] sm:$0xf]
        %v1427 = vld [vmem:[%s2 + $0x78] sm:$0xf]
        %v1428 = vld [vmem:[%s2 + $0x7c] sm:$0xf]
        %v1429 = vld [vmem:[%s2 + $0x80] sm:$0xf]
        %v1430 = vld [vmem:[%s2 + $0x84] sm:$0xf]
        %v1431 = vld [vmem:[%s2 + $0x88] sm:$0xf]
        %v1432 = vld [vmem:[%s2 + $0x8c] sm:$0xf]
        %v1433 = vld [vmem:[%s2 + $0x90] sm:$0xf]
        %v1434 = vld [vmem:[%s2 + $0x94] sm:$0xf]
        %v1435 = vld [vmem:[%s2 + $0x98] sm:$0xf]
        %v1436 = vld [vmem:[%s2 + $0x9c] sm:$0xf]
        %v1437 = vld [vmem:[%s2 + $0xa0] sm:$0xf]
        %v1438 = vld [vmem:[%s2 + $0xa4] sm:$0xf]
        %v1439 = vld [vmem:[%s2 + $0xa8] sm:$0xf]
        %v1440 = vld [vmem:[%s2 + $0xac] sm:$0xf]
        %v1441 = vld [vmem:[%s2 + $0xb0] sm:$0xf]
        %v1442 = vld [vmem:[%s2 + $0xb4] sm:$0xf]
        %v1443 = vld [vmem:[%s2 + $0xb8] sm:$0xf]
        %v1444 = vld [vmem:[%s2 + $0xbc] sm:$0xf]
        %v1445 = vld [vmem:[%s2 + $0xc0] sm:$0xf]
        %v1446 = vld [vmem:[%s2 + $0xc4] sm:$0xf]
        %v1447 = vld [vmem:[%s2 + $0xc8] sm:$0xf]
        %v1448 = vld [vmem:[%s2 + $0xcc] sm:$0xf]
        %v1449 = vld [vmem:[%s2 + $0xd0] sm:$0xf]
        %v1450 = vld [vmem:[%s2 + $0xd4] sm:$0xf]
        %v1451 = vld [vmem:[%s2 + $0xd8] sm:$0xf]
        %v1452 = vld [vmem:[%s2 + $0xdc] sm:$0xf]
        %v1453 = vld [vmem:[%s2 + $0xe0] sm:$0xf]
        %v1454 = vld [vmem:[%s2 + $0xe4] sm:$0xf]
        %v1455 = vld [vmem:[%s2 + $0xe8] sm:$0xf]
        %v1456 = vld [vmem:[%s2 + $0xec] sm:$0xf]
        %v1457 = vld [vmem:[%s2 + $0xf0] sm:$0xf]
        %v1458 = vld [vmem:[%s2 + $0xf4] sm:$0xf]
        %v1459 = vld [vmem:[%s2 + $0xf8] sm:$0xf]
        %v1460 = vld [vmem:[%s2 + $0xfc] sm:$0xf]
        %v1461 = vld [vmem:[%s2 + $0x100] sm:$0xf]
        %v1462 = vld [vmem:[%s2 + $0x104] sm:$0xf]
        %v1463 = vld [vmem:[%s2 + $0x108] sm:$0xf]
        %v1464 = vld [vmem:[%s2 + $0x10c] sm:$0xf]
        %v1465 = vld [vmem:[%s2 + $0x110] sm:$0xf]
        %v1466 = vld [vmem:[%s2 + $0x114] sm:$0xf]
        %v1467 = vld [vmem:[%s2 + $0x118] sm:$0xf]
        %v1468 = vld [vmem:[%s2 + $0x11c] sm:$0xf]
        %v1469 = vld [vmem:[%s2 + $0x120] sm:$0xf]
        %v1470 = vld [vmem:[%s2 + $0x124] sm:$0xf]
        %v1471 = vld [vmem:[%s2 + $0x128] sm:$0xf]
        %v1472 = vld [vmem:[%s2 + $0x12c] sm:$0xf]
        %v1473 = vld [vmem:[%s2 + $0x130] sm:$0xf]
        %v1474 = vld [vmem:[%s2 + $0x134] sm:$0xf]
        %v1475 = vld [vmem:[%s2 + $0x138] sm:$0xf]
        %v1476 = vld [vmem:[%s2 + $0x13c] sm:$0xf]
        %v1477 = vld [vmem:[%s2 + $0x140] sm:$0xf]
        %v1478 = vld [vmem:[%s2 + $0x144] sm:$0xf]
        %v1479 = vld [vmem:[%s2 + $0x148] sm:$0xf]
        %v1480 = vld [vmem:[%s2 + $0x14c] sm:$0xf]
        %v1481 = vld [vmem:[%s2 + $0x150] sm:$0xf]
        %v1482 = vld [vmem:[%s2 + $0x154] sm:$0xf]
        %v1483 = vld [vmem:[%s2 + $0x158] sm:$0xf]
        %v1484 = vld [vmem:[%s2 + $0x15c] sm:$0xf]
        %v1485 = vld [vmem:[%s2 + $0x160] sm:$0xf]
        %v1486 = vld [vmem:[%s2 + $0x164] sm:$0xf]
        %v1487 = vld [vmem:[%s2 + $0x168] sm:$0xf]
        %v1488 = vld [vmem:[%s2 + $0x16c] sm:$0xf]
        %v1489 = vld [vmem:[%s2 + $0x170] sm:$0xf]
        %v1490 = vld [vmem:[%s2 + $0x174] sm:$0xf]
        %v1491 = vld [vmem:[%s2 + $0x178] sm:$0xf]
        %v1492 = vld [vmem:[%s2 + $0x17c] sm:$0xf]
        %v1493 = vld [vmem:[%s2 + $0x180] sm:$0xf]
        %v1494 = vld [vmem:[%s2 + $0x184] sm:$0xf]
        %v1495 = vld [vmem:[%s2 + $0x188] sm:$0xf]
        %v1496 = vld [vmem:[%s2 + $0x18c] sm:$0xf]
        %v1497 = vld [vmem:[%s2 + $0x190] sm:$0xf]
        %v1498 = vld [vmem:[%s2 + $0x194] sm:$0xf]
        %v1499 = vld [vmem:[%s2 + $0x198] sm:$0xf]
        %v1500 = vld [vmem:[%s2 + $0x19c] sm:$0xf]
        %v1501 = vld [vmem:[%s2 + $0x1a0] sm:$0xf]
        %v1502 = vld [vmem:[%s2 + $0x1a4] sm:$0xf]
        %v1503 = vld [vmem:[%s2 + $0x1a8] sm:$0xf]
        %v1504 = vld [vmem:[%s2 + $0x1ac] sm:$0xf]
        %v1505 = vld [vmem:[%s2 + $0x1b0] sm:$0xf]
        %v1506 = vld [vmem:[%s2 + $0x1b4] sm:$0xf]
        %v1507 = vld [vmem:[%s2 + $0x1b8] sm:$0xf]
        %v1508 = vld [vmem:[%s2 + $0x1bc] sm:$0xf]
        %v1509 = vld [vmem:[%s2 + $0x1c0] sm:$0xf]
        %v1510 = vld [vmem:[%s2 + $0x1c4] sm:$0xf]
        %v1511 = vld [vmem:[%s2 + $0x1c8] sm:$0xf]
        %v1512 = vld [vmem:[%s2 + $0x1cc] sm:$0xf]
        %v1513 = vld [vmem:[%s2 + $0x1d0] sm:$0xf]
        %v1514 = vld [vmem:[%s2 + $0x1d4] sm:$0xf]
        %v1515 = vld [vmem:[%s2 + $0x1d8] sm:$0xf]
        %v1516 = vld [vmem:[%s2 + $0x1dc] sm:$0xf]
        %v1517 = vld [vmem:[%s2 + $0x1e0] sm:$0xf]
        %v1518 = vld [vmem:[%s2 + $0x1e4] sm:$0xf]
        %v1519 = vld [vmem:[%s2 + $0x1e8] sm:$0xf]
        %v1520 = vld [vmem:[%s2 + $0x1ec] sm:$0xf]
        %v1521 = vld [vmem:[%s2 + $0x1f0] sm:$0xf]
        %v1522 = vld [vmem:[%s2 + $0x1f4] sm:$0xf]
        %v1523 = vld [vmem:[%s2 + $0x1f8] sm:$0xf]
        %v1524 = vld [vmem:[%s2 + $0x1fc] sm:$0xf]
        %v1525 = vld [vmem:[%s2 + $0x200] sm:$0xf]
        %v1526 = vld [vmem:[%s2 + $0x204] sm:$0xf]
        %v1527 = vld [vmem:[%s2 + $0x208] sm:$0xf]
        %v1528 = vld [vmem:[%s2 + $0x20c] sm:$0xf]
        %v1529 = vld [vmem:[%s2 + $0x210] sm:$0xf]
        %v1530 = vld [vmem:[%s2 + $0x214] sm:$0xf]
        %v1531 = vld [vmem:[%s2 + $0x218] sm:$0xf]
        %v1532 = vld [vmem:[%s2 + $0x21c] sm:$0xf]
        %v1533 = vld [vmem:[%s2 + $0x220] sm:$0xf]
        %v1534 = vld [vmem:[%s2 + $0x224] sm:$0xf]
        %v1535 = vld [vmem:[%s2 + $0x228] sm:$0xf]
        %v1536 = vld [vmem:[%s2 + $0x22c] sm:$0xf]
        %v1537 = vld [vmem:[%s2 + $0x230] sm:$0xf]
        %v1538 = vld [vmem:[%s2 + $0x234] sm:$0xf]
        %v1539 = vld [vmem:[%s2 + $0x238] sm:$0xf]
        %v1540 = vld [vmem:[%s2 + $0x23c] sm:$0xf]
        %v1541 = vld [vmem:[%s2 + $0x240] sm:$0xf]
        %v1542 = vld [vmem:[%s2 + $0x244] sm:$0xf]
        %v1543 = vld [vmem:[%s2 + $0x248] sm:$0xf]
        %v1544 = vld [vmem:[%s2 + $0x24c] sm:$0xf]
        %v1545 = vld [vmem:[%s2 + $0x250] sm:$0xf]
        %v1546 = vld [vmem:[%s2 + $0x254] sm:$0xf]
        %v1547 = vld [vmem:[%s2 + $0x258] sm:$0xf]
        %v1548 = vld [vmem:[%s2 + $0x25c] sm:$0xf]
        %v1549 = vld [vmem:[%s2 + $0x260] sm:$0xf]
        %v1550 = vld [vmem:[%s2 + $0x264] sm:$0xf]
        %v1551 = vld [vmem:[%s2 + $0x268] sm:$0xf]
        %v1552 = vld [vmem:[%s2 + $0x26c] sm:$0xf]
        %v1553 = vld [vmem:[%s2 + $0x270] sm:$0xf]
        %v1554 = vld [vmem:[%s2 + $0x274] sm:$0xf]
        %v1555 = vld [vmem:[%s2 + $0x278] sm:$0xf]
        %v1556 = vld [vmem:[%s2 + $0x27c] sm:$0xf]
        %v1557 = vld [vmem:[%s2 + $0x280] sm:$0xf]
        %v1558 = vld [vmem:[%s2 + $0x284] sm:$0xf]
        %v1559 = vld [vmem:[%s2 + $0x288] sm:$0xf]
        %v1560 = vld [vmem:[%s2 + $0x28c] sm:$0xf]
        %v1561 = vld [vmem:[%s2 + $0x290] sm:$0xf]
        %v1562 = vld [vmem:[%s2 + $0x294] sm:$0xf]
        %v1563 = vld [vmem:[%s2 + $0x298] sm:$0xf]
        %v1564 = vld [vmem:[%s2 + $0x29c] sm:$0xf]
        %v1565 = vld [vmem:[%s2 + $0x2a0] sm:$0xf]
        %v1566 = vld [vmem:[%s2 + $0x2a4] sm:$0xf]
        %v1567 = vld [vmem:[%s2 + $0x2a8] sm:$0xf]
        %v1568 = vld [vmem:[%s2 + $0x2ac] sm:$0xf]
        %v1569 = vld [vmem:[%s2 + $0x2b0] sm:$0xf]
        %v1570 = vld [vmem:[%s2 + $0x2b4] sm:$0xf]
        %v1571 = vld [vmem:[%s2 + $0x2b8] sm:$0xf]
        %v1572 = vld [vmem:[%s2 + $0x2bc] sm:$0xf]
        %v1573 = vld [vmem:[%s2 + $0x2c0] sm:$0xf]
        %v1574 = vld [vmem:[%s2 + $0x2c4] sm:$0xf]
        %v1575 = vld [vmem:[%s2 + $0x2c8] sm:$0xf]
        %v1576 = vld [vmem:[%s2 + $0x2cc] sm:$0xf]
        %v1577 = vld [vmem:[%s2 + $0x2d0] sm:$0xf]
        %v1578 = vld [vmem:[%s2 + $0x2d4] sm:$0xf]
        %v1579 = vld [vmem:[%s2 + $0x2d8] sm:$0xf]
        %v1580 = vld [vmem:[%s2 + $0x2dc] sm:$0xf]
        %v1581 = vld [vmem:[%s2 + $0x2e0] sm:$0xf]
        %v1582 = vld [vmem:[%s2 + $0x2e4] sm:$0xf]
        %v1583 = vld [vmem:[%s2 + $0x2e8] sm:$0xf]
        %v1584 = vld [vmem:[%s2 + $0x2ec] sm:$0xf]
        %v1585 = vld [vmem:[%s2 + $0x2f0] sm:$0xf]
        %v1586 = vld [vmem:[%s2 + $0x2f4] sm:$0xf]
        %v1587 = vld [vmem:[%s2 + $0x2f8] sm:$0xf]
        %v1588 = vld [vmem:[%s2 + $0x2fc] sm:$0xf]
        %v1589 = vld [vmem:[%s2 + $0x300] sm:$0xf]
        %v1590 = vld [vmem:[%s2 + $0x304] sm:$0xf]
        %v1591 = vld [vmem:[%s2 + $0x308] sm:$0xf]
        %v1592 = vld [vmem:[%s2 + $0x30c] sm:$0xf]
        %v1593 = vld [vmem:[%s3] sm:$0x1]
        %v1595 = vlaneseq
        %v1596 = vshrl.u32 %v1595, 7
        %v1597 = vsub.s32 0, %v1596
        %v1598 = vrot.slane %v1593, %v1597
        %v1796 = vunpack.c.l.b16 %v1397
        %v1797 = vunpack.c.l.b16 %v1398
        %v1798 = vunpack.c.l.b16 %v1399
        %v1799 = vunpack.c.l.b16 %v1400
        %v1800 = vunpack.c.l.b16 %v1401
        %v1801 = vunpack.c.l.b16 %v1402
        %v1802 = vunpack.c.l.b16 %v1403
        %v1803 = vunpack.c.l.b16 %v1404
        %v1804 = vunpack.c.l.b16 %v1405
        %v1805 = vunpack.c.l.b16 %v1406
        %v1806 = vunpack.c.l.b16 %v1407
        %v1807 = vunpack.c.l.b16 %v1408
        %v1808 = vunpack.c.l.b16 %v1409
        %v1809 = vunpack.c.l.b16 %v1410
        %v1810 = vunpack.c.l.b16 %v1411
        %v1811 = vunpack.c.l.b16 %v1412
        %v1812 = vunpack.c.l.b16 %v1413
        %v1813 = vunpack.c.l.b16 %v1414
        %v1814 = vunpack.c.l.b16 %v1415
        %v1815 = vunpack.c.l.b16 %v1416
        %v1816 = vunpack.c.l.b16 %v1417
        %v1817 = vunpack.c.l.b16 %v1418
        %v1818 = vunpack.c.l.b16 %v1419
        %v1819 = vunpack.c.l.b16 %v1420
        %v1820 = vunpack.c.l.b16 %v1421
        %v1821 = vunpack.c.l.b16 %v1422
        %v1822 = vunpack.c.l.b16 %v1423
        %v1823 = vunpack.c.l.b16 %v1424
        %v1824 = vunpack.c.l.b16 %v1425
        %v1825 = vunpack.c.l.b16 %v1426
        %v1826 = vunpack.c.l.b16 %v1427
        %v1827 = vunpack.c.l.b16 %v1428
        %v1828 = vunpack.c.l.b16 %v1429
        %v1829 = vunpack.c.l.b16 %v1430
        %v1830 = vunpack.c.l.b16 %v1431
        %v1831 = vunpack.c.l.b16 %v1432
        %v1832 = vunpack.c.l.b16 %v1433
        %v1833 = vunpack.c.l.b16 %v1434
        %v1834 = vunpack.c.l.b16 %v1435
        %v1835 = vunpack.c.l.b16 %v1436
        %v1836 = vunpack.c.l.b16 %v1437
        %v1837 = vunpack.c.l.b16 %v1438
        %v1838 = vunpack.c.l.b16 %v1439
        %v1839 = vunpack.c.l.b16 %v1440
        %v1840 = vunpack.c.l.b16 %v1441
        %v1841 = vunpack.c.l.b16 %v1442
        %v1842 = vunpack.c.l.b16 %v1443
        %v1843 = vunpack.c.l.b16 %v1444
        %v1844 = vunpack.c.l.b16 %v1445
        %v1845 = vunpack.c.l.b16 %v1446
        %v1846 = vunpack.c.l.b16 %v1447
        %v1847 = vunpack.c.l.b16 %v1448
        %v1848 = vunpack.c.l.b16 %v1449
        %v1849 = vunpack.c.l.b16 %v1450
        %v1850 = vunpack.c.l.b16 %v1451
        %v1851 = vunpack.c.l.b16 %v1452
        %v1852 = vunpack.c.l.b16 %v1453
        %v1853 = vunpack.c.l.b16 %v1454
        %v1854 = vunpack.c.l.b16 %v1455
        %v1855 = vunpack.c.l.b16 %v1456
        %v1856 = vunpack.c.l.b16 %v1457
        %v1857 = vunpack.c.l.b16 %v1458
        %v1858 = vunpack.c.l.b16 %v1459
        %v1859 = vunpack.c.l.b16 %v1460
        %v1860 = vunpack.c.l.b16 %v1461
        %v1861 = vunpack.c.l.b16 %v1462
        %v1862 = vunpack.c.l.b16 %v1463
        %v1863 = vunpack.c.l.b16 %v1464
        %v1864 = vunpack.c.l.b16 %v1465
        %v1865 = vunpack.c.l.b16 %v1466
        %v1866 = vunpack.c.l.b16 %v1467
        %v1867 = vunpack.c.l.b16 %v1468
        %v1868 = vunpack.c.l.b16 %v1469
        %v1869 = vunpack.c.l.b16 %v1470
        %v1870 = vunpack.c.l.b16 %v1471
        %v1871 = vunpack.c.l.b16 %v1472
        %v1872 = vunpack.c.l.b16 %v1473
        %v1873 = vunpack.c.l.b16 %v1474
        %v1874 = vunpack.c.l.b16 %v1475
        %v1875 = vunpack.c.l.b16 %v1476
        %v1876 = vunpack.c.l.b16 %v1477
        %v1877 = vunpack.c.l.b16 %v1478
        %v1878 = vunpack.c.l.b16 %v1479
        %v1879 = vunpack.c.l.b16 %v1480
        %v1880 = vunpack.c.l.b16 %v1481
        %v1881 = vunpack.c.l.b16 %v1482
        %v1882 = vunpack.c.l.b16 %v1483
        %v1883 = vunpack.c.l.b16 %v1484
        %v1884 = vunpack.c.l.b16 %v1485
        %v1885 = vunpack.c.l.b16 %v1486
        %v1886 = vunpack.c.l.b16 %v1487
        %v1887 = vunpack.c.l.b16 %v1488
        %v1888 = vunpack.c.l.b16 %v1489
        %v1889 = vunpack.c.l.b16 %v1490
        %v1890 = vunpack.c.l.b16 %v1491
        %v1891 = vunpack.c.l.b16 %v1492
        %v1892 = vunpack.c.l.b16 %v1493
        %v1893 = vunpack.c.l.b16 %v1494
        %v1894 = vunpack.c.l.b16 %v1495
        %v1895 = vunpack.c.l.b16 %v1496
        %v1896 = vunpack.c.l.b16 %v1497
        %v1897 = vunpack.c.l.b16 %v1498
        %v1898 = vunpack.c.l.b16 %v1499
        %v1899 = vunpack.c.l.b16 %v1500
        %v1900 = vunpack.c.l.b16 %v1501
        %v1901 = vunpack.c.l.b16 %v1502
        %v1902 = vunpack.c.l.b16 %v1503
        %v1903 = vunpack.c.l.b16 %v1504
        %v1904 = vunpack.c.l.b16 %v1505
        %v1905 = vunpack.c.l.b16 %v1506
        %v1906 = vunpack.c.l.b16 %v1507
        %v1907 = vunpack.c.l.b16 %v1508
        %v1908 = vunpack.c.l.b16 %v1509
        %v1909 = vunpack.c.l.b16 %v1510
        %v1910 = vunpack.c.l.b16 %v1511
        %v1911 = vunpack.c.l.b16 %v1512
        %v1912 = vunpack.c.l.b16 %v1513
        %v1913 = vunpack.c.l.b16 %v1514
        %v1914 = vunpack.c.l.b16 %v1515
        %v1915 = vunpack.c.l.b16 %v1516
        %v1916 = vunpack.c.l.b16 %v1517
        %v1917 = vunpack.c.l.b16 %v1518
        %v1918 = vunpack.c.l.b16 %v1519
        %v1919 = vunpack.c.l.b16 %v1520
        %v1920 = vunpack.c.l.b16 %v1521
        %v1921 = vunpack.c.l.b16 %v1522
        %v1922 = vunpack.c.l.b16 %v1523
        %v1923 = vunpack.c.l.b16 %v1524
        %v1924 = vunpack.c.l.b16 %v1525
        %v1925 = vunpack.c.l.b16 %v1526
        %v1926 = vunpack.c.l.b16 %v1527
        %v1927 = vunpack.c.l.b16 %v1528
        %v1928 = vunpack.c.l.b16 %v1529
        %v1929 = vunpack.c.l.b16 %v1530
        %v1930 = vunpack.c.l.b16 %v1531
        %v1931 = vunpack.c.l.b16 %v1532
        %v1932 = vunpack.c.l.b16 %v1533
        %v1933 = vunpack.c.l.b16 %v1534
        %v1934 = vunpack.c.l.b16 %v1535
        %v1935 = vunpack.c.l.b16 %v1536
        %v1936 = vunpack.c.l.b16 %v1537
        %v1937 = vunpack.c.l.b16 %v1538
        %v1938 = vunpack.c.l.b16 %v1539
        %v1939 = vunpack.c.l.b16 %v1540
        %v1940 = vunpack.c.l.b16 %v1541
        %v1941 = vunpack.c.l.b16 %v1542
        %v1942 = vunpack.c.l.b16 %v1543
        %v1943 = vunpack.c.l.b16 %v1544
        %v1944 = vunpack.c.l.b16 %v1545
        %v1945 = vunpack.c.l.b16 %v1546
        %v1946 = vunpack.c.l.b16 %v1547
        %v1947 = vunpack.c.l.b16 %v1548
        %v1948 = vunpack.c.l.b16 %v1549
        %v1949 = vunpack.c.l.b16 %v1550
        %v1950 = vunpack.c.l.b16 %v1551
        %v1951 = vunpack.c.l.b16 %v1552
        %v1952 = vunpack.c.l.b16 %v1553
        %v1953 = vunpack.c.l.b16 %v1554
        %v1954 = vunpack.c.l.b16 %v1555
        %v1955 = vunpack.c.l.b16 %v1556
        %v1956 = vunpack.c.l.b16 %v1557
        %v1957 = vunpack.c.l.b16 %v1558
        %v1958 = vunpack.c.l.b16 %v1559
        %v1959 = vunpack.c.l.b16 %v1560
        %v1960 = vunpack.c.l.b16 %v1561
        %v1961 = vunpack.c.l.b16 %v1562
        %v1962 = vunpack.c.l.b16 %v1563
        %v1963 = vunpack.c.l.b16 %v1564
        %v1964 = vunpack.c.l.b16 %v1565
        %v1965 = vunpack.c.l.b16 %v1566
        %v1966 = vunpack.c.l.b16 %v1567
        %v1967 = vunpack.c.l.b16 %v1568
        %v1968 = vunpack.c.l.b16 %v1569
        %v1969 = vunpack.c.l.b16 %v1570
        %v1970 = vunpack.c.l.b16 %v1571
        %v1971 = vunpack.c.l.b16 %v1572
        %v1972 = vunpack.c.l.b16 %v1573
        %v1973 = vunpack.c.l.b16 %v1574
        %v1974 = vunpack.c.l.b16 %v1575
        %v1975 = vunpack.c.l.b16 %v1576
        %v1976 = vunpack.c.l.b16 %v1577
        %v1977 = vunpack.c.l.b16 %v1578
        %v1978 = vunpack.c.l.b16 %v1579
        %v1979 = vunpack.c.l.b16 %v1580
        %v1980 = vunpack.c.l.b16 %v1581
        %v1981 = vunpack.c.l.b16 %v1582
        %v1982 = vunpack.c.l.b16 %v1583
        %v1983 = vunpack.c.l.b16 %v1584
        %v1984 = vunpack.c.l.b16 %v1585
        %v1985 = vunpack.c.l.b16 %v1586
        %v1986 = vunpack.c.l.b16 %v1587
        %v1987 = vunpack.c.l.b16 %v1588
        %v1988 = vunpack.c.l.b16 %v1589
        %v1989 = vunpack.c.l.b16 %v1590
        %v1990 = vunpack.c.l.b16 %v1591
        %v1991 = vunpack.c.l.b16 %v1592
        %v1992 = vpack.c.b16 %v1797, %v1796
        %v1993 = vpack.c.b16 %v1799, %v1798
        %v1994 = vpack.c.b16 %v1801, %v1800
        %v1995 = vpack.c.b16 %v1803, %v1802
        %v1996 = vpack.c.b16 %v1805, %v1804
        %v1997 = vpack.c.b16 %v1807, %v1806
        %v1998 = vpack.c.b16 %v1809, %v1808
        %v1999 = vpack.c.b16 %v1811, %v1810
        %v2000 = vpack.c.b16 %v1813, %v1812
        %v2001 = vpack.c.b16 %v1815, %v1814
        %v2002 = vpack.c.b16 %v1817, %v1816
        %v2003 = vpack.c.b16 %v1819, %v1818
        %v2004 = vpack.c.b16 %v1821, %v1820
        %v2005 = vpack.c.b16 %v1823, %v1822
        %v2006 = vpack.c.b16 %v1825, %v1824
        %v2007 = vpack.c.b16 %v1827, %v1826
        %v2008 = vpack.c.b16 %v1829, %v1828
        %v2009 = vpack.c.b16 %v1831, %v1830
        %v2010 = vpack.c.b16 %v1833, %v1832
        %v2011 = vpack.c.b16 %v1835, %v1834
        %v2012 = vpack.c.b16 %v1837, %v1836
        %v2013 = vpack.c.b16 %v1839, %v1838
        %v2014 = vpack.c.b16 %v1841, %v1840
        %v2015 = vpack.c.b16 %v1843, %v1842
        %v2016 = vpack.c.b16 %v1845, %v1844
        %v2017 = vpack.c.b16 %v1847, %v1846
        %v2018 = vpack.c.b16 %v1849, %v1848
        %v2019 = vpack.c.b16 %v1851, %v1850
        %v2020 = vpack.c.b16 %v1853, %v1852
        %v2021 = vpack.c.b16 %v1855, %v1854
        %v2022 = vpack.c.b16 %v1857, %v1856
        %v2023 = vpack.c.b16 %v1859, %v1858
        %v2024 = vpack.c.b16 %v1861, %v1860
        %v2025 = vpack.c.b16 %v1863, %v1862
        %v2026 = vpack.c.b16 %v1865, %v1864
        %v2027 = vpack.c.b16 %v1867, %v1866
        %v2028 = vpack.c.b16 %v1869, %v1868
        %v2029 = vpack.c.b16 %v1871, %v1870
        %v2030 = vpack.c.b16 %v1873, %v1872
        %v2031 = vpack.c.b16 %v1875, %v1874
        %v2032 = vpack.c.b16 %v1877, %v1876
        %v2033 = vpack.c.b16 %v1879, %v1878
        %v2034 = vpack.c.b16 %v1881, %v1880
        %v2035 = vpack.c.b16 %v1883, %v1882
        %v2036 = vpack.c.b16 %v1885, %v1884
        %v2037 = vpack.c.b16 %v1887, %v1886
        %v2038 = vpack.c.b16 %v1889, %v1888
        %v2039 = vpack.c.b16 %v1891, %v1890
        %v2040 = vpack.c.b16 %v1893, %v1892
        %v2041 = vpack.c.b16 %v1895, %v1894
        %v2042 = vpack.c.b16 %v1897, %v1896
        %v2043 = vpack.c.b16 %v1899, %v1898
        %v2044 = vpack.c.b16 %v1901, %v1900
        %v2045 = vpack.c.b16 %v1903, %v1902
        %v2046 = vpack.c.b16 %v1905, %v1904
        %v2047 = vpack.c.b16 %v1907, %v1906
        %v2048 = vpack.c.b16 %v1909, %v1908
        %v2049 = vpack.c.b16 %v1911, %v1910
        %v2050 = vpack.c.b16 %v1913, %v1912
        %v2051 = vpack.c.b16 %v1915, %v1914
        %v2052 = vpack.c.b16 %v1917, %v1916
        %v2053 = vpack.c.b16 %v1919, %v1918
        %v2054 = vpack.c.b16 %v1921, %v1920
        %v2055 = vpack.c.b16 %v1923, %v1922
        %v2056 = vpack.c.b16 %v1925, %v1924
        %v2057 = vpack.c.b16 %v1927, %v1926
        %v2058 = vpack.c.b16 %v1929, %v1928
        %v2059 = vpack.c.b16 %v1931, %v1930
        %v2060 = vpack.c.b16 %v1933, %v1932
        %v2061 = vpack.c.b16 %v1935, %v1934
        %v2062 = vpack.c.b16 %v1937, %v1936
        %v2063 = vpack.c.b16 %v1939, %v1938
        %v2064 = vpack.c.b16 %v1941, %v1940
        %v2065 = vpack.c.b16 %v1943, %v1942
        %v2066 = vpack.c.b16 %v1945, %v1944
        %v2067 = vpack.c.b16 %v1947, %v1946
        %v2068 = vpack.c.b16 %v1949, %v1948
        %v2069 = vpack.c.b16 %v1951, %v1950
        %v2070 = vpack.c.b16 %v1953, %v1952
        %v2071 = vpack.c.b16 %v1955, %v1954
        %v2072 = vpack.c.b16 %v1957, %v1956
        %v2073 = vpack.c.b16 %v1959, %v1958
        %v2074 = vpack.c.b16 %v1961, %v1960
        %v2075 = vpack.c.b16 %v1963, %v1962
        %v2076 = vpack.c.b16 %v1965, %v1964
        %v2077 = vpack.c.b16 %v1967, %v1966
        %v2078 = vpack.c.b16 %v1969, %v1968
        %v2079 = vpack.c.b16 %v1971, %v1970
        %v2080 = vpack.c.b16 %v1973, %v1972
        %v2081 = vpack.c.b16 %v1975, %v1974
        %v2082 = vpack.c.b16 %v1977, %v1976
        %v2083 = vpack.c.b16 %v1979, %v1978
        %v2084 = vpack.c.b16 %v1981, %v1980
        %v2085 = vpack.c.b16 %v1983, %v1982
        %v2086 = vpack.c.b16 %v1985, %v1984
        %v2087 = vpack.c.b16 %v1987, %v1986
        %v2088 = vpack.c.b16 %v1989, %v1988
        %v2089 = vpack.c.b16 %v1991, %v1990
        %v2189 = vsel %vm1174, %v1396, 0
        %2191 = vmatprep.subr.bf16.mxu0 0
        %2192 = vmatpush1.bf16.msra.mxu0 %v1999
        %2193 = vmatprep.subr.bf16.mxu0 0
        %2194 = vmatpush1.bf16.msra.mxu0 %v1998
        %2195 = vmatprep.subr.bf16.mxu0 0
        %2196 = vmatpush1.bf16.msra.mxu0 %v1997
        %2197 = vmatprep.subr.bf16.mxu0 0
        %2198 = vmatpush1.bf16.msra.mxu0 %v1996
        %2199 = vmatprep.subr.bf16.mxu0 0
        %2200 = vmatpush1.bf16.msra.mxu0 %v1995
        %2201 = vmatprep.subr.bf16.mxu0 0
        %2202 = vmatpush1.bf16.msra.mxu0 %v1994
        %2203 = vmatprep.subr.bf16.mxu0 0
        %2204 = vmatpush1.bf16.msra.mxu0 %v1993
        %2205 = vmatprep.subr.bf16.mxu0 0
        %2206 = vmatpush1.bf16.msra.mxu0 %v1992
        %2207 = vmatprep.subr.bf16.mxu0 0
        %2208 = vmatpush2.bf16.msra.mxu0 %v2007
        %2209 = vmatprep.subr.bf16.mxu0 0
        %2210 = vmatpush2.bf16.msra.mxu0 %v2006
        %2211 = vmatprep.subr.bf16.mxu0 0
        %2212 = vmatpush2.bf16.msra.mxu0 %v2005
        %2213 = vmatprep.subr.bf16.mxu0 0
        %2214 = vmatpush2.bf16.msra.mxu0 %v2004
        %2215 = vmatprep.subr.bf16.mxu0 0
        %2216 = vmatpush2.bf16.msra.mxu0 %v2003
        %2217 = vmatprep.subr.bf16.mxu0 0
        %2218 = vmatpush2.bf16.msra.mxu0 %v2002
        %2219 = vmatprep.subr.bf16.mxu0 0
        %2220 = vmatpush2.bf16.msra.mxu0 %v2001
        %2221 = vmatprep.subr.bf16.mxu0 0
        %2222 = vmatpush2.bf16.msra.mxu0 %v2000
        %2223 = vmatprep.mubr.bf16.mxu0 %v1385
        %2224 = vmatmul.mubr.bf16.gmra.mxu0 %v1384
        %v2225 = vpop.f32.mrf.mxu0
        %v2226 = vadd.f32 %v1598, %v2225
        %v2227 = vpop.f32.mrf.mxu0
        %v2228 = vpop.f32.mrf.mxu0
        %v2229 = vpop.f32.mrf.mxu0
        %2230 = vdwg.mxu0
        %2231 = vmatprep.subr.bf16.mxu0 0
        %2232 = vmatpush1.bf16.msra.mxu0 %v2015
        %2233 = vmatprep.subr.bf16.mxu0 0
        %2234 = vmatpush1.bf16.msra.mxu0 %v2014
        %2235 = vmatprep.subr.bf16.mxu0 0
        %2236 = vmatpush1.bf16.msra.mxu0 %v2013
        %2237 = vmatprep.subr.bf16.mxu0 0
        %2238 = vmatpush1.bf16.msra.mxu0 %v2012
        %2239 = vmatprep.subr.bf16.mxu0 0
        %2240 = vmatpush1.bf16.msra.mxu0 %v2011
        %2241 = vmatprep.subr.bf16.mxu0 0
        %2242 = vmatpush1.bf16.msra.mxu0 %v2010
        %2243 = vmatprep.subr.bf16.mxu0 0
        %2244 = vmatpush1.bf16.msra.mxu0 %v2009
        %2245 = vmatprep.subr.bf16.mxu0 0
        %2246 = vmatpush1.bf16.msra.mxu0 %v2008
        %2247 = vmatprep.subr.bf16.mxu0 0
        %2248 = vmatpush2.bf16.msra.mxu0 %v2023
        %2249 = vmatprep.subr.bf16.mxu0 0
        %2250 = vmatpush2.bf16.msra.mxu0 %v2022
        %2251 = vmatprep.subr.bf16.mxu0 0
        %2252 = vmatpush2.bf16.msra.mxu0 %v2021
        %2253 = vmatprep.subr.bf16.mxu0 0
        %2254 = vmatpush2.bf16.msra.mxu0 %v2020
        %2255 = vmatprep.subr.bf16.mxu0 0
        %2256 = vmatpush2.bf16.msra.mxu0 %v2019
        %2257 = vmatprep.subr.bf16.mxu0 0
        %2258 = vmatpush2.bf16.msra.mxu0 %v2018
        %2259 = vmatprep.subr.bf16.mxu0 0
        %2260 = vmatpush2.bf16.msra.mxu0 %v2017
        %2261 = vmatprep.subr.bf16.mxu0 0
        %2262 = vmatpush2.bf16.msra.mxu0 %v2016
        %2263 = vmatprep.mubr.bf16.mxu0 %v1387
        %2264 = vmatmul.mubr.bf16.gmra.mxu0 %v1386
        %v2265 = vpop.f32.mrf.mxu0
        %v2266 = vadd.f32 %v2226, %v2265
        %v2267 = vpop.f32.mrf.mxu0
        %v2268 = vpop.f32.mrf.mxu0
        %v2269 = vpop.f32.mrf.mxu0
        %2270 = vdwg.mxu0
        %2271 = vmatprep.subr.bf16.mxu0 0
        %2272 = vmatpush1.bf16.msra.mxu0 %v2031
        %2273 = vmatprep.subr.bf16.mxu0 0
        %2274 = vmatpush1.bf16.msra.mxu0 %v2030
        %2275 = vmatprep.subr.bf16.mxu0 0
        %2276 = vmatpush1.bf16.msra.mxu0 %v2029
        %2277 = vmatprep.subr.bf16.mxu0 0
        %2278 = vmatpush1.bf16.msra.mxu0 %v2028
        %2279 = vmatprep.subr.bf16.mxu0 0
        %2280 = vmatpush1.bf16.msra.mxu0 %v2027
        %2281 = vmatprep.subr.bf16.mxu0 0
        %2282 = vmatpush1.bf16.msra.mxu0 %v2026
        %2283 = vmatprep.subr.bf16.mxu0 0
        %2284 = vmatpush1.bf16.msra.mxu0 %v2025
        %2285 = vmatprep.subr.bf16.mxu0 0
        %2286 = vmatpush1.bf16.msra.mxu0 %v2024
        %2287 = vmatprep.subr.bf16.mxu0 0
        %2288 = vmatpush2.bf16.msra.mxu0 %v2039
        %2289 = vmatprep.subr.bf16.mxu0 0
        %2290 = vmatpush2.bf16.msra.mxu0 %v2038
        %2291 = vmatprep.subr.bf16.mxu0 0
        %2292 = vmatpush2.bf16.msra.mxu0 %v2037
        %2293 = vmatprep.subr.bf16.mxu0 0
        %2294 = vmatpush2.bf16.msra.mxu0 %v2036
        %2295 = vmatprep.subr.bf16.mxu0 0
        %2296 = vmatpush2.bf16.msra.mxu0 %v2035
        %2297 = vmatprep.subr.bf16.mxu0 0
        %2298 = vmatpush2.bf16.msra.mxu0 %v2034
        %2299 = vmatprep.subr.bf16.mxu0 0
        %2300 = vmatpush2.bf16.msra.mxu0 %v2033
        %2301 = vmatprep.subr.bf16.mxu0 0
        %2302 = vmatpush2.bf16.msra.mxu0 %v2032
        %2303 = vmatprep.mubr.bf16.mxu0 %v1389
        %2304 = vmatmul.mubr.bf16.gmra.mxu0 %v1388
        %v2305 = vpop.f32.mrf.mxu0
        %v2306 = vadd.f32 %v2266, %v2305
        %v2307 = vpop.f32.mrf.mxu0
        %v2308 = vpop.f32.mrf.mxu0
        %v2309 = vpop.f32.mrf.mxu0
        %2310 = vdwg.mxu0
        %2311 = vmatprep.subr.bf16.mxu0 0
        %2312 = vmatpush1.bf16.msra.mxu0 %v2047
        %2313 = vmatprep.subr.bf16.mxu0 0
        %2314 = vmatpush1.bf16.msra.mxu0 %v2046
        %2315 = vmatprep.subr.bf16.mxu0 0
        %2316 = vmatpush1.bf16.msra.mxu0 %v2045
        %2317 = vmatprep.subr.bf16.mxu0 0
        %2318 = vmatpush1.bf16.msra.mxu0 %v2044
        %2319 = vmatprep.subr.bf16.mxu0 0
        %2320 = vmatpush1.bf16.msra.mxu0 %v2043
        %2321 = vmatprep.subr.bf16.mxu0 0
        %2322 = vmatpush1.bf16.msra.mxu0 %v2042
        %2323 = vmatprep.subr.bf16.mxu0 0
        %2324 = vmatpush1.bf16.msra.mxu0 %v2041
        %2325 = vmatprep.subr.bf16.mxu0 0
        %2326 = vmatpush1.bf16.msra.mxu0 %v2040
        %2327 = vmatprep.subr.bf16.mxu0 0
        %2328 = vmatpush2.bf16.msra.mxu0 %v2055
        %2329 = vmatprep.subr.bf16.mxu0 0
        %2330 = vmatpush2.bf16.msra.mxu0 %v2054
        %2331 = vmatprep.subr.bf16.mxu0 0
        %2332 = vmatpush2.bf16.msra.mxu0 %v2053
        %2333 = vmatprep.subr.bf16.mxu0 0
        %2334 = vmatpush2.bf16.msra.mxu0 %v2052
        %2335 = vmatprep.subr.bf16.mxu0 0
        %2336 = vmatpush2.bf16.msra.mxu0 %v2051
        %2337 = vmatprep.subr.bf16.mxu0 0
        %2338 = vmatpush2.bf16.msra.mxu0 %v2050
        %2339 = vmatprep.subr.bf16.mxu0 0
        %2340 = vmatpush2.bf16.msra.mxu0 %v2049
        %2341 = vmatprep.subr.bf16.mxu0 0
        %2342 = vmatpush2.bf16.msra.mxu0 %v2048
        %2343 = vmatprep.mubr.bf16.mxu0 %v1391
        %2344 = vmatmul.mubr.bf16.gmra.mxu0 %v1390
        %v2345 = vpop.f32.mrf.mxu0
        %v2346 = vadd.f32 %v2306, %v2345
        %v2347 = vpop.f32.mrf.mxu0
        %v2348 = vpop.f32.mrf.mxu0
        %v2349 = vpop.f32.mrf.mxu0
        %2350 = vdwg.mxu0
        %2351 = vmatprep.subr.bf16.mxu0 0
        %2352 = vmatpush1.bf16.msra.mxu0 %v2063
        %2353 = vmatprep.subr.bf16.mxu0 0
        %2354 = vmatpush1.bf16.msra.mxu0 %v2062
        %2355 = vmatprep.subr.bf16.mxu0 0
        %2356 = vmatpush1.bf16.msra.mxu0 %v2061
        %2357 = vmatprep.subr.bf16.mxu0 0
        %2358 = vmatpush1.bf16.msra.mxu0 %v2060
        %2359 = vmatprep.subr.bf16.mxu0 0
        %2360 = vmatpush1.bf16.msra.mxu0 %v2059
        %2361 = vmatprep.subr.bf16.mxu0 0
        %2362 = vmatpush1.bf16.msra.mxu0 %v2058
        %2363 = vmatprep.subr.bf16.mxu0 0
        %2364 = vmatpush1.bf16.msra.mxu0 %v2057
        %2365 = vmatprep.subr.bf16.mxu0 0
        %2366 = vmatpush1.bf16.msra.mxu0 %v2056
        %2367 = vmatprep.subr.bf16.mxu0 0
        %2368 = vmatpush2.bf16.msra.mxu0 %v2071
        %2369 = vmatprep.subr.bf16.mxu0 0
        %2370 = vmatpush2.bf16.msra.mxu0 %v2070
        %2371 = vmatprep.subr.bf16.mxu0 0
        %2372 = vmatpush2.bf16.msra.mxu0 %v2069
        %2373 = vmatprep.subr.bf16.mxu0 0
        %2374 = vmatpush2.bf16.msra.mxu0 %v2068
        %2375 = vmatprep.subr.bf16.mxu0 0
        %2376 = vmatpush2.bf16.msra.mxu0 %v2067
        %2377 = vmatprep.subr.bf16.mxu0 0
        %2378 = vmatpush2.bf16.msra.mxu0 %v2066
        %2379 = vmatprep.subr.bf16.mxu0 0
        %2380 = vmatpush2.bf16.msra.mxu0 %v2065
        %2381 = vmatprep.subr.bf16.mxu0 0
        %2382 = vmatpush2.bf16.msra.mxu0 %v2064
        %2383 = vmatprep.mubr.bf16.mxu0 %v1393
        %2384 = vmatmul.mubr.bf16.gmra.mxu0 %v1392
        %v2385 = vpop.f32.mrf.mxu0
        %v2386 = vadd.f32 %v2346, %v2385
        %v2387 = vpop.f32.mrf.mxu0
        %v2388 = vpop.f32.mrf.mxu0
        %v2389 = vpop.f32.mrf.mxu0
        %2390 = vdwg.mxu0
        %2391 = vmatprep.subr.bf16.mxu0 0
        %2392 = vmatpush1.bf16.msra.mxu0 %v2079
        %2393 = vmatprep.subr.bf16.mxu0 0
        %2394 = vmatpush1.bf16.msra.mxu0 %v2078
        %2395 = vmatprep.subr.bf16.mxu0 0
        %2396 = vmatpush1.bf16.msra.mxu0 %v2077
        %2397 = vmatprep.subr.bf16.mxu0 0
        %2398 = vmatpush1.bf16.msra.mxu0 %v2076
        %2399 = vmatprep.subr.bf16.mxu0 0
        %2400 = vmatpush1.bf16.msra.mxu0 %v2075
        %2401 = vmatprep.subr.bf16.mxu0 0
        %2402 = vmatpush1.bf16.msra.mxu0 %v2074
        %2403 = vmatprep.subr.bf16.mxu0 0
        %2404 = vmatpush1.bf16.msra.mxu0 %v2073
        %2405 = vmatprep.subr.bf16.mxu0 0
        %2406 = vmatpush1.bf16.msra.mxu0 %v2072
        %2407 = vmatprep.subr.bf16.mxu0 0
        %2408 = vmatpush2.bf16.msra.mxu0 %v2087
        %2409 = vmatprep.subr.bf16.mxu0 0
        %2410 = vmatpush2.bf16.msra.mxu0 %v2086
        %2411 = vmatprep.subr.bf16.mxu0 0
        %2412 = vmatpush2.bf16.msra.mxu0 %v2085
        %2413 = vmatprep.subr.bf16.mxu0 0
        %2414 = vmatpush2.bf16.msra.mxu0 %v2084
        %2415 = vmatprep.subr.bf16.mxu0 0
        %2416 = vmatpush2.bf16.msra.mxu0 %v2083
        %2417 = vmatprep.subr.bf16.mxu0 0
        %2418 = vmatpush2.bf16.msra.mxu0 %v2082
        %2419 = vmatprep.subr.bf16.mxu0 0
        %2420 = vmatpush2.bf16.msra.mxu0 %v2081
        %2421 = vmatprep.subr.bf16.mxu0 0
        %2422 = vmatpush2.bf16.msra.mxu0 %v2080
        %2423 = vmatprep.mubr.bf16.mxu0 %v1395
        %2424 = vmatmul.mubr.bf16.gmra.mxu0 %v1394
        %v2425 = vpop.f32.mrf.mxu0
        %v2426 = vadd.f32 %v2386, %v2425
        %v2427 = vpop.f32.mrf.mxu0
        %v2428 = vpop.f32.mrf.mxu0
        %v2429 = vpop.f32.mrf.mxu0
        %2430 = vdwg.mxu0
        %2431 = vmatprep.subr.bf16.mxu0 0
        %2432 = vmatpush1.bf16.msra.mxu0 0
        %2433 = vmatprep.subr.bf16.mxu0 0
        %2434 = vmatpush1.bf16.msra.mxu0 0
        %2435 = vmatprep.subr.bf16.mxu0 0
        %2436 = vmatpush1.bf16.msra.mxu0 0
        %2437 = vmatprep.subr.bf16.mxu0 0
        %2438 = vmatpush1.bf16.msra.mxu0 0
        %2439 = vmatprep.subr.bf16.mxu0 0
        %2440 = vmatpush1.bf16.msra.mxu0 0
        %2441 = vmatprep.subr.bf16.mxu0 0
        %2442 = vmatpush1.bf16.msra.mxu0 0
        %2443 = vmatprep.subr.bf16.mxu0 0
        %2444 = vmatpush1.bf16.msra.mxu0 %v2089
        %2445 = vmatprep.subr.bf16.mxu0 0
        %2446 = vmatpush1.bf16.msra.mxu0 %v2088
        %2447 = vmatprep.subr.bf16.mxu0 0
        %2448 = vmatpush2.bf16.msra.mxu0 0
        %2449 = vmatprep.subr.bf16.mxu0 0
        %2450 = vmatpush2.bf16.msra.mxu0 0
        %2451 = vmatprep.subr.bf16.mxu0 0
        %2452 = vmatpush2.bf16.msra.mxu0 0
        %2453 = vmatprep.subr.bf16.mxu0 0
        %2454 = vmatpush2.bf16.msra.mxu0 0
        %2455 = vmatprep.subr.bf16.mxu0 0
        %2456 = vmatpush2.bf16.msra.mxu0 0
        %2457 = vmatprep.subr.bf16.mxu0 0
        %2458 = vmatpush2.bf16.msra.mxu0 0
        %2459 = vmatprep.subr.bf16.mxu0 0
        %2460 = vmatpush2.bf16.msra.mxu0 0
        %2461 = vmatprep.subr.bf16.mxu0 0
        %2462 = vmatpush2.bf16.msra.mxu0 0
        %2463 = vmatprep.mubr.bf16.mxu0 0
        %2464 = vmatmul.mubr.bf16.gmra.mxu0 %v2189
        %v2465 = vpop.f32.mrf.mxu0
        %v2466 = vadd.f32 %v2426, %v2465
        %v2467 = vpop.f32.mrf.mxu0
        %v2468 = vpop.f32.mrf.mxu0
        %v2469 = vpop.f32.mrf.mxu0
        %2470 = vdwg.mxu0
        %v2471 = vmax.f32 %v2466, 0.0
        %v2472 = vpack.c.bf16 %v2471, %v2471
        %v2473 = vld [vmem:[%s4] sm:$0xf]
        %v2474 = vld [vmem:[%s4 + $0x4] sm:$0xf]
        %v2475 = vld [vmem:[%s4 + $0x8] sm:$0xf]
        %v2476 = vld [vmem:[%s4 + $0xc] sm:$0xf]
        %v2477 = vld [vmem:[%s4 + $0x10] sm:$0xf]
        %v2478 = vld [vmem:[%s4 + $0x14] sm:$0xf]
        %v2479 = vld [vmem:[%s4 + $0x18] sm:$0xf]
        %v2480 = vld [vmem:[%s4 + $0x1c] sm:$0xf]
        %v2481 = vld [vmem:[%s5] sm:$0x1]
        %v2483 = vlaneseq
        %v2484 = vshrl.u32 %v2483, 7
        %v2485 = vsub.s32 0, %v2484
        %v2486 = vrot.slane %v2481, %v2485
        %v2496 = vunpack.c.l.b16 %v2473
        %v2497 = vunpack.c.l.b16 %v2474
        %v2498 = vunpack.c.l.b16 %v2475
        %v2499 = vunpack.c.l.b16 %v2476
        %v2500 = vunpack.c.l.b16 %v2477
        %v2501 = vunpack.c.l.b16 %v2478
        %v2502 = vunpack.c.l.b16 %v2479
        %v2503 = vunpack.c.l.b16 %v2480
        %v2504 = vpack.c.b16 %v2497, %v2496
        %v2505 = vpack.c.b16 %v2499, %v2498
        %v2506 = vpack.c.b16 %v2501, %v2500
        %v2507 = vpack.c.b16 %v2503, %v2502
        %vm2512 = vcmask 523264
        %v2514 = vsel %vm2512, %v2472, 0
        %2516 = vmatprep.subr.bf16.mxu0 0
        %2517 = vmatpush1.bf16.msra.mxu0 0
        %2518 = vmatprep.subr.bf16.mxu0 0
        %2519 = vmatpush1.bf16.msra.mxu0 0
        %2520 = vmatprep.subr.bf16.mxu0 0
        %2521 = vmatpush1.bf16.msra.mxu0 0
        %2522 = vmatprep.subr.bf16.mxu0 0
        %2523 = vmatpush1.bf16.msra.mxu0 0
        %2524 = vmatprep.subr.bf16.mxu0 0
        %2525 = vmatpush1.bf16.msra.mxu0 %v2507
        %2526 = vmatprep.subr.bf16.mxu0 0
        %2527 = vmatpush1.bf16.msra.mxu0 %v2506
        %2528 = vmatprep.subr.bf16.mxu0 0
        %2529 = vmatpush1.bf16.msra.mxu0 %v2505
        %2530 = vmatprep.subr.bf16.mxu0 0
        %2531 = vmatpush1.bf16.msra.mxu0 %v2504
        %2532 = vmatprep.subr.bf16.mxu0 0
        %2533 = vmatpush2.bf16.msra.mxu0 0
        %2534 = vmatprep.subr.bf16.mxu0 0
        %2535 = vmatpush2.bf16.msra.mxu0 0
        %2536 = vmatprep.subr.bf16.mxu0 0
        %2537 = vmatpush2.bf16.msra.mxu0 0
        %2538 = vmatprep.subr.bf16.mxu0 0
        %2539 = vmatpush2.bf16.msra.mxu0 0
        %2540 = vmatprep.subr.bf16.mxu0 0
        %2541 = vmatpush2.bf16.msra.mxu0 0
        %2542 = vmatprep.subr.bf16.mxu0 0
        %2543 = vmatpush2.bf16.msra.mxu0 0
        %2544 = vmatprep.subr.bf16.mxu0 0
        %2545 = vmatpush2.bf16.msra.mxu0 0
        %2546 = vmatprep.subr.bf16.mxu0 0
        %2547 = vmatpush2.bf16.msra.mxu0 0
        %2548 = vmatprep.mubr.bf16.mxu0 0
        %2549 = vmatmul.mubr.bf16.gmra.mxu0 %v2514
        %v2550 = vpop.f32.mrf.mxu0
        %v2551 = vadd.f32 %v2486, %v2550
        %v2552 = vpop.f32.mrf.mxu0
        %v2553 = vpop.f32.mrf.mxu0
        %v2554 = vpop.f32.mrf.mxu0
        %2555 = vdwg.mxu0
        %v2556 = vmax.f32 %v2551, 0.0
        %2557 = vst.msk [vmem:[%s259] sm:$0xff] %vm2512, %v2556
        %s2558 = sand.u32 %s164, 1
        %s2559 = scalar_lea.sflag [#allocation4], %s2558
        %s2560 = sand.u32 %s164, 1
        %s2561 = smul.addr %s2560, 8
        %s2562 = scalar_lea.vmem [#allocation3], %s2561
        // Predicated region
        $region45: #{maskrcnn_benchmark_forward.5} parent=43 // pred_check
          %p2563 = pneg %p174
        $region46: #{maskrcnn_benchmark_forward.5} parent=43 // pred_check_branch
          %2565 = sbr.rel (%p2563) target = $region48
        $region47: #{maskrcnn_benchmark_forward.5} parent=43 // pred_region
          %s2567 = ssub.s32 128, 128
          %2568 = vsyncadd %s2559, %s2567
          %s2569 = smul.addr %s20, 128
          %s2570 = scalar_lea.hbm %s6, %s2569
          %s2572 = sshll.u32 %s2562, 4
          %s2573 = int_to_ptr.vmem [resolvable:$true] %s2572
          %2575 = dma.vmem_to_hbm [thread:$0]  %s2573, 128, %s2570, %s2559
        $region48: #{maskrcnn_benchmark_forward.5} parent=43 // pred_fallthru
          _
      $region44: #{maskrcnn_benchmark_forward.5} parent=5 // pred_fallthru
        _
      %p2576 = scmp.le.s32.totalorder 2, %s15
      // Predicated region
      $region49: #{maskrcnn_benchmark_forward.5} parent=5 // pred_check
        %p2577 = pneg %p2576
      $region50: #{maskrcnn_benchmark_forward.5} parent=5 // pred_check_branch
        %2579 = sbr.rel (%p2577) target = $region52
      $region51: #{maskrcnn_benchmark_forward.5} parent=5 // pred_region
        %s2580 = ssub.s32 %s15, 2
        // Predicated region
        $region53: #{maskrcnn_benchmark_forward.5} parent=51 // pred_check
          %p2581 = pneg %p180
        $region54: #{maskrcnn_benchmark_forward.5} parent=51 // pred_check_branch
          %2583 = sbr.rel (%p2581) target = $region56
        $region55: #{maskrcnn_benchmark_forward.5} parent=51 // pred_region
          %s2584 = sand.u32 %s165, 1
          %s2585 = scalar_lea.sflag [#allocation4], %s2584
          %s2586 = sand.u32 %s165, 1
          %s2587 = smul.addr %s2586, 8
          %s2588 = scalar_lea.vmem [#allocation3], %s2587
          %2589 = dma.done %s2585, 128
        $region56: #{maskrcnn_benchmark_forward.5} parent=51 // pred_fallthru
          _
      $region52: #{maskrcnn_benchmark_forward.5} parent=5 // pred_fallthru
        _
    $region6: #{maskrcnn_benchmark_forward.5} parent=1 // loop_footer
      %s19 = sadd.s32 1, %s15
    $region7: #{maskrcnn_benchmark_forward.5} parent=1 // loop_footer_branch
      %14 = sbr.rel target = $region3
    $region8: #{maskrcnn_benchmark_forward.5} parent=1 // loop_exit
      _
    %2590 = vsyncpa [#allocation4], 1
    %s2591 = scalar_lea.sflag [#allocation4], 1
    %2592 = vsyncpa %s2591, 1

</llo_original>
